<compile_context>
chip_gen: v5e
topology: v5e:2x2
jax: 0.10.0
libtpu: 0.0.40
codegen_flags: <defaults>
</compile_context>

<pallas_src>
import numpy as np
from math import exp

import jax
import jax.numpy as jnp
from jax import lax
from jax.experimental import pallas as pl
from jax.experimental.pallas import tpu as pltpu

WINDOW_SIZE = 11
SIGMA = 1.5
PAD = WINDOW_SIZE // 2
C1 = 0.01 ** 2
C2 = 0.03 ** 2


def _gaussian_1d(window_size=WINDOW_SIZE, sigma=SIGMA):
    # Matches torch `gaussian(window_size, 1.5)` (normalized 1D Gaussian).
    g = np.array(
        [exp(-(x - window_size // 2) ** 2 / float(2 * sigma ** 2))
         for x in range(window_size)],
        dtype=np.float64)
    return (g / g.sum()).astype(np.float32)


def _blur_matrix(n):
    """Banded 'same'-padding blur matrix G with G[j, i] = w[j - i + PAD].

    Acting on columns:  (x @ G)[r, i]   = sum_k w[k] * x[r, i + k - PAD]
    Acting on rows:     (G.T @ x)[i, c] = sum_k w[k] * x[i + k - PAD, c]
    i.e. exactly F.conv2d(..., padding=PAD) along that axis (zero padding).
    """
    w = _gaussian_1d()
    G = np.zeros((n, n), dtype=np.float32)
    for i in range(n):
        for k in range(WINDOW_SIZE):
            j = i + k - PAD
            if 0 <= j < n:
                G[j, i] = w[k]
    return G


def _vmem_limit_bytes():
    # Per-generation scoped-VMEM retune: ~75% of physical VMEM
    # (v7x: 64 MiB -> 48 MiB, v5e/v6e: 128 MiB -> 96 MiB), clamped to a sane
    # range.  Falls back to 48 MiB (v7x-safe) if the query is unavailable.
    try:
        cap = int(pltpu.get_tpu_info().vmem_capacity_bytes)
    except Exception:
        cap = 64 * 1024 * 1024
    return max(32 * 1024 * 1024, min(cap * 3 // 4, 100 * 1024 * 1024))


def _choose_cb(P, H, W, itemsize, vmem_limit):
    """Pick the plane-block size CB (planes per grid step)."""
    # Sublane multiple required by the input block in its *native* dtype
    # (f32: 8, bf16: 16, 8-bit: 32 rows).
    sub = 8 * max(1, 4 // max(1, itemsize))
    # Peak in-kernel f32 live set is roughly 40-48x one (CB*H, W) input block
    # (s / th / t3 / gv_b / tv / mu / sigma / ssim temporaries).
    cap = max(1, min(vmem_limit // (4 * 48 * H * W), P))
    if P >= 2:
        cap = min(cap, (P + 1) // 2)   # >= 2 grid steps: feeds both v7x TCs
    for cb in range(cap, 0, -1):
        if (cb * H) % sub == 0:
            return cb
    # TODO(synk): no sublane-aligned CB exists for this (H, dtype); fall back
    # to CB=cap and rely on Mosaic's sub-tile handling.
    return cap


def _make_ssim_kernel(CB, H, W, P):
    M = 5 * CB           # five blur operands per plane in the block

    def kernel(gh_ref, gv_ref, img1_ref, img2_ref, out_ref):
        gh = gh_ref[...]                          # (W, W) horizontal blur
        gvT = gv_ref[...]                         # (H, H) vertical blur (G^T)
        x1 = img1_ref[...].astype(jnp.float32)    # (CB*H, W) native -> f32
        x2 = img2_ref[...].astype(jnp.float32)

        # Fuse the five blur operands along the row axis -> (5*CB*H, W).
        s = jnp.concatenate([x1, x2, x1 * x1, x2 * x2, x1 * x2], axis=0)

        # Horizontal Gaussian ('same' zero padding baked into gh): ONE MXU
        # matmul for all operands and all planes in the block.  HIGHEST keeps
        # exact-f32 fidelity with the PyTorch conv2d reference.
        # TODO(synk): block-band gh (K ~ Tc + 2*PAD) for very large W (v5e).
        th = jnp.dot(s, gh, preferred_element_type=jnp.float32,
                     precision=lax.Precision.HIGHEST)          # (M*H, W)

        # Vertical Gaussian on the MXU: per-plane (H, H) @ (H, W) as a single
        # batched matmul (replaces the old 11-tap VPU loop with unaligned
        # shifted slices).  gv_b costs only M*H*H*4 bytes of VMEM.
        t3 = th.reshape(M, H, W)
        gvb = jnp.broadcast_to(gvT[None, :, :], (M, H, H))
        tv = jnp.einsum('mhk,mkw->mhw', gvb, t3,
                        preferred_element_type=jnp.float32,
                        precision=lax.Precision.HIGHEST)       # (M, H, W)

        # Split the blurred stack back into the five fields.
        mu1 = tv[0 * CB:1 * CB]
        mu2 = tv[1 * CB:2 * CB]
        e11 = tv[2 * CB:3 * CB]
        e22 = tv[3 * CB:4 * CB]
        e12 = tv[4 * CB:5 * CB]

        mu1_sq = mu1 * mu1
        mu2_sq = mu2 * mu2
        mu1_mu2 = mu1 * mu2
        sigma1_sq = e11 - mu1_sq
        sigma2_sq = e22 - mu2_sq
        sigma12 = e12 - mu1_mu2

        num = (2.0 * mu1_mu2 + C1) * (2.0 * sigma12 + C2)
        den = (mu1_sq + mu2_sq + C1) * (sigma1_sq + sigma2_sq + C2)
        ssim_map = num / den   # exact divide: match the f32 PyTorch reference

        # Mask planes past P (the last grid block may be partial: cdiv grid).
        plane0 = pl.program_id(0) * CB
        plane_id = plane0 + lax.broadcasted_iota(jnp.int32, (CB, H, W), 0)
        psum = jnp.sum(jnp.where(plane_id < P, ssim_map, 0.0))

        # Race-free per-program partial sum, stored as an (8, 128)-aligned
        # splat so the write is a full-tile vst (no sub-tile masked store).
        out_ref[...] = jnp.zeros((1, 8, 128), jnp.float32) + psum

    return kernel


def ssim_pallas(img1, img2):
    """SSIM forward (size_average=True), matching the PyTorch module."""
    # TODO(synk): size_average=False (per-image mean) path not implemented;
    # the module default (size_average=True) is reproduced.
    assert img1.shape == img2.shape
    N, C, H, W = img1.shape
    P = N * C
    itemsize = jnp.dtype(img1.dtype).itemsize

    vmem_limit = _vmem_limit_bytes()
    CB = _choose_cb(P, H, W, itemsize, vmem_limit)
    num_blocks = pl.cdiv(P, CB)

    # Pure views (no data movement, native dtype -> cast happens in-kernel).
    # TODO(synk): for W not a multiple of 128, lane-pad W in the wrapper
    # (zero rows/cols in gh + lane mask in the partial sum) for full vreg/MXU
    # occupancy.
    x1 = img1.reshape(P * H, W)
    x2 = img2.reshape(P * H, W)
    gh = jnp.asarray(_blur_matrix(W))       # (W, W)  horizontal (column) blur
    gv = jnp.asarray(_blur_matrix(H).T)     # (H, H)  vertical (row) blur, G^T

    kernel = _make_ssim_kernel(CB, H, W, P)
    partials = pl.pallas_call(
        kernel,
        out_shape=jax.ShapeDtypeStruct((num_blocks, 8, 128), jnp.float32),
        grid_spec=pltpu.PrefetchScalarGridSpec(
            num_scalar_prefetch=0,
            grid=(num_blocks,),
            in_specs=[
                # Grid-invariant blur matrices (block index never changes, so
                # they are fetched once).
                # TODO(synk): pipeline_mode=pl.Buffered(1) would drop their
                # second VMEM buffer for very large W/H.
                pl.BlockSpec((W, W), lambda b: (0, 0)),
                pl.BlockSpec((H, H), lambda b: (0, 0)),
                pl.BlockSpec((CB * H, W), lambda b: (b, 0)),
                pl.BlockSpec((CB * H, W), lambda b: (b, 0)),
            ],
            out_specs=pl.BlockSpec((1, 8, 128), lambda b: (b, 0, 0)),
        ),
        compiler_params=pltpu.CompilerParams(
            dimension_semantics=("parallel",),
            vmem_limit_bytes=vmem_limit),
    )(gh, gv, x1, x2)

    # Tiny final reduction outside the kernel (size_average=True).
    return jnp.sum(partials[:, 0, 0]) / float(N * C * H * W)


def _ssim_reference(img1, img2):
    """Pure-JAX reference (same separable-Gaussian SSIM, exact f32)."""
    gh = jnp.asarray(_blur_matrix(img1.shape[3]))
    gvT = jnp.asarray(_blur_matrix(img1.shape[2]).T)
    hp = lax.Precision.HIGHEST

    def blur(x):
        xh = jnp.einsum('nchw,wv->nchv', x, gh, precision=hp)
        return jnp.einsum('hk,nckw->nchw', gvT, xh, precision=hp)

    x1 = img1.astype(jnp.float32)
    x2 = img2.astype(jnp.float32)
    mu1, mu2 = blur(x1), blur(x2)
    e11, e22, e12 = blur(x1 * x1), blur(x2 * x2), blur(x1 * x2)
    mu1_sq, mu2_sq, mu1_mu2 = mu1 * mu1, mu2 * mu2, mu1 * mu2
    s1, s2, s12 = e11 - mu1_sq, e22 - mu2_sq, e12 - mu1_mu2
    ssim_map = ((2 * mu1_mu2 + C1) * (2 * s12 + C2)
                / ((mu1_sq + mu2_sq + C1) * (s1 + s2 + C2)))
    return jnp.mean(ssim_map)


if __name__ == "__main__":
    key = jax.random.PRNGKey(0)
    k1, k2 = jax.random.split(key)
    img1 = jax.random.uniform(k1, (2, 4, 16, 16), dtype=jnp.float32)
    img2 = jax.random.uniform(k2, (2, 4, 16, 16), dtype=jnp.float32)

    val = ssim_pallas(img1, img2)
    jax.block_until_ready(val)

    ref = _ssim_reference(img1, img2)
    assert abs(float(val) - float(ref)) < 1e-4, (float(val), float(ref))
    print("KERNEL_OK")
</pallas_src>

<mosaic_0001>
module attributes {stable_mosaic.version = 11 : i64} {
  func.func @kernel(%arg0: i32, %arg1: memref<16x16xf32, #tpu.memory_space<vmem>>, %arg2: memref<16x16xf32, #tpu.memory_space<vmem>>, %arg3: memref<64x16xf32, #tpu.memory_space<vmem>>, %arg4: memref<64x16xf32, #tpu.memory_space<vmem>>, %arg5: memref<1x8x128xf32, #tpu.memory_space<vmem>>) attributes {dimension_semantics = [#tpu.dimension_semantics<parallel>], iteration_bounds = array<i64: 2>, scalar_prefetch = 0 : i64, scratch_operands = 0 : i64, tpu.core_type = #tpu.core_type<tc>, window_params = [{pipeline_mode = #tpu.pipeline_mode<synchronous>, transform_indices = @transform_0, window_bounds = array<i64: 16, 16>}, {pipeline_mode = #tpu.pipeline_mode<synchronous>, transform_indices = @transform_1, window_bounds = array<i64: 16, 16>}, {transform_indices = @transform_2, window_bounds = array<i64: 64, 16>}, {transform_indices = @transform_3, window_bounds = array<i64: 64, 16>}, {transform_indices = @transform_4, window_bounds = array<i64: 1, 8, 128>}]} {
    %c0 = arith.constant 0 : index
    %c0_0 = arith.constant 0 : index
    %0 = vector.load %arg1[%c0, %c0_0] : memref<16x16xf32, #tpu.memory_space<vmem>>, vector<16x16xf32>
    %c0_1 = arith.constant 0 : index
    %c0_2 = arith.constant 0 : index
    %1 = vector.load %arg2[%c0_1, %c0_2] : memref<16x16xf32, #tpu.memory_space<vmem>>, vector<16x16xf32>
    %c0_3 = arith.constant 0 : index
    %c0_4 = arith.constant 0 : index
    %2 = vector.load %arg3[%c0_3, %c0_4] : memref<64x16xf32, #tpu.memory_space<vmem>>, vector<64x16xf32>
    %c0_5 = arith.constant 0 : index
    %c0_6 = arith.constant 0 : index
    %3 = vector.load %arg4[%c0_5, %c0_6] : memref<64x16xf32, #tpu.memory_space<vmem>>, vector<64x16xf32>
    %4 = arith.mulf %2, %2 : vector<64x16xf32>
    %5 = arith.mulf %3, %3 : vector<64x16xf32>
    %6 = arith.mulf %2, %3 : vector<64x16xf32>
    %7 = tpu.concatenate %2, %3, %4, %5, %6 in 0 : vector<64x16xf32>, vector<64x16xf32>, vector<64x16xf32>, vector<64x16xf32>, vector<64x16xf32> -> vector<320x16xf32>
    %cst = arith.constant dense<0.000000e+00> : vector<320x16xf32>
    %8 = tpu.matmul %7, %0, %cst {dimension_numbers = #tpu.dot_dimension_numbers<[1], [0], [0], [1], [0, 0, 1, 1], [], []>, precision = #tpu.contract_precision<fp32>} : vector<320x16xf32>, vector<16x16xf32>, vector<320x16xf32> -> vector<320x16xf32>
    %9 = vector.shape_cast %8 : vector<320x16xf32> to vector<20x16x16xf32>
    %10 = vector.shape_cast %1 : vector<16x16xf32> to vector<1x16x16xf32>
    %11 = vector.shape_cast %10 : vector<1x16x16xf32> to vector<1x16x16xf32>
    %12 = vector.broadcast %11 : vector<1x16x16xf32> to vector<20x16x16xf32>
    "tpu.trace_start"() <{level = 10 : i32, message = "mhk,mkw->mhw"}> : () -> ()
    %cst_7 = arith.constant dense<0.000000e+00> : vector<20x16x16xf32>
    %13 = tpu.matmul %12, %9, %cst_7 {dimension_numbers = #tpu.dot_dimension_numbers<[2], [1], [1], [2], [0, 0, 0, 1, 1, 2], [0], [0]>, precision = #tpu.contract_precision<fp32>} : vector<20x16x16xf32>, vector<20x16x16xf32>, vector<20x16x16xf32> -> vector<20x16x16xf32>
    "tpu.trace_stop"() : () -> ()
    %14 = vector.extract_strided_slice %13 {offsets = [0, 0, 0], sizes = [4, 16, 16], strides = [1, 1, 1]} : vector<20x16x16xf32> to vector<4x16x16xf32>
    %15 = vector.extract_strided_slice %13 {offsets = [4, 0, 0], sizes = [4, 16, 16], strides = [1, 1, 1]} : vector<20x16x16xf32> to vector<4x16x16xf32>
    %16 = vector.extract_strided_slice %13 {offsets = [8, 0, 0], sizes = [4, 16, 16], strides = [1, 1, 1]} : vector<20x16x16xf32> to vector<4x16x16xf32>
    %17 = vector.extract_strided_slice %13 {offsets = [12, 0, 0], sizes = [4, 16, 16], strides = [1, 1, 1]} : vector<20x16x16xf32> to vector<4x16x16xf32>
    %18 = vector.extract_strided_slice %13 {offsets = [16, 0, 0], sizes = [4, 16, 16], strides = [1, 1, 1]} : vector<20x16x16xf32> to vector<4x16x16xf32>
    %19 = arith.mulf %14, %14 : vector<4x16x16xf32>
    %20 = arith.mulf %15, %15 : vector<4x16x16xf32>
    %21 = arith.mulf %14, %15 : vector<4x16x16xf32>
    %22 = arith.subf %16, %19 : vector<4x16x16xf32>
    %23 = arith.subf %17, %20 : vector<4x16x16xf32>
    %24 = arith.subf %18, %21 : vector<4x16x16xf32>
    %cst_8 = arith.constant 2.000000e+00 : f32
    %25 = vector.broadcast %cst_8 : f32 to vector<4x16x16xf32>
    %26 = arith.mulf %25, %21 : vector<4x16x16xf32>
    %cst_9 = arith.constant 9.99999974E-5 : f32
    %27 = vector.broadcast %cst_9 : f32 to vector<4x16x16xf32>
    %28 = arith.addf %26, %27 : vector<4x16x16xf32>
    %cst_10 = arith.constant 2.000000e+00 : f32
    %29 = vector.broadcast %cst_10 : f32 to vector<4x16x16xf32>
    %30 = arith.mulf %29, %24 : vector<4x16x16xf32>
    %cst_11 = arith.constant 8.99999984E-4 : f32
    %31 = vector.broadcast %cst_11 : f32 to vector<4x16x16xf32>
    %32 = arith.addf %30, %31 : vector<4x16x16xf32>
    %33 = arith.mulf %28, %32 : vector<4x16x16xf32>
    %34 = arith.addf %19, %20 : vector<4x16x16xf32>
    %cst_12 = arith.constant 9.99999974E-5 : f32
    %35 = vector.broadcast %cst_12 : f32 to vector<4x16x16xf32>
    %36 = arith.addf %34, %35 : vector<4x16x16xf32>
    %37 = arith.addf %22, %23 : vector<4x16x16xf32>
    %cst_13 = arith.constant 8.99999984E-4 : f32
    %38 = vector.broadcast %cst_13 : f32 to vector<4x16x16xf32>
    %39 = arith.addf %37, %38 : vector<4x16x16xf32>
    %40 = arith.mulf %36, %39 : vector<4x16x16xf32>
    %41 = arith.divf %33, %40 : vector<4x16x16xf32>
    %c4_i32 = arith.constant 4 : i32
    %42 = arith.muli %arg0, %c4_i32 : i32
    %43 = tpu.iota {dimensions = array<i32: 0>} : vector<4x16x16xi32>
    %44 = vector.broadcast %42 : i32 to vector<4x16x16xi32>
    %45 = arith.addi %44, %43 : vector<4x16x16xi32>
    %c8_i32 = arith.constant 8 : i32
    %46 = vector.broadcast %c8_i32 : i32 to vector<4x16x16xi32>
    %47 = arith.cmpi slt, %45, %46 : vector<4x16x16xi32>
    %cst_14 = arith.constant 0.000000e+00 : f32
    %48 = vector.broadcast %cst_14 : f32 to vector<4x16x16xf32>
    %49 = arith.select %47, %41, %48 : vector<4x16x16xi1>, vector<4x16x16xf32>
    %50 = vector.shape_cast %49 : vector<4x16x16xf32> to vector<1x4x16x16xf32>
    %cst_15 = arith.constant dense<0.000000e+00> : vector<1xf32>
    %51 = vector.multi_reduction <add>, %50, %cst_15 [1, 2, 3] : vector<1x4x16x16xf32> to vector<1xf32>
    %52 = vector.shape_cast %51 : vector<1xf32> to vector<1x1x1x1xf32>
    %53 = vector.extract %52[0, 0, 0, 0] : f32 from vector<1x1x1x1xf32>
    %cst_16 = arith.constant 0.000000e+00 : f32
    %54 = vector.broadcast %cst_16 : f32 to vector<1x8x128xf32>
    %55 = vector.broadcast %53 : f32 to vector<1x8x128xf32>
    %56 = arith.addf %54, %55 : vector<1x8x128xf32>
    %c0_17 = arith.constant 0 : index
    %c0_18 = arith.constant 0 : index
    %c0_19 = arith.constant 0 : index
    %57 = vector.load %arg5[%c0_17, %c0_18, %c0_19] : memref<1x8x128xf32, #tpu.memory_space<vmem>>, vector<1x8x128xf32>
    tpu.vector_store %arg5[%c0_17, %c0_18, %c0_19], %56 {strides = array<i32>} : memref<1x8x128xf32, #tpu.memory_space<vmem>>, vector<1x8x128xf32>,
    return
  }
  func.func @transform_0(%arg0: i32) -> (i32, i32) {
    %c0_i32 = arith.constant 0 : i32
    %c0_i32_0 = arith.constant 0 : i32
    %c0_i32_1 = arith.constant 0 : i32
    return %c0_i32, %c0_i32_0 : i32, i32
  }
  func.func @transform_1(%arg0: i32) -> (i32, i32) {
    %c0_i32 = arith.constant 0 : i32
    %c0_i32_0 = arith.constant 0 : i32
    %c0_i32_1 = arith.constant 0 : i32
    return %c0_i32, %c0_i32_0 : i32, i32
  }
  func.func @transform_2(%arg0: i32) -> (i32, i32) {
    %c0_i32 = arith.constant 0 : i32
    %c0_i32_0 = arith.constant 0 : i32
    return %arg0, %c0_i32 : i32, i32
  }
  func.func @transform_3(%arg0: i32) -> (i32, i32) {
    %c0_i32 = arith.constant 0 : i32
    %c0_i32_0 = arith.constant 0 : i32
    return %arg0, %c0_i32 : i32, i32
  }
  func.func @transform_4(%arg0: i32) -> (i32, i32, i32) {
    %c0_i32 = arith.constant 0 : i32
    %c0_i32_0 = arith.constant 0 : i32
    %c0_i32_1 = arith.constant 0 : i32
    return %arg0, %c0_i32, %c0_i32_0 : i32, i32, i32
  }
}

</mosaic_0001>

<llo_original>
// kernel: tpu_custom_call.1
$region0: #{tpu_custom_call.1}
  #allocation0 [shape = 'u32[]', space=smem, size = 0x4, offset = 0x4, fixed_abs, tag = 'smem constant byte address 0x4 - core index']
  #allocation1 [shape = 'u32[72,128]{1,0:T(1,128)}', space=vmem, size = 0x9000, scoped, tag = 'internal scratch']
  %s0 = inlined_call_operand.vmem [shape: f32[16,16], index: 0, kind: input, shape index: {}]
  %s1 = inlined_call_operand.vmem [shape: f32[16,16], index: 1, kind: input, shape index: {}]
  %s2 = inlined_call_operand.vmem [shape: f32[128,16], index: 2, kind: input, shape index: {}]
  %s3 = inlined_call_operand.vmem [shape: f32[128,16], index: 3, kind: input, shape index: {}]
  %s4 = inlined_call_operand.hbm [shape: f32[2,8,128], index: 4, kind: output, shape index: {}]
  %s5 = sld [smem:[#allocation0]]
  $region49: #{tpu_custom_call.1} parent=0
    _
  %s7 = ssub.s32 1, %s5
  %s8 = scalar_select 0, %s7, %s5
  $region1: #{tpu_custom_call.1} parent=0
    #allocation2 [shape = 'u8[8192]{0}', space=vmem, size = 0x2000, scoped, tag = 'output window, operand 0']
    #allocation3 [shape = 's32[2]{0}', space=sflag, size = 0x8, scoped, tag = 'scoped memory for tpu_custom_call.1']
    %9 = vsyncpa [#allocation3], 0
    %s10 = scalar_lea.sflag [#allocation3], 1
    %11 = vsyncpa %s10, 0
    loop: start=0, step=1, limit=4
    $region2: #{tpu_custom_call.1} parent=1 // loop_pre_header
      _
    $region3: #{tpu_custom_call.1} parent=1 // loop_header
      %s13 = sphi 0, %s17
      %p14 = scmp.ge.s32.totalorder %s13, 4
      %s21 = sphi 0, %s21
      %s23 = sphi 0, %s21
      %s24 = sphi 0, %s23
      %s38 = sphi 0, %s24
      %s42 = sphi 0, %s42
      %s44 = sphi 0, %s42
      %s45 = sphi 0, %s44
      %s59 = sphi 0, %s45
      %s65 = sphi 0, %s67
      %s68 = sphi 0, %s65
      %s69 = sphi 0, %s68
      %s85 = sphi 0, %s69
      %s91 = sphi 0, %s93
      %s94 = sphi 0, %s91
      %s95 = sphi 0, %s94
      %s111 = sphi 0, %s95
      %s117 = sphi 0, %s119
      %s120 = sphi 0, %s117
      %s121 = sphi 0, %s120
      %s137 = sphi 0, %s121
    $region4: #{tpu_custom_call.1} parent=1 // loop_header_branch
      %16 = sbr.rel (%p14) target = $region8
    $region5: #{tpu_custom_call.1} parent=1 // loop_body
      %s18 = ssub.s32 %s13, 1
      %s19 = ssub.s32 %s13, 2
      %s20 = sadd.s32 %s13, 1
      %s22 = sadd.s32 %s21, 1
      %p25 = scmp.eq.s32.totalorder %s13, 1
      %p26 = scmp.ne.s32.totalorder %s21, %s23
      %p27 = scmp.eq.s32.totalorder %s13, 0
      %p28 = por %p26, %p27
      %p29 = scmp.ne.s32.totalorder %s21, %s23
      %p30 = scmp.eq.s32.totalorder %s18, 1
      %p31 = por %p29, %p30
      %p32 = scmp.ne.s32.totalorder %s23, %s24
      %p33 = scmp.eq.s32.totalorder %s18, 0
      %p34 = por %p32, %p33
      %p35 = scmp.ne.s32.totalorder %s23, %s24
      %p36 = scmp.eq.s32.totalorder %s19, 1
      %p37 = por %p35, %p36
      %p39 = scmp.ne.s32.totalorder %s24, %s38
      %p40 = scmp.eq.s32.totalorder %s19, 0
      %p41 = por %p39, %p40
      %s43 = sadd.s32 %s42, 1
      %p46 = scmp.eq.s32.totalorder %s13, 1
      %p47 = scmp.ne.s32.totalorder %s42, %s44
      %p48 = scmp.eq.s32.totalorder %s13, 0
      %p49 = por %p47, %p48
      %p50 = scmp.ne.s32.totalorder %s42, %s44
      %p51 = scmp.eq.s32.totalorder %s18, 1
      %p52 = por %p50, %p51
      %p53 = scmp.ne.s32.totalorder %s44, %s45
      %p54 = scmp.eq.s32.totalorder %s18, 0
      %p55 = por %p53, %p54
      %p56 = scmp.ne.s32.totalorder %s44, %s45
      %p57 = scmp.eq.s32.totalorder %s19, 1
      %p58 = por %p56, %p57
      %p60 = scmp.ne.s32.totalorder %s45, %s59
      %p61 = scmp.eq.s32.totalorder %s19, 0
      %p62 = por %p60, %p61
      %s63 = ssub.s32 %s13, %s20
      %p64 = scmp.eq.s32.totalorder %s63, 0
      %s66 = sadd.s32 %s65, 1
      %s67 = scalar_select %p64, %s65, %s66
      %p70 = pneg %p64
      %p71 = scmp.eq.s32.totalorder %s13, 1
      %p72 = por %p70, %p71
      %p73 = scmp.ne.s32.totalorder %s65, %s68
      %p74 = scmp.eq.s32.totalorder %s13, 0
      %p75 = por %p73, %p74
      %p76 = scmp.ne.s32.totalorder %s65, %s68
      %p77 = scmp.eq.s32.totalorder %s18, 1
      %p78 = por %p76, %p77
      %p79 = scmp.ne.s32.totalorder %s68, %s69
      %p80 = scmp.eq.s32.totalorder %s18, 0
      %p81 = por %p79, %p80
      %p82 = scmp.ne.s32.totalorder %s68, %s69
      %p83 = scmp.eq.s32.totalorder %s19, 1
      %p84 = por %p82, %p83
      %p86 = scmp.ne.s32.totalorder %s69, %s85
      %p87 = scmp.eq.s32.totalorder %s19, 0
      %p88 = por %p86, %p87
      %s89 = ssub.s32 %s13, %s20
      %p90 = scmp.eq.s32.totalorder %s89, 0
      %s92 = sadd.s32 %s91, 1
      %s93 = scalar_select %p90, %s91, %s92
      %p96 = pneg %p90
      %p97 = scmp.eq.s32.totalorder %s13, 1
      %p98 = por %p96, %p97
      %p99 = scmp.ne.s32.totalorder %s91, %s94
      %p100 = scmp.eq.s32.totalorder %s13, 0
      %p101 = por %p99, %p100
      %p102 = scmp.ne.s32.totalorder %s91, %s94
      %p103 = scmp.eq.s32.totalorder %s18, 1
      %p104 = por %p102, %p103
      %p105 = scmp.ne.s32.totalorder %s94, %s95
      %p106 = scmp.eq.s32.totalorder %s18, 0
      %p107 = por %p105, %p106
      %p108 = scmp.ne.s32.totalorder %s94, %s95
      %p109 = scmp.eq.s32.totalorder %s19, 1
      %p110 = por %p108, %p109
      %p112 = scmp.ne.s32.totalorder %s95, %s111
      %p113 = scmp.eq.s32.totalorder %s19, 0
      %p114 = por %p112, %p113
      %s115 = ssub.s32 %s13, %s20
      %p116 = scmp.eq.s32.totalorder %s115, 0
      %s118 = sadd.s32 %s117, 1
      %s119 = scalar_select %p116, %s117, %s118
      %p122 = pneg %p116
      %p123 = scmp.eq.s32.totalorder %s13, 1
      %p124 = por %p122, %p123
      %p125 = scmp.ne.s32.totalorder %s117, %s120
      %p126 = scmp.eq.s32.totalorder %s13, 0
      %p127 = por %p125, %p126
      %p128 = scmp.ne.s32.totalorder %s117, %s120
      %p129 = scmp.eq.s32.totalorder %s18, 1
      %p130 = por %p128, %p129
      %p131 = scmp.ne.s32.totalorder %s120, %s121
      %p132 = scmp.eq.s32.totalorder %s18, 0
      %p133 = por %p131, %p132
      %p134 = scmp.ne.s32.totalorder %s120, %s121
      %p135 = scmp.eq.s32.totalorder %s19, 1
      %p136 = por %p134, %p135
      %p138 = scmp.ne.s32.totalorder %s121, %s137
      %p139 = scmp.eq.s32.totalorder %s19, 0
      %p140 = por %p138, %p139
      %p141 = scmp.le.s32.totalorder 1, %s13
      %p142 = scmp.lt.s32.totalorder %s13, 3
      %p143 = pnand %p141, %p142
      %p144 = pneg %p143
      // Predicated region
      $region9: #{tpu_custom_call.1} parent=5 // pred_check
        _
      $region10: #{tpu_custom_call.1} parent=5 // pred_check_branch
        %146 = sbr.rel (%p143) target = $region12
      $region11: #{tpu_custom_call.1} parent=5 // pred_region
        %s147 = ssub.s32 %s13, 1
        // Predicated region
        $region13: #{tpu_custom_call.1} parent=11 // pred_check
          %p148 = pneg %p34
        $region14: #{tpu_custom_call.1} parent=11 // pred_check_branch
          %150 = sbr.rel (%p148) target = $region16
        $region15: #{tpu_custom_call.1} parent=11 // pred_region
          _
        $region16: #{tpu_custom_call.1} parent=11 // pred_fallthru
          _
        // Predicated region
        $region17: #{tpu_custom_call.1} parent=11 // pred_check
          %p151 = pneg %p55
        $region18: #{tpu_custom_call.1} parent=11 // pred_check_branch
          %153 = sbr.rel (%p151) target = $region20
        $region19: #{tpu_custom_call.1} parent=11 // pred_region
          _
        $region20: #{tpu_custom_call.1} parent=11 // pred_fallthru
          _
      $region12: #{tpu_custom_call.1} parent=5 // pred_fallthru
        _
      %p154 = scmp.lt.s32.totalorder %s13, 2
      // Predicated region
      $region21: #{tpu_custom_call.1} parent=5 // pred_check
        %p155 = pneg %p154
      $region22: #{tpu_custom_call.1} parent=5 // pred_check_branch
        %157 = sbr.rel (%p155) target = $region24
      $region23: #{tpu_custom_call.1} parent=5 // pred_region
        // Predicated region
        $region25: #{tpu_custom_call.1} parent=23 // pred_check
          %p158 = pneg %p75
        $region26: #{tpu_custom_call.1} parent=23 // pred_check_branch
          %160 = sbr.rel (%p158) target = $region28
        $region27: #{tpu_custom_call.1} parent=23 // pred_region
          %s161 = smul.u32 8, %s13
          %p162 = scmp.lt.s32.totalorder %s161, 15
          %s163 = scalar_select %p162, %s161, 15
          %s164 = smul.addr %s163, 8
          %s165 = scalar_lea.vmem %s2, %s164
          %s166 = smul.u32 8, %s13
        $region28: #{tpu_custom_call.1} parent=23 // pred_fallthru
          _
        // Predicated region
        $region29: #{tpu_custom_call.1} parent=23 // pred_check
          %p167 = pneg %p101
        $region30: #{tpu_custom_call.1} parent=23 // pred_check_branch
          %169 = sbr.rel (%p167) target = $region32
        $region31: #{tpu_custom_call.1} parent=23 // pred_region
          %s170 = smul.u32 8, %s13
          %p171 = scmp.lt.s32.totalorder %s170, 15
          %s172 = scalar_select %p171, %s170, 15
          %s173 = smul.addr %s172, 8
          %s174 = scalar_lea.vmem %s3, %s173
          %s175 = smul.u32 8, %s13
        $region32: #{tpu_custom_call.1} parent=23 // pred_fallthru
          _
      $region24: #{tpu_custom_call.1} parent=5 // pred_fallthru
        _
      %p176 = scmp.le.s32.totalorder 1, %s13
      %p177 = scmp.lt.s32.totalorder %s13, 3
      %p178 = pnand %p176, %p177
      %p179 = pneg %p178
      // Predicated region
      $region33: #{tpu_custom_call.1} parent=5 // pred_check
        _
      $region34: #{tpu_custom_call.1} parent=5 // pred_check_branch
        %181 = sbr.rel (%p178) target = $region36
      $region35: #{tpu_custom_call.1} parent=5 // pred_region
        %s182 = ssub.s32 %s13, 1
        %p183 = pneg %p34
        %p184 = pneg %p31
        %p185 = pneg %p55
        %p186 = pneg %p52
        %s187 = smul.u32 8, %s18
        %p188 = scmp.lt.s32.totalorder %s187, 15
        %s189 = scalar_select %p188, %s187, 15
        %s190 = smul.addr %s189, 8
        %s191 = scalar_lea.vmem %s2, %s190
        %p192 = pneg %p81
        %p193 = pneg %p78
        %s194 = smul.u32 8, %s18
        %p195 = scmp.lt.s32.totalorder %s194, 15
        %s196 = scalar_select %p195, %s194, 15
        %s197 = smul.addr %s196, 8
        %s198 = scalar_lea.vmem %s3, %s197
        %p199 = pneg %p107
        %p200 = pneg %p104
        %p201 = pneg %p133
        %p202 = pneg %p130
        %s203 = sand.u32 %s120, 1
        %s204 = scalar_lea.sflag [#allocation3], %s203
        %s205 = sand.u32 %s120, 1
        %s206 = smul.addr %s205, 8
        %s207 = scalar_lea.vmem [#allocation2], %s206
        %s208 = smul.u32 8, %s18
        %p209 = scmp.lt.s32.totalorder %s208, 15
        %s210 = scalar_select %p209, %s208, 15
        %s211 = smul.addr %s210, 8
        %s212 = scalar_lea.vmem %s2, %s211
        %s213 = smul.u32 8, %s18
        %s214 = smul.u32 8, %s18
        %p215 = scmp.lt.s32.totalorder %s214, 15
        %s216 = scalar_select %p215, %s214, 15
        %s217 = smul.addr %s216, 8
        %s218 = scalar_lea.vmem %s3, %s217
        %s219 = smul.u32 8, %s18
        %v220 = vld [vmem:[%s0] sm:$0xff]
        %v221 = vld [vmem:[%s0 + $0x8] sm:$0xff]
        %v222 = vld [vmem:[%s1] sm:$0xff]
        %v223 = vld [vmem:[%s1 + $0x8] sm:$0xff]
        %v224 = vld [vmem:[%s212] sm:$0xff]
        %v225 = vld [vmem:[%s212 + $0x8] sm:$0xff]
        %v226 = vld [vmem:[%s212 + $0x10] sm:$0xff]
        %v227 = vld [vmem:[%s212 + $0x18] sm:$0xff]
        %v228 = vld [vmem:[%s212 + $0x20] sm:$0xff]
        %v229 = vld [vmem:[%s212 + $0x28] sm:$0xff]
        %v230 = vld [vmem:[%s212 + $0x30] sm:$0xff]
        %v231 = vld [vmem:[%s212 + $0x38] sm:$0xff]
        %v232 = vld [vmem:[%s218] sm:$0xff]
        %v233 = vld [vmem:[%s218 + $0x8] sm:$0xff]
        %v234 = vld [vmem:[%s218 + $0x10] sm:$0xff]
        %v235 = vld [vmem:[%s218 + $0x18] sm:$0xff]
        %v236 = vld [vmem:[%s218 + $0x20] sm:$0xff]
        %v237 = vld [vmem:[%s218 + $0x28] sm:$0xff]
        %v238 = vld [vmem:[%s218 + $0x30] sm:$0xff]
        %v239 = vld [vmem:[%s218 + $0x38] sm:$0xff]
        %v240 = vmul.f32 %v224, %v224
        %v241 = vmul.f32 %v225, %v225
        %v242 = vmul.f32 %v226, %v226
        %v243 = vmul.f32 %v227, %v227
        %v244 = vmul.f32 %v228, %v228
        %v245 = vmul.f32 %v229, %v229
        %v246 = vmul.f32 %v230, %v230
        %v247 = vmul.f32 %v231, %v231
        %v248 = vmul.f32 %v232, %v232
        %v249 = vmul.f32 %v233, %v233
        %v250 = vmul.f32 %v234, %v234
        %v251 = vmul.f32 %v235, %v235
        %v252 = vmul.f32 %v236, %v236
        %v253 = vmul.f32 %v237, %v237
        %v254 = vmul.f32 %v238, %v238
        %v255 = vmul.f32 %v239, %v239
        %v256 = vmul.f32 %v224, %v232
        %v257 = vmul.f32 %v225, %v233
        %v258 = vmul.f32 %v226, %v234
        %v259 = vmul.f32 %v227, %v235
        %v260 = vmul.f32 %v228, %v236
        %v261 = vmul.f32 %v229, %v237
        %v262 = vmul.f32 %v230, %v238
        %v263 = vmul.f32 %v231, %v239
        %vm264 = vcmask 130048
        %v266 = vsel %vm264, %v224, 0
        %v269 = vsel %vm264, %v225, 0
        %v272 = vsel %vm264, %v226, 0
        %v275 = vsel %vm264, %v227, 0
        %v278 = vsel %vm264, %v228, 0
        %v281 = vsel %vm264, %v229, 0
        %v284 = vsel %vm264, %v230, 0
        %v287 = vsel %vm264, %v231, 0
        %v290 = vsel %vm264, %v232, 0
        %v293 = vsel %vm264, %v233, 0
        %v296 = vsel %vm264, %v234, 0
        %v299 = vsel %vm264, %v235, 0
        %v302 = vsel %vm264, %v236, 0
        %v305 = vsel %vm264, %v237, 0
        %v308 = vsel %vm264, %v238, 0
        %v311 = vsel %vm264, %v239, 0
        %v314 = vsel %vm264, %v240, 0
        %v317 = vsel %vm264, %v241, 0
        %v320 = vsel %vm264, %v242, 0
        %v323 = vsel %vm264, %v243, 0
        %v326 = vsel %vm264, %v244, 0
        %v329 = vsel %vm264, %v245, 0
        %v332 = vsel %vm264, %v246, 0
        %v335 = vsel %vm264, %v247, 0
        %v338 = vsel %vm264, %v248, 0
        %v341 = vsel %vm264, %v249, 0
        %v344 = vsel %vm264, %v250, 0
        %v347 = vsel %vm264, %v251, 0
        %v350 = vsel %vm264, %v252, 0
        %v353 = vsel %vm264, %v253, 0
        %v356 = vsel %vm264, %v254, 0
        %v359 = vsel %vm264, %v255, 0
        %v362 = vsel %vm264, %v256, 0
        %v365 = vsel %vm264, %v257, 0
        %v368 = vsel %vm264, %v258, 0
        %v371 = vsel %vm264, %v259, 0
        %v374 = vsel %vm264, %v260, 0
        %v377 = vsel %vm264, %v261, 0
        %v380 = vsel %vm264, %v262, 0
        %v383 = vsel %vm264, %v263, 0
        %385 = vmatpush.msra.mxu0 0.0
        %386 = vmatpush.msra.mxu0 0.0
        %387 = vmatpush.msra.mxu0 0.0
        %388 = vmatpush.msra.mxu0 0.0
        %389 = vmatpush.msra.mxu0 0.0
        %390 = vmatpush.msra.mxu0 0.0
        %391 = vmatpush.msra.mxu0 0.0
        %392 = vmatpush.msra.mxu0 0.0
        %393 = vmatpush.msra.mxu0 0.0
        %394 = vmatpush.msra.mxu0 0.0
        %395 = vmatpush.msra.mxu0 0.0
        %396 = vmatpush.msra.mxu0 0.0
        %397 = vmatpush.msra.mxu0 0.0
        %398 = vmatpush.msra.mxu0 0.0
        %v399 = vand.u32 %v221, 4294901760
        %400 = vmatpush.msra.mxu0 %v399
        %v401 = vand.u32 %v220, 4294901760
        %402 = vmatpush.msra.mxu0 %v401
        %v403 = vand.u32 %v266, 4294901760
        %v404 = vsub.f32 %v266, %v403
        %v405 = vand.u32 %v404, 4294901760
        %v406 = vsub.f32 %v404, %v405
        %v407 = vand.u32 %v406, 4294901760
        %408 = vmatmul.f32.gmra.mxu0 %v407
        %v409 = vpop.f32.mrf.mxu0
        %v410 = vadd.f32 0.0, %v409
        %v411 = vand.u32 %v269, 4294901760
        %v412 = vsub.f32 %v269, %v411
        %v413 = vand.u32 %v412, 4294901760
        %v414 = vsub.f32 %v412, %v413
        %v415 = vand.u32 %v414, 4294901760
        %416 = vmatmul.f32.gmra.mxu0 %v415
        %v417 = vpop.f32.mrf.mxu0
        %v418 = vadd.f32 0.0, %v417
        %v419 = vand.u32 %v272, 4294901760
        %v420 = vsub.f32 %v272, %v419
        %v421 = vand.u32 %v420, 4294901760
        %v422 = vsub.f32 %v420, %v421
        %v423 = vand.u32 %v422, 4294901760
        %424 = vmatmul.f32.gmra.mxu0 %v423
        %v425 = vpop.f32.mrf.mxu0
        %v426 = vadd.f32 0.0, %v425
        %v427 = vand.u32 %v275, 4294901760
        %v428 = vsub.f32 %v275, %v427
        %v429 = vand.u32 %v428, 4294901760
        %v430 = vsub.f32 %v428, %v429
        %v431 = vand.u32 %v430, 4294901760
        %432 = vmatmul.f32.gmra.mxu0 %v431
        %v433 = vpop.f32.mrf.mxu0
        %v434 = vadd.f32 0.0, %v433
        %v435 = vand.u32 %v278, 4294901760
        %v436 = vsub.f32 %v278, %v435
        %v437 = vand.u32 %v436, 4294901760
        %v438 = vsub.f32 %v436, %v437
        %v439 = vand.u32 %v438, 4294901760
        %440 = vmatmul.f32.gmra.mxu0 %v439
        %v441 = vpop.f32.mrf.mxu0
        %v442 = vadd.f32 0.0, %v441
        %v443 = vand.u32 %v281, 4294901760
        %v444 = vsub.f32 %v281, %v443
        %v445 = vand.u32 %v444, 4294901760
        %v446 = vsub.f32 %v444, %v445
        %v447 = vand.u32 %v446, 4294901760
        %448 = vmatmul.f32.gmra.mxu0 %v447
        %v449 = vpop.f32.mrf.mxu0
        %v450 = vadd.f32 0.0, %v449
        %v451 = vand.u32 %v284, 4294901760
        %v452 = vsub.f32 %v284, %v451
        %v453 = vand.u32 %v452, 4294901760
        %v454 = vsub.f32 %v452, %v453
        %v455 = vand.u32 %v454, 4294901760
        %456 = vmatmul.f32.gmra.mxu0 %v455
        %v457 = vpop.f32.mrf.mxu0
        %v458 = vadd.f32 0.0, %v457
        %v459 = vand.u32 %v287, 4294901760
        %v460 = vsub.f32 %v287, %v459
        %v461 = vand.u32 %v460, 4294901760
        %v462 = vsub.f32 %v460, %v461
        %v463 = vand.u32 %v462, 4294901760
        %464 = vmatmul.f32.gmra.mxu0 %v463
        %v465 = vpop.f32.mrf.mxu0
        %v466 = vadd.f32 0.0, %v465
        %v467 = vand.u32 %v290, 4294901760
        %v468 = vsub.f32 %v290, %v467
        %v469 = vand.u32 %v468, 4294901760
        %v470 = vsub.f32 %v468, %v469
        %v471 = vand.u32 %v470, 4294901760
        %472 = vmatmul.f32.gmra.mxu0 %v471
        %v473 = vpop.f32.mrf.mxu0
        %v474 = vadd.f32 0.0, %v473
        %v475 = vand.u32 %v293, 4294901760
        %v476 = vsub.f32 %v293, %v475
        %v477 = vand.u32 %v476, 4294901760
        %v478 = vsub.f32 %v476, %v477
        %v479 = vand.u32 %v478, 4294901760
        %480 = vmatmul.f32.gmra.mxu0 %v479
        %v481 = vpop.f32.mrf.mxu0
        %v482 = vadd.f32 0.0, %v481
        %v483 = vand.u32 %v296, 4294901760
        %v484 = vsub.f32 %v296, %v483
        %v485 = vand.u32 %v484, 4294901760
        %v486 = vsub.f32 %v484, %v485
        %v487 = vand.u32 %v486, 4294901760
        %488 = vmatmul.f32.gmra.mxu0 %v487
        %v489 = vpop.f32.mrf.mxu0
        %v490 = vadd.f32 0.0, %v489
        %v491 = vand.u32 %v299, 4294901760
        %v492 = vsub.f32 %v299, %v491
        %v493 = vand.u32 %v492, 4294901760
        %v494 = vsub.f32 %v492, %v493
        %v495 = vand.u32 %v494, 4294901760
        %496 = vmatmul.f32.gmra.mxu0 %v495
        %v497 = vpop.f32.mrf.mxu0
        %v498 = vadd.f32 0.0, %v497
        %v499 = vand.u32 %v302, 4294901760
        %v500 = vsub.f32 %v302, %v499
        %v501 = vand.u32 %v500, 4294901760
        %v502 = vsub.f32 %v500, %v501
        %v503 = vand.u32 %v502, 4294901760
        %504 = vmatmul.f32.gmra.mxu0 %v503
        %v505 = vpop.f32.mrf.mxu0
        %v506 = vadd.f32 0.0, %v505
        %v507 = vand.u32 %v305, 4294901760
        %v508 = vsub.f32 %v305, %v507
        %v509 = vand.u32 %v508, 4294901760
        %v510 = vsub.f32 %v508, %v509
        %v511 = vand.u32 %v510, 4294901760
        %512 = vmatmul.f32.gmra.mxu0 %v511
        %v513 = vpop.f32.mrf.mxu0
        %v514 = vadd.f32 0.0, %v513
        %v515 = vand.u32 %v308, 4294901760
        %v516 = vsub.f32 %v308, %v515
        %v517 = vand.u32 %v516, 4294901760
        %v518 = vsub.f32 %v516, %v517
        %v519 = vand.u32 %v518, 4294901760
        %520 = vmatmul.f32.gmra.mxu0 %v519
        %v521 = vpop.f32.mrf.mxu0
        %v522 = vadd.f32 0.0, %v521
        %v523 = vand.u32 %v311, 4294901760
        %v524 = vsub.f32 %v311, %v523
        %v525 = vand.u32 %v524, 4294901760
        %v526 = vsub.f32 %v524, %v525
        %v527 = vand.u32 %v526, 4294901760
        %528 = vmatmul.f32.gmra.mxu0 %v527
        %v529 = vpop.f32.mrf.mxu0
        %v530 = vadd.f32 0.0, %v529
        %v531 = vand.u32 %v314, 4294901760
        %v532 = vsub.f32 %v314, %v531
        %v533 = vand.u32 %v532, 4294901760
        %v534 = vsub.f32 %v532, %v533
        %v535 = vand.u32 %v534, 4294901760
        %536 = vmatmul.f32.gmra.mxu0 %v535
        %v537 = vpop.f32.mrf.mxu0
        %v538 = vadd.f32 0.0, %v537
        %v539 = vand.u32 %v317, 4294901760
        %v540 = vsub.f32 %v317, %v539
        %v541 = vand.u32 %v540, 4294901760
        %v542 = vsub.f32 %v540, %v541
        %v543 = vand.u32 %v542, 4294901760
        %544 = vmatmul.f32.gmra.mxu0 %v543
        %v545 = vpop.f32.mrf.mxu0
        %v546 = vadd.f32 0.0, %v545
        %v547 = vand.u32 %v320, 4294901760
        %v548 = vsub.f32 %v320, %v547
        %v549 = vand.u32 %v548, 4294901760
        %v550 = vsub.f32 %v548, %v549
        %v551 = vand.u32 %v550, 4294901760
        %552 = vmatmul.f32.gmra.mxu0 %v551
        %v553 = vpop.f32.mrf.mxu0
        %v554 = vadd.f32 0.0, %v553
        %v555 = vand.u32 %v323, 4294901760
        %v556 = vsub.f32 %v323, %v555
        %v557 = vand.u32 %v556, 4294901760
        %v558 = vsub.f32 %v556, %v557
        %v559 = vand.u32 %v558, 4294901760
        %560 = vmatmul.f32.gmra.mxu0 %v559
        %v561 = vpop.f32.mrf.mxu0
        %v562 = vadd.f32 0.0, %v561
        %v563 = vand.u32 %v326, 4294901760
        %v564 = vsub.f32 %v326, %v563
        %v565 = vand.u32 %v564, 4294901760
        %v566 = vsub.f32 %v564, %v565
        %v567 = vand.u32 %v566, 4294901760
        %568 = vmatmul.f32.gmra.mxu0 %v567
        %v569 = vpop.f32.mrf.mxu0
        %v570 = vadd.f32 0.0, %v569
        %v571 = vand.u32 %v329, 4294901760
        %v572 = vsub.f32 %v329, %v571
        %v573 = vand.u32 %v572, 4294901760
        %v574 = vsub.f32 %v572, %v573
        %v575 = vand.u32 %v574, 4294901760
        %576 = vmatmul.f32.gmra.mxu0 %v575
        %v577 = vpop.f32.mrf.mxu0
        %v578 = vadd.f32 0.0, %v577
        %v579 = vand.u32 %v332, 4294901760
        %v580 = vsub.f32 %v332, %v579
        %v581 = vand.u32 %v580, 4294901760
        %v582 = vsub.f32 %v580, %v581
        %v583 = vand.u32 %v582, 4294901760
        %584 = vmatmul.f32.gmra.mxu0 %v583
        %v585 = vpop.f32.mrf.mxu0
        %v586 = vadd.f32 0.0, %v585
        %v587 = vand.u32 %v335, 4294901760
        %v588 = vsub.f32 %v335, %v587
        %v589 = vand.u32 %v588, 4294901760
        %v590 = vsub.f32 %v588, %v589
        %v591 = vand.u32 %v590, 4294901760
        %592 = vmatmul.f32.gmra.mxu0 %v591
        %v593 = vpop.f32.mrf.mxu0
        %v594 = vadd.f32 0.0, %v593
        %v595 = vand.u32 %v338, 4294901760
        %v596 = vsub.f32 %v338, %v595
        %v597 = vand.u32 %v596, 4294901760
        %v598 = vsub.f32 %v596, %v597
        %v599 = vand.u32 %v598, 4294901760
        %600 = vmatmul.f32.gmra.mxu0 %v599
        %v601 = vpop.f32.mrf.mxu0
        %v602 = vadd.f32 0.0, %v601
        %v603 = vand.u32 %v341, 4294901760
        %v604 = vsub.f32 %v341, %v603
        %v605 = vand.u32 %v604, 4294901760
        %v606 = vsub.f32 %v604, %v605
        %v607 = vand.u32 %v606, 4294901760
        %608 = vmatmul.f32.gmra.mxu0 %v607
        %v609 = vpop.f32.mrf.mxu0
        %v610 = vadd.f32 0.0, %v609
        %v611 = vand.u32 %v344, 4294901760
        %v612 = vsub.f32 %v344, %v611
        %v613 = vand.u32 %v612, 4294901760
        %v614 = vsub.f32 %v612, %v613
        %v615 = vand.u32 %v614, 4294901760
        %616 = vmatmul.f32.gmra.mxu0 %v615
        %v617 = vpop.f32.mrf.mxu0
        %v618 = vadd.f32 0.0, %v617
        %v619 = vand.u32 %v347, 4294901760
        %v620 = vsub.f32 %v347, %v619
        %v621 = vand.u32 %v620, 4294901760
        %v622 = vsub.f32 %v620, %v621
        %v623 = vand.u32 %v622, 4294901760
        %624 = vmatmul.f32.gmra.mxu0 %v623
        %v625 = vpop.f32.mrf.mxu0
        %v626 = vadd.f32 0.0, %v625
        %v627 = vand.u32 %v350, 4294901760
        %v628 = vsub.f32 %v350, %v627
        %v629 = vand.u32 %v628, 4294901760
        %v630 = vsub.f32 %v628, %v629
        %v631 = vand.u32 %v630, 4294901760
        %632 = vmatmul.f32.gmra.mxu0 %v631
        %v633 = vpop.f32.mrf.mxu0
        %v634 = vadd.f32 0.0, %v633
        %v635 = vand.u32 %v353, 4294901760
        %v636 = vsub.f32 %v353, %v635
        %v637 = vand.u32 %v636, 4294901760
        %v638 = vsub.f32 %v636, %v637
        %v639 = vand.u32 %v638, 4294901760
        %640 = vmatmul.f32.gmra.mxu0 %v639
        %v641 = vpop.f32.mrf.mxu0
        %v642 = vadd.f32 0.0, %v641
        %v643 = vand.u32 %v356, 4294901760
        %v644 = vsub.f32 %v356, %v643
        %v645 = vand.u32 %v644, 4294901760
        %v646 = vsub.f32 %v644, %v645
        %v647 = vand.u32 %v646, 4294901760
        %648 = vmatmul.f32.gmra.mxu0 %v647
        %v649 = vpop.f32.mrf.mxu0
        %v650 = vadd.f32 0.0, %v649
        %v651 = vand.u32 %v359, 4294901760
        %v652 = vsub.f32 %v359, %v651
        %v653 = vand.u32 %v652, 4294901760
        %v654 = vsub.f32 %v652, %v653
        %v655 = vand.u32 %v654, 4294901760
        %656 = vmatmul.f32.gmra.mxu0 %v655
        %v657 = vpop.f32.mrf.mxu0
        %v658 = vadd.f32 0.0, %v657
        %v659 = vand.u32 %v362, 4294901760
        %v660 = vsub.f32 %v362, %v659
        %v661 = vand.u32 %v660, 4294901760
        %v662 = vsub.f32 %v660, %v661
        %v663 = vand.u32 %v662, 4294901760
        %664 = vmatmul.f32.gmra.mxu0 %v663
        %v665 = vpop.f32.mrf.mxu0
        %v666 = vadd.f32 0.0, %v665
        %v667 = vand.u32 %v365, 4294901760
        %v668 = vsub.f32 %v365, %v667
        %v669 = vand.u32 %v668, 4294901760
        %v670 = vsub.f32 %v668, %v669
        %v671 = vand.u32 %v670, 4294901760
        %672 = vmatmul.f32.gmra.mxu0 %v671
        %v673 = vpop.f32.mrf.mxu0
        %v674 = vadd.f32 0.0, %v673
        %v675 = vand.u32 %v368, 4294901760
        %v676 = vsub.f32 %v368, %v675
        %v677 = vand.u32 %v676, 4294901760
        %v678 = vsub.f32 %v676, %v677
        %v679 = vand.u32 %v678, 4294901760
        %680 = vmatmul.f32.gmra.mxu0 %v679
        %v681 = vpop.f32.mrf.mxu0
        %v682 = vadd.f32 0.0, %v681
        %v683 = vand.u32 %v371, 4294901760
        %v684 = vsub.f32 %v371, %v683
        %v685 = vand.u32 %v684, 4294901760
        %v686 = vsub.f32 %v684, %v685
        %v687 = vand.u32 %v686, 4294901760
        %688 = vmatmul.f32.gmra.mxu0 %v687
        %v689 = vpop.f32.mrf.mxu0
        %v690 = vadd.f32 0.0, %v689
        %v691 = vand.u32 %v374, 4294901760
        %v692 = vsub.f32 %v374, %v691
        %v693 = vand.u32 %v692, 4294901760
        %v694 = vsub.f32 %v692, %v693
        %v695 = vand.u32 %v694, 4294901760
        %696 = vmatmul.f32.gmra.mxu0 %v695
        %v697 = vpop.f32.mrf.mxu0
        %v698 = vadd.f32 0.0, %v697
        %v699 = vand.u32 %v377, 4294901760
        %v700 = vsub.f32 %v377, %v699
        %v701 = vand.u32 %v700, 4294901760
        %v702 = vsub.f32 %v700, %v701
        %v703 = vand.u32 %v702, 4294901760
        %704 = vmatmul.f32.gmra.mxu0 %v703
        %v705 = vpop.f32.mrf.mxu0
        %v706 = vadd.f32 0.0, %v705
        %v707 = vand.u32 %v380, 4294901760
        %v708 = vsub.f32 %v380, %v707
        %v709 = vand.u32 %v708, 4294901760
        %v710 = vsub.f32 %v708, %v709
        %v711 = vand.u32 %v710, 4294901760
        %712 = vmatmul.f32.gmra.mxu0 %v711
        %v713 = vpop.f32.mrf.mxu0
        %v714 = vadd.f32 0.0, %v713
        %v715 = vand.u32 %v383, 4294901760
        %v716 = vsub.f32 %v383, %v715
        %v717 = vand.u32 %v716, 4294901760
        %v718 = vsub.f32 %v716, %v717
        %v719 = vand.u32 %v718, 4294901760
        %720 = vmatmul.f32.gmra.mxu0 %v719
        %v721 = vpop.f32.mrf.mxu0
        %v722 = vadd.f32 0.0, %v721
        %723 = vdwg.mxu0
        %724 = vmatpush.msra.mxu0 0.0
        %725 = vmatpush.msra.mxu0 0.0
        %726 = vmatpush.msra.mxu0 0.0
        %727 = vmatpush.msra.mxu0 0.0
        %728 = vmatpush.msra.mxu0 0.0
        %729 = vmatpush.msra.mxu0 0.0
        %730 = vmatpush.msra.mxu0 0.0
        %731 = vmatpush.msra.mxu0 0.0
        %732 = vmatpush.msra.mxu0 0.0
        %733 = vmatpush.msra.mxu0 0.0
        %734 = vmatpush.msra.mxu0 0.0
        %735 = vmatpush.msra.mxu0 0.0
        %736 = vmatpush.msra.mxu0 0.0
        %737 = vmatpush.msra.mxu0 0.0
        %v738 = vand.u32 %v221, 4294901760
        %v739 = vsub.f32 %v221, %v738
        %v740 = vand.u32 %v739, 4294901760
        %v741 = vsub.f32 %v739, %v740
        %v742 = vand.u32 %v741, 4294901760
        %743 = vmatpush.msra.mxu0 %v742
        %v744 = vand.u32 %v220, 4294901760
        %v745 = vsub.f32 %v220, %v744
        %v746 = vand.u32 %v745, 4294901760
        %v747 = vsub.f32 %v745, %v746
        %v748 = vand.u32 %v747, 4294901760
        %749 = vmatpush.msra.mxu0 %v748
        %v750 = vand.u32 %v266, 4294901760
        %751 = vmatmul.f32.gmra.mxu0 %v750
        %v752 = vpop.f32.mrf.mxu0
        %v753 = vadd.f32 %v410, %v752
        %v754 = vand.u32 %v269, 4294901760
        %755 = vmatmul.f32.gmra.mxu0 %v754
        %v756 = vpop.f32.mrf.mxu0
        %v757 = vadd.f32 %v418, %v756
        %v758 = vand.u32 %v272, 4294901760
        %759 = vmatmul.f32.gmra.mxu0 %v758
        %v760 = vpop.f32.mrf.mxu0
        %v761 = vadd.f32 %v426, %v760
        %v762 = vand.u32 %v275, 4294901760
        %763 = vmatmul.f32.gmra.mxu0 %v762
        %v764 = vpop.f32.mrf.mxu0
        %v765 = vadd.f32 %v434, %v764
        %v766 = vand.u32 %v278, 4294901760
        %767 = vmatmul.f32.gmra.mxu0 %v766
        %v768 = vpop.f32.mrf.mxu0
        %v769 = vadd.f32 %v442, %v768
        %v770 = vand.u32 %v281, 4294901760
        %771 = vmatmul.f32.gmra.mxu0 %v770
        %v772 = vpop.f32.mrf.mxu0
        %v773 = vadd.f32 %v450, %v772
        %v774 = vand.u32 %v284, 4294901760
        %775 = vmatmul.f32.gmra.mxu0 %v774
        %v776 = vpop.f32.mrf.mxu0
        %v777 = vadd.f32 %v458, %v776
        %v778 = vand.u32 %v287, 4294901760
        %779 = vmatmul.f32.gmra.mxu0 %v778
        %v780 = vpop.f32.mrf.mxu0
        %v781 = vadd.f32 %v466, %v780
        %v782 = vand.u32 %v290, 4294901760
        %783 = vmatmul.f32.gmra.mxu0 %v782
        %v784 = vpop.f32.mrf.mxu0
        %v785 = vadd.f32 %v474, %v784
        %v786 = vand.u32 %v293, 4294901760
        %787 = vmatmul.f32.gmra.mxu0 %v786
        %v788 = vpop.f32.mrf.mxu0
        %v789 = vadd.f32 %v482, %v788
        %v790 = vand.u32 %v296, 4294901760
        %791 = vmatmul.f32.gmra.mxu0 %v790
        %v792 = vpop.f32.mrf.mxu0
        %v793 = vadd.f32 %v490, %v792
        %v794 = vand.u32 %v299, 4294901760
        %795 = vmatmul.f32.gmra.mxu0 %v794
        %v796 = vpop.f32.mrf.mxu0
        %v797 = vadd.f32 %v498, %v796
        %v798 = vand.u32 %v302, 4294901760
        %799 = vmatmul.f32.gmra.mxu0 %v798
        %v800 = vpop.f32.mrf.mxu0
        %v801 = vadd.f32 %v506, %v800
        %v802 = vand.u32 %v305, 4294901760
        %803 = vmatmul.f32.gmra.mxu0 %v802
        %v804 = vpop.f32.mrf.mxu0
        %v805 = vadd.f32 %v514, %v804
        %v806 = vand.u32 %v308, 4294901760
        %807 = vmatmul.f32.gmra.mxu0 %v806
        %v808 = vpop.f32.mrf.mxu0
        %v809 = vadd.f32 %v522, %v808
        %v810 = vand.u32 %v311, 4294901760
        %811 = vmatmul.f32.gmra.mxu0 %v810
        %v812 = vpop.f32.mrf.mxu0
        %v813 = vadd.f32 %v530, %v812
        %v814 = vand.u32 %v314, 4294901760
        %815 = vmatmul.f32.gmra.mxu0 %v814
        %v816 = vpop.f32.mrf.mxu0
        %v817 = vadd.f32 %v538, %v816
        %v818 = vand.u32 %v317, 4294901760
        %819 = vmatmul.f32.gmra.mxu0 %v818
        %v820 = vpop.f32.mrf.mxu0
        %v821 = vadd.f32 %v546, %v820
        %v822 = vand.u32 %v320, 4294901760
        %823 = vmatmul.f32.gmra.mxu0 %v822
        %v824 = vpop.f32.mrf.mxu0
        %v825 = vadd.f32 %v554, %v824
        %v826 = vand.u32 %v323, 4294901760
        %827 = vmatmul.f32.gmra.mxu0 %v826
        %v828 = vpop.f32.mrf.mxu0
        %v829 = vadd.f32 %v562, %v828
        %v830 = vand.u32 %v326, 4294901760
        %831 = vmatmul.f32.gmra.mxu0 %v830
        %v832 = vpop.f32.mrf.mxu0
        %v833 = vadd.f32 %v570, %v832
        %v834 = vand.u32 %v329, 4294901760
        %835 = vmatmul.f32.gmra.mxu0 %v834
        %v836 = vpop.f32.mrf.mxu0
        %v837 = vadd.f32 %v578, %v836
        %v838 = vand.u32 %v332, 4294901760
        %839 = vmatmul.f32.gmra.mxu0 %v838
        %v840 = vpop.f32.mrf.mxu0
        %v841 = vadd.f32 %v586, %v840
        %v842 = vand.u32 %v335, 4294901760
        %843 = vmatmul.f32.gmra.mxu0 %v842
        %v844 = vpop.f32.mrf.mxu0
        %v845 = vadd.f32 %v594, %v844
        %v846 = vand.u32 %v338, 4294901760
        %847 = vmatmul.f32.gmra.mxu0 %v846
        %v848 = vpop.f32.mrf.mxu0
        %v849 = vadd.f32 %v602, %v848
        %v850 = vand.u32 %v341, 4294901760
        %851 = vmatmul.f32.gmra.mxu0 %v850
        %v852 = vpop.f32.mrf.mxu0
        %v853 = vadd.f32 %v610, %v852
        %v854 = vand.u32 %v344, 4294901760
        %855 = vmatmul.f32.gmra.mxu0 %v854
        %v856 = vpop.f32.mrf.mxu0
        %v857 = vadd.f32 %v618, %v856
        %v858 = vand.u32 %v347, 4294901760
        %859 = vmatmul.f32.gmra.mxu0 %v858
        %v860 = vpop.f32.mrf.mxu0
        %v861 = vadd.f32 %v626, %v860
        %v862 = vand.u32 %v350, 4294901760
        %863 = vmatmul.f32.gmra.mxu0 %v862
        %v864 = vpop.f32.mrf.mxu0
        %v865 = vadd.f32 %v634, %v864
        %v866 = vand.u32 %v353, 4294901760
        %867 = vmatmul.f32.gmra.mxu0 %v866
        %v868 = vpop.f32.mrf.mxu0
        %v869 = vadd.f32 %v642, %v868
        %v870 = vand.u32 %v356, 4294901760
        %871 = vmatmul.f32.gmra.mxu0 %v870
        %v872 = vpop.f32.mrf.mxu0
        %v873 = vadd.f32 %v650, %v872
        %v874 = vand.u32 %v359, 4294901760
        %875 = vmatmul.f32.gmra.mxu0 %v874
        %v876 = vpop.f32.mrf.mxu0
        %v877 = vadd.f32 %v658, %v876
        %v878 = vand.u32 %v362, 4294901760
        %879 = vmatmul.f32.gmra.mxu0 %v878
        %v880 = vpop.f32.mrf.mxu0
        %v881 = vadd.f32 %v666, %v880
        %v882 = vand.u32 %v365, 4294901760
        %883 = vmatmul.f32.gmra.mxu0 %v882
        %v884 = vpop.f32.mrf.mxu0
        %v885 = vadd.f32 %v674, %v884
        %v886 = vand.u32 %v368, 4294901760
        %887 = vmatmul.f32.gmra.mxu0 %v886
        %v888 = vpop.f32.mrf.mxu0
        %v889 = vadd.f32 %v682, %v888
        %v890 = vand.u32 %v371, 4294901760
        %891 = vmatmul.f32.gmra.mxu0 %v890
        %v892 = vpop.f32.mrf.mxu0
        %v893 = vadd.f32 %v690, %v892
        %v894 = vand.u32 %v374, 4294901760
        %895 = vmatmul.f32.gmra.mxu0 %v894
        %v896 = vpop.f32.mrf.mxu0
        %v897 = vadd.f32 %v698, %v896
        %v898 = vand.u32 %v377, 4294901760
        %899 = vmatmul.f32.gmra.mxu0 %v898
        %v900 = vpop.f32.mrf.mxu0
        %v901 = vadd.f32 %v706, %v900
        %v902 = vand.u32 %v380, 4294901760
        %903 = vmatmul.f32.gmra.mxu0 %v902
        %v904 = vpop.f32.mrf.mxu0
        %v905 = vadd.f32 %v714, %v904
        %v906 = vand.u32 %v383, 4294901760
        %907 = vmatmul.f32.gmra.mxu0 %v906
        %v908 = vpop.f32.mrf.mxu0
        %v909 = vadd.f32 %v722, %v908
        %910 = vdwg.mxu0
        %911 = vmatpush.msra.mxu0 0.0
        %912 = vmatpush.msra.mxu0 0.0
        %913 = vmatpush.msra.mxu0 0.0
        %914 = vmatpush.msra.mxu0 0.0
        %915 = vmatpush.msra.mxu0 0.0
        %916 = vmatpush.msra.mxu0 0.0
        %917 = vmatpush.msra.mxu0 0.0
        %918 = vmatpush.msra.mxu0 0.0
        %919 = vmatpush.msra.mxu0 0.0
        %920 = vmatpush.msra.mxu0 0.0
        %921 = vmatpush.msra.mxu0 0.0
        %922 = vmatpush.msra.mxu0 0.0
        %923 = vmatpush.msra.mxu0 0.0
        %924 = vmatpush.msra.mxu0 0.0
        %v925 = vand.u32 %v221, 4294901760
        %v926 = vsub.f32 %v221, %v925
        %927 = vmatpush.msra.mxu0 %v926
        %v928 = vand.u32 %v220, 4294901760
        %v929 = vsub.f32 %v220, %v928
        %930 = vmatpush.msra.mxu0 %v929
        %v931 = vand.u32 %v266, 4294901760
        %v932 = vsub.f32 %v266, %v931
        %933 = vmatmul.f32.gmra.mxu0 %v932
        %v934 = vpop.f32.mrf.mxu0
        %v935 = vadd.f32 %v753, %v934
        %v936 = vand.u32 %v269, 4294901760
        %v937 = vsub.f32 %v269, %v936
        %938 = vmatmul.f32.gmra.mxu0 %v937
        %v939 = vpop.f32.mrf.mxu0
        %v940 = vadd.f32 %v757, %v939
        %v941 = vand.u32 %v272, 4294901760
        %v942 = vsub.f32 %v272, %v941
        %943 = vmatmul.f32.gmra.mxu0 %v942
        %v944 = vpop.f32.mrf.mxu0
        %v945 = vadd.f32 %v761, %v944
        %v946 = vand.u32 %v275, 4294901760
        %v947 = vsub.f32 %v275, %v946
        %948 = vmatmul.f32.gmra.mxu0 %v947
        %v949 = vpop.f32.mrf.mxu0
        %v950 = vadd.f32 %v765, %v949
        %v951 = vand.u32 %v278, 4294901760
        %v952 = vsub.f32 %v278, %v951
        %953 = vmatmul.f32.gmra.mxu0 %v952
        %v954 = vpop.f32.mrf.mxu0
        %v955 = vadd.f32 %v769, %v954
        %v956 = vand.u32 %v281, 4294901760
        %v957 = vsub.f32 %v281, %v956
        %958 = vmatmul.f32.gmra.mxu0 %v957
        %v959 = vpop.f32.mrf.mxu0
        %v960 = vadd.f32 %v773, %v959
        %v961 = vand.u32 %v284, 4294901760
        %v962 = vsub.f32 %v284, %v961
        %963 = vmatmul.f32.gmra.mxu0 %v962
        %v964 = vpop.f32.mrf.mxu0
        %v965 = vadd.f32 %v777, %v964
        %v966 = vand.u32 %v287, 4294901760
        %v967 = vsub.f32 %v287, %v966
        %968 = vmatmul.f32.gmra.mxu0 %v967
        %v969 = vpop.f32.mrf.mxu0
        %v970 = vadd.f32 %v781, %v969
        %v971 = vand.u32 %v290, 4294901760
        %v972 = vsub.f32 %v290, %v971
        %973 = vmatmul.f32.gmra.mxu0 %v972
        %v974 = vpop.f32.mrf.mxu0
        %v975 = vadd.f32 %v785, %v974
        %v976 = vand.u32 %v293, 4294901760
        %v977 = vsub.f32 %v293, %v976
        %978 = vmatmul.f32.gmra.mxu0 %v977
        %v979 = vpop.f32.mrf.mxu0
        %v980 = vadd.f32 %v789, %v979
        %v981 = vand.u32 %v296, 4294901760
        %v982 = vsub.f32 %v296, %v981
        %983 = vmatmul.f32.gmra.mxu0 %v982
        %v984 = vpop.f32.mrf.mxu0
        %v985 = vadd.f32 %v793, %v984
        %v986 = vand.u32 %v299, 4294901760
        %v987 = vsub.f32 %v299, %v986
        %988 = vmatmul.f32.gmra.mxu0 %v987
        %v989 = vpop.f32.mrf.mxu0
        %v990 = vadd.f32 %v797, %v989
        %v991 = vand.u32 %v302, 4294901760
        %v992 = vsub.f32 %v302, %v991
        %993 = vmatmul.f32.gmra.mxu0 %v992
        %v994 = vpop.f32.mrf.mxu0
        %v995 = vadd.f32 %v801, %v994
        %v996 = vand.u32 %v305, 4294901760
        %v997 = vsub.f32 %v305, %v996
        %998 = vmatmul.f32.gmra.mxu0 %v997
        %v999 = vpop.f32.mrf.mxu0
        %v1000 = vadd.f32 %v805, %v999
        %v1001 = vand.u32 %v308, 4294901760
        %v1002 = vsub.f32 %v308, %v1001
        %1003 = vmatmul.f32.gmra.mxu0 %v1002
        %v1004 = vpop.f32.mrf.mxu0
        %v1005 = vadd.f32 %v809, %v1004
        %v1006 = vand.u32 %v311, 4294901760
        %v1007 = vsub.f32 %v311, %v1006
        %1008 = vmatmul.f32.gmra.mxu0 %v1007
        %v1009 = vpop.f32.mrf.mxu0
        %v1010 = vadd.f32 %v813, %v1009
        %v1011 = vand.u32 %v314, 4294901760
        %v1012 = vsub.f32 %v314, %v1011
        %1013 = vmatmul.f32.gmra.mxu0 %v1012
        %v1014 = vpop.f32.mrf.mxu0
        %v1015 = vadd.f32 %v817, %v1014
        %v1016 = vand.u32 %v317, 4294901760
        %v1017 = vsub.f32 %v317, %v1016
        %1018 = vmatmul.f32.gmra.mxu0 %v1017
        %v1019 = vpop.f32.mrf.mxu0
        %v1020 = vadd.f32 %v821, %v1019
        %v1021 = vand.u32 %v320, 4294901760
        %v1022 = vsub.f32 %v320, %v1021
        %1023 = vmatmul.f32.gmra.mxu0 %v1022
        %v1024 = vpop.f32.mrf.mxu0
        %v1025 = vadd.f32 %v825, %v1024
        %v1026 = vand.u32 %v323, 4294901760
        %v1027 = vsub.f32 %v323, %v1026
        %1028 = vmatmul.f32.gmra.mxu0 %v1027
        %v1029 = vpop.f32.mrf.mxu0
        %v1030 = vadd.f32 %v829, %v1029
        %v1031 = vand.u32 %v326, 4294901760
        %v1032 = vsub.f32 %v326, %v1031
        %1033 = vmatmul.f32.gmra.mxu0 %v1032
        %v1034 = vpop.f32.mrf.mxu0
        %v1035 = vadd.f32 %v833, %v1034
        %v1036 = vand.u32 %v329, 4294901760
        %v1037 = vsub.f32 %v329, %v1036
        %1038 = vmatmul.f32.gmra.mxu0 %v1037
        %v1039 = vpop.f32.mrf.mxu0
        %v1040 = vadd.f32 %v837, %v1039
        %v1041 = vand.u32 %v332, 4294901760
        %v1042 = vsub.f32 %v332, %v1041
        %1043 = vmatmul.f32.gmra.mxu0 %v1042
        %v1044 = vpop.f32.mrf.mxu0
        %v1045 = vadd.f32 %v841, %v1044
        %v1046 = vand.u32 %v335, 4294901760
        %v1047 = vsub.f32 %v335, %v1046
        %1048 = vmatmul.f32.gmra.mxu0 %v1047
        %v1049 = vpop.f32.mrf.mxu0
        %v1050 = vadd.f32 %v845, %v1049
        %v1051 = vand.u32 %v338, 4294901760
        %v1052 = vsub.f32 %v338, %v1051
        %1053 = vmatmul.f32.gmra.mxu0 %v1052
        %v1054 = vpop.f32.mrf.mxu0
        %v1055 = vadd.f32 %v849, %v1054
        %v1056 = vand.u32 %v341, 4294901760
        %v1057 = vsub.f32 %v341, %v1056
        %1058 = vmatmul.f32.gmra.mxu0 %v1057
        %v1059 = vpop.f32.mrf.mxu0
        %v1060 = vadd.f32 %v853, %v1059
        %v1061 = vand.u32 %v344, 4294901760
        %v1062 = vsub.f32 %v344, %v1061
        %1063 = vmatmul.f32.gmra.mxu0 %v1062
        %v1064 = vpop.f32.mrf.mxu0
        %v1065 = vadd.f32 %v857, %v1064
        %v1066 = vand.u32 %v347, 4294901760
        %v1067 = vsub.f32 %v347, %v1066
        %1068 = vmatmul.f32.gmra.mxu0 %v1067
        %v1069 = vpop.f32.mrf.mxu0
        %v1070 = vadd.f32 %v861, %v1069
        %v1071 = vand.u32 %v350, 4294901760
        %v1072 = vsub.f32 %v350, %v1071
        %1073 = vmatmul.f32.gmra.mxu0 %v1072
        %v1074 = vpop.f32.mrf.mxu0
        %v1075 = vadd.f32 %v865, %v1074
        %v1076 = vand.u32 %v353, 4294901760
        %v1077 = vsub.f32 %v353, %v1076
        %1078 = vmatmul.f32.gmra.mxu0 %v1077
        %v1079 = vpop.f32.mrf.mxu0
        %v1080 = vadd.f32 %v869, %v1079
        %v1081 = vand.u32 %v356, 4294901760
        %v1082 = vsub.f32 %v356, %v1081
        %1083 = vmatmul.f32.gmra.mxu0 %v1082
        %v1084 = vpop.f32.mrf.mxu0
        %v1085 = vadd.f32 %v873, %v1084
        %v1086 = vand.u32 %v359, 4294901760
        %v1087 = vsub.f32 %v359, %v1086
        %1088 = vmatmul.f32.gmra.mxu0 %v1087
        %v1089 = vpop.f32.mrf.mxu0
        %v1090 = vadd.f32 %v877, %v1089
        %v1091 = vand.u32 %v362, 4294901760
        %v1092 = vsub.f32 %v362, %v1091
        %1093 = vmatmul.f32.gmra.mxu0 %v1092
        %v1094 = vpop.f32.mrf.mxu0
        %v1095 = vadd.f32 %v881, %v1094
        %v1096 = vand.u32 %v365, 4294901760
        %v1097 = vsub.f32 %v365, %v1096
        %1098 = vmatmul.f32.gmra.mxu0 %v1097
        %v1099 = vpop.f32.mrf.mxu0
        %v1100 = vadd.f32 %v885, %v1099
        %v1101 = vand.u32 %v368, 4294901760
        %v1102 = vsub.f32 %v368, %v1101
        %1103 = vmatmul.f32.gmra.mxu0 %v1102
        %v1104 = vpop.f32.mrf.mxu0
        %v1105 = vadd.f32 %v889, %v1104
        %v1106 = vand.u32 %v371, 4294901760
        %v1107 = vsub.f32 %v371, %v1106
        %1108 = vmatmul.f32.gmra.mxu0 %v1107
        %v1109 = vpop.f32.mrf.mxu0
        %v1110 = vadd.f32 %v893, %v1109
        %v1111 = vand.u32 %v374, 4294901760
        %v1112 = vsub.f32 %v374, %v1111
        %1113 = vmatmul.f32.gmra.mxu0 %v1112
        %v1114 = vpop.f32.mrf.mxu0
        %v1115 = vadd.f32 %v897, %v1114
        %v1116 = vand.u32 %v377, 4294901760
        %v1117 = vsub.f32 %v377, %v1116
        %1118 = vmatmul.f32.gmra.mxu0 %v1117
        %v1119 = vpop.f32.mrf.mxu0
        %v1120 = vadd.f32 %v901, %v1119
        %v1121 = vand.u32 %v380, 4294901760
        %v1122 = vsub.f32 %v380, %v1121
        %1123 = vmatmul.f32.gmra.mxu0 %v1122
        %v1124 = vpop.f32.mrf.mxu0
        %v1125 = vadd.f32 %v905, %v1124
        %v1126 = vand.u32 %v383, 4294901760
        %v1127 = vsub.f32 %v383, %v1126
        %1128 = vmatmul.f32.gmra.mxu0 %v1127
        %v1129 = vpop.f32.mrf.mxu0
        %v1130 = vadd.f32 %v909, %v1129
        %1131 = vdwg.mxu0
        %1132 = vmatpush.msra.mxu0 0.0
        %1133 = vmatpush.msra.mxu0 0.0
        %1134 = vmatpush.msra.mxu0 0.0
        %1135 = vmatpush.msra.mxu0 0.0
        %1136 = vmatpush.msra.mxu0 0.0
        %1137 = vmatpush.msra.mxu0 0.0
        %1138 = vmatpush.msra.mxu0 0.0
        %1139 = vmatpush.msra.mxu0 0.0
        %1140 = vmatpush.msra.mxu0 0.0
        %1141 = vmatpush.msra.mxu0 0.0
        %1142 = vmatpush.msra.mxu0 0.0
        %1143 = vmatpush.msra.mxu0 0.0
        %1144 = vmatpush.msra.mxu0 0.0
        %1145 = vmatpush.msra.mxu0 0.0
        %v1146 = vand.u32 %v221, 4294901760
        %1147 = vmatpush.msra.mxu0 %v1146
        %v1148 = vand.u32 %v220, 4294901760
        %1149 = vmatpush.msra.mxu0 %v1148
        %v1150 = vand.u32 %v266, 4294901760
        %v1151 = vsub.f32 %v266, %v1150
        %v1152 = vand.u32 %v1151, 4294901760
        %1153 = vmatmul.f32.gmra.mxu0 %v1152
        %v1154 = vpop.f32.mrf.mxu0
        %v1155 = vadd.f32 %v935, %v1154
        %v1156 = vand.u32 %v269, 4294901760
        %v1157 = vsub.f32 %v269, %v1156
        %v1158 = vand.u32 %v1157, 4294901760
        %1159 = vmatmul.f32.gmra.mxu0 %v1158
        %v1160 = vpop.f32.mrf.mxu0
        %v1161 = vadd.f32 %v940, %v1160
        %v1162 = vand.u32 %v272, 4294901760
        %v1163 = vsub.f32 %v272, %v1162
        %v1164 = vand.u32 %v1163, 4294901760
        %1165 = vmatmul.f32.gmra.mxu0 %v1164
        %v1166 = vpop.f32.mrf.mxu0
        %v1167 = vadd.f32 %v945, %v1166
        %v1168 = vand.u32 %v275, 4294901760
        %v1169 = vsub.f32 %v275, %v1168
        %v1170 = vand.u32 %v1169, 4294901760
        %1171 = vmatmul.f32.gmra.mxu0 %v1170
        %v1172 = vpop.f32.mrf.mxu0
        %v1173 = vadd.f32 %v950, %v1172
        %v1174 = vand.u32 %v278, 4294901760
        %v1175 = vsub.f32 %v278, %v1174
        %v1176 = vand.u32 %v1175, 4294901760
        %1177 = vmatmul.f32.gmra.mxu0 %v1176
        %v1178 = vpop.f32.mrf.mxu0
        %v1179 = vadd.f32 %v955, %v1178
        %v1180 = vand.u32 %v281, 4294901760
        %v1181 = vsub.f32 %v281, %v1180
        %v1182 = vand.u32 %v1181, 4294901760
        %1183 = vmatmul.f32.gmra.mxu0 %v1182
        %v1184 = vpop.f32.mrf.mxu0
        %v1185 = vadd.f32 %v960, %v1184
        %v1186 = vand.u32 %v284, 4294901760
        %v1187 = vsub.f32 %v284, %v1186
        %v1188 = vand.u32 %v1187, 4294901760
        %1189 = vmatmul.f32.gmra.mxu0 %v1188
        %v1190 = vpop.f32.mrf.mxu0
        %v1191 = vadd.f32 %v965, %v1190
        %v1192 = vand.u32 %v287, 4294901760
        %v1193 = vsub.f32 %v287, %v1192
        %v1194 = vand.u32 %v1193, 4294901760
        %1195 = vmatmul.f32.gmra.mxu0 %v1194
        %v1196 = vpop.f32.mrf.mxu0
        %v1197 = vadd.f32 %v970, %v1196
        %v1198 = vand.u32 %v290, 4294901760
        %v1199 = vsub.f32 %v290, %v1198
        %v1200 = vand.u32 %v1199, 4294901760
        %1201 = vmatmul.f32.gmra.mxu0 %v1200
        %v1202 = vpop.f32.mrf.mxu0
        %v1203 = vadd.f32 %v975, %v1202
        %v1204 = vand.u32 %v293, 4294901760
        %v1205 = vsub.f32 %v293, %v1204
        %v1206 = vand.u32 %v1205, 4294901760
        %1207 = vmatmul.f32.gmra.mxu0 %v1206
        %v1208 = vpop.f32.mrf.mxu0
        %v1209 = vadd.f32 %v980, %v1208
        %v1210 = vand.u32 %v296, 4294901760
        %v1211 = vsub.f32 %v296, %v1210
        %v1212 = vand.u32 %v1211, 4294901760
        %1213 = vmatmul.f32.gmra.mxu0 %v1212
        %v1214 = vpop.f32.mrf.mxu0
        %v1215 = vadd.f32 %v985, %v1214
        %v1216 = vand.u32 %v299, 4294901760
        %v1217 = vsub.f32 %v299, %v1216
        %v1218 = vand.u32 %v1217, 4294901760
        %1219 = vmatmul.f32.gmra.mxu0 %v1218
        %v1220 = vpop.f32.mrf.mxu0
        %v1221 = vadd.f32 %v990, %v1220
        %v1222 = vand.u32 %v302, 4294901760
        %v1223 = vsub.f32 %v302, %v1222
        %v1224 = vand.u32 %v1223, 4294901760
        %1225 = vmatmul.f32.gmra.mxu0 %v1224
        %v1226 = vpop.f32.mrf.mxu0
        %v1227 = vadd.f32 %v995, %v1226
        %v1228 = vand.u32 %v305, 4294901760
        %v1229 = vsub.f32 %v305, %v1228
        %v1230 = vand.u32 %v1229, 4294901760
        %1231 = vmatmul.f32.gmra.mxu0 %v1230
        %v1232 = vpop.f32.mrf.mxu0
        %v1233 = vadd.f32 %v1000, %v1232
        %v1234 = vand.u32 %v308, 4294901760
        %v1235 = vsub.f32 %v308, %v1234
        %v1236 = vand.u32 %v1235, 4294901760
        %1237 = vmatmul.f32.gmra.mxu0 %v1236
        %v1238 = vpop.f32.mrf.mxu0
        %v1239 = vadd.f32 %v1005, %v1238
        %v1240 = vand.u32 %v311, 4294901760
        %v1241 = vsub.f32 %v311, %v1240
        %v1242 = vand.u32 %v1241, 4294901760
        %1243 = vmatmul.f32.gmra.mxu0 %v1242
        %v1244 = vpop.f32.mrf.mxu0
        %v1245 = vadd.f32 %v1010, %v1244
        %v1246 = vand.u32 %v314, 4294901760
        %v1247 = vsub.f32 %v314, %v1246
        %v1248 = vand.u32 %v1247, 4294901760
        %1249 = vmatmul.f32.gmra.mxu0 %v1248
        %v1250 = vpop.f32.mrf.mxu0
        %v1251 = vadd.f32 %v1015, %v1250
        %v1252 = vand.u32 %v317, 4294901760
        %v1253 = vsub.f32 %v317, %v1252
        %v1254 = vand.u32 %v1253, 4294901760
        %1255 = vmatmul.f32.gmra.mxu0 %v1254
        %v1256 = vpop.f32.mrf.mxu0
        %v1257 = vadd.f32 %v1020, %v1256
        %v1258 = vand.u32 %v320, 4294901760
        %v1259 = vsub.f32 %v320, %v1258
        %v1260 = vand.u32 %v1259, 4294901760
        %1261 = vmatmul.f32.gmra.mxu0 %v1260
        %v1262 = vpop.f32.mrf.mxu0
        %v1263 = vadd.f32 %v1025, %v1262
        %v1264 = vand.u32 %v323, 4294901760
        %v1265 = vsub.f32 %v323, %v1264
        %v1266 = vand.u32 %v1265, 4294901760
        %1267 = vmatmul.f32.gmra.mxu0 %v1266
        %v1268 = vpop.f32.mrf.mxu0
        %v1269 = vadd.f32 %v1030, %v1268
        %v1270 = vand.u32 %v326, 4294901760
        %v1271 = vsub.f32 %v326, %v1270
        %v1272 = vand.u32 %v1271, 4294901760
        %1273 = vmatmul.f32.gmra.mxu0 %v1272
        %v1274 = vpop.f32.mrf.mxu0
        %v1275 = vadd.f32 %v1035, %v1274
        %v1276 = vand.u32 %v329, 4294901760
        %v1277 = vsub.f32 %v329, %v1276
        %v1278 = vand.u32 %v1277, 4294901760
        %1279 = vmatmul.f32.gmra.mxu0 %v1278
        %v1280 = vpop.f32.mrf.mxu0
        %v1281 = vadd.f32 %v1040, %v1280
        %v1282 = vand.u32 %v332, 4294901760
        %v1283 = vsub.f32 %v332, %v1282
        %v1284 = vand.u32 %v1283, 4294901760
        %1285 = vmatmul.f32.gmra.mxu0 %v1284
        %v1286 = vpop.f32.mrf.mxu0
        %v1287 = vadd.f32 %v1045, %v1286
        %v1288 = vand.u32 %v335, 4294901760
        %v1289 = vsub.f32 %v335, %v1288
        %v1290 = vand.u32 %v1289, 4294901760
        %1291 = vmatmul.f32.gmra.mxu0 %v1290
        %v1292 = vpop.f32.mrf.mxu0
        %v1293 = vadd.f32 %v1050, %v1292
        %v1294 = vand.u32 %v338, 4294901760
        %v1295 = vsub.f32 %v338, %v1294
        %v1296 = vand.u32 %v1295, 4294901760
        %1297 = vmatmul.f32.gmra.mxu0 %v1296
        %v1298 = vpop.f32.mrf.mxu0
        %v1299 = vadd.f32 %v1055, %v1298
        %v1300 = vand.u32 %v341, 4294901760
        %v1301 = vsub.f32 %v341, %v1300
        %v1302 = vand.u32 %v1301, 4294901760
        %1303 = vmatmul.f32.gmra.mxu0 %v1302
        %v1304 = vpop.f32.mrf.mxu0
        %v1305 = vadd.f32 %v1060, %v1304
        %v1306 = vand.u32 %v344, 4294901760
        %v1307 = vsub.f32 %v344, %v1306
        %v1308 = vand.u32 %v1307, 4294901760
        %1309 = vmatmul.f32.gmra.mxu0 %v1308
        %v1310 = vpop.f32.mrf.mxu0
        %v1311 = vadd.f32 %v1065, %v1310
        %v1312 = vand.u32 %v347, 4294901760
        %v1313 = vsub.f32 %v347, %v1312
        %v1314 = vand.u32 %v1313, 4294901760
        %1315 = vmatmul.f32.gmra.mxu0 %v1314
        %v1316 = vpop.f32.mrf.mxu0
        %v1317 = vadd.f32 %v1070, %v1316
        %v1318 = vand.u32 %v350, 4294901760
        %v1319 = vsub.f32 %v350, %v1318
        %v1320 = vand.u32 %v1319, 4294901760
        %1321 = vmatmul.f32.gmra.mxu0 %v1320
        %v1322 = vpop.f32.mrf.mxu0
        %v1323 = vadd.f32 %v1075, %v1322
        %v1324 = vand.u32 %v353, 4294901760
        %v1325 = vsub.f32 %v353, %v1324
        %v1326 = vand.u32 %v1325, 4294901760
        %1327 = vmatmul.f32.gmra.mxu0 %v1326
        %v1328 = vpop.f32.mrf.mxu0
        %v1329 = vadd.f32 %v1080, %v1328
        %v1330 = vand.u32 %v356, 4294901760
        %v1331 = vsub.f32 %v356, %v1330
        %v1332 = vand.u32 %v1331, 4294901760
        %1333 = vmatmul.f32.gmra.mxu0 %v1332
        %v1334 = vpop.f32.mrf.mxu0
        %v1335 = vadd.f32 %v1085, %v1334
        %v1336 = vand.u32 %v359, 4294901760
        %v1337 = vsub.f32 %v359, %v1336
        %v1338 = vand.u32 %v1337, 4294901760
        %1339 = vmatmul.f32.gmra.mxu0 %v1338
        %v1340 = vpop.f32.mrf.mxu0
        %v1341 = vadd.f32 %v1090, %v1340
        %v1342 = vand.u32 %v362, 4294901760
        %v1343 = vsub.f32 %v362, %v1342
        %v1344 = vand.u32 %v1343, 4294901760
        %1345 = vmatmul.f32.gmra.mxu0 %v1344
        %v1346 = vpop.f32.mrf.mxu0
        %v1347 = vadd.f32 %v1095, %v1346
        %v1348 = vand.u32 %v365, 4294901760
        %v1349 = vsub.f32 %v365, %v1348
        %v1350 = vand.u32 %v1349, 4294901760
        %1351 = vmatmul.f32.gmra.mxu0 %v1350
        %v1352 = vpop.f32.mrf.mxu0
        %v1353 = vadd.f32 %v1100, %v1352
        %v1354 = vand.u32 %v368, 4294901760
        %v1355 = vsub.f32 %v368, %v1354
        %v1356 = vand.u32 %v1355, 4294901760
        %1357 = vmatmul.f32.gmra.mxu0 %v1356
        %v1358 = vpop.f32.mrf.mxu0
        %v1359 = vadd.f32 %v1105, %v1358
        %v1360 = vand.u32 %v371, 4294901760
        %v1361 = vsub.f32 %v371, %v1360
        %v1362 = vand.u32 %v1361, 4294901760
        %1363 = vmatmul.f32.gmra.mxu0 %v1362
        %v1364 = vpop.f32.mrf.mxu0
        %v1365 = vadd.f32 %v1110, %v1364
        %v1366 = vand.u32 %v374, 4294901760
        %v1367 = vsub.f32 %v374, %v1366
        %v1368 = vand.u32 %v1367, 4294901760
        %1369 = vmatmul.f32.gmra.mxu0 %v1368
        %v1370 = vpop.f32.mrf.mxu0
        %v1371 = vadd.f32 %v1115, %v1370
        %v1372 = vand.u32 %v377, 4294901760
        %v1373 = vsub.f32 %v377, %v1372
        %v1374 = vand.u32 %v1373, 4294901760
        %1375 = vmatmul.f32.gmra.mxu0 %v1374
        %v1376 = vpop.f32.mrf.mxu0
        %v1377 = vadd.f32 %v1120, %v1376
        %v1378 = vand.u32 %v380, 4294901760
        %v1379 = vsub.f32 %v380, %v1378
        %v1380 = vand.u32 %v1379, 4294901760
        %1381 = vmatmul.f32.gmra.mxu0 %v1380
        %v1382 = vpop.f32.mrf.mxu0
        %v1383 = vadd.f32 %v1125, %v1382
        %v1384 = vand.u32 %v383, 4294901760
        %v1385 = vsub.f32 %v383, %v1384
        %v1386 = vand.u32 %v1385, 4294901760
        %1387 = vmatmul.f32.gmra.mxu0 %v1386
        %v1388 = vpop.f32.mrf.mxu0
        %v1389 = vadd.f32 %v1130, %v1388
        %1390 = vdwg.mxu0
        %1391 = vmatpush.msra.mxu0 0.0
        %1392 = vmatpush.msra.mxu0 0.0
        %1393 = vmatpush.msra.mxu0 0.0
        %1394 = vmatpush.msra.mxu0 0.0
        %1395 = vmatpush.msra.mxu0 0.0
        %1396 = vmatpush.msra.mxu0 0.0
        %1397 = vmatpush.msra.mxu0 0.0
        %1398 = vmatpush.msra.mxu0 0.0
        %1399 = vmatpush.msra.mxu0 0.0
        %1400 = vmatpush.msra.mxu0 0.0
        %1401 = vmatpush.msra.mxu0 0.0
        %1402 = vmatpush.msra.mxu0 0.0
        %1403 = vmatpush.msra.mxu0 0.0
        %1404 = vmatpush.msra.mxu0 0.0
        %v1405 = vand.u32 %v221, 4294901760
        %v1406 = vsub.f32 %v221, %v1405
        %v1407 = vand.u32 %v1406, 4294901760
        %1408 = vmatpush.msra.mxu0 %v1407
        %v1409 = vand.u32 %v220, 4294901760
        %v1410 = vsub.f32 %v220, %v1409
        %v1411 = vand.u32 %v1410, 4294901760
        %1412 = vmatpush.msra.mxu0 %v1411
        %v1413 = vand.u32 %v266, 4294901760
        %1414 = vmatmul.f32.gmra.mxu0 %v1413
        %v1415 = vpop.f32.mrf.mxu0
        %v1416 = vadd.f32 %v1155, %v1415
        %v1417 = vand.u32 %v269, 4294901760
        %1418 = vmatmul.f32.gmra.mxu0 %v1417
        %v1419 = vpop.f32.mrf.mxu0
        %v1420 = vadd.f32 %v1161, %v1419
        %v1421 = vand.u32 %v272, 4294901760
        %1422 = vmatmul.f32.gmra.mxu0 %v1421
        %v1423 = vpop.f32.mrf.mxu0
        %v1424 = vadd.f32 %v1167, %v1423
        %v1425 = vand.u32 %v275, 4294901760
        %1426 = vmatmul.f32.gmra.mxu0 %v1425
        %v1427 = vpop.f32.mrf.mxu0
        %v1428 = vadd.f32 %v1173, %v1427
        %v1429 = vand.u32 %v278, 4294901760
        %1430 = vmatmul.f32.gmra.mxu0 %v1429
        %v1431 = vpop.f32.mrf.mxu0
        %v1432 = vadd.f32 %v1179, %v1431
        %v1433 = vand.u32 %v281, 4294901760
        %1434 = vmatmul.f32.gmra.mxu0 %v1433
        %v1435 = vpop.f32.mrf.mxu0
        %v1436 = vadd.f32 %v1185, %v1435
        %v1437 = vand.u32 %v284, 4294901760
        %1438 = vmatmul.f32.gmra.mxu0 %v1437
        %v1439 = vpop.f32.mrf.mxu0
        %v1440 = vadd.f32 %v1191, %v1439
        %v1441 = vand.u32 %v287, 4294901760
        %1442 = vmatmul.f32.gmra.mxu0 %v1441
        %v1443 = vpop.f32.mrf.mxu0
        %v1444 = vadd.f32 %v1197, %v1443
        %v1445 = vand.u32 %v290, 4294901760
        %1446 = vmatmul.f32.gmra.mxu0 %v1445
        %v1447 = vpop.f32.mrf.mxu0
        %v1448 = vadd.f32 %v1203, %v1447
        %v1449 = vand.u32 %v293, 4294901760
        %1450 = vmatmul.f32.gmra.mxu0 %v1449
        %v1451 = vpop.f32.mrf.mxu0
        %v1452 = vadd.f32 %v1209, %v1451
        %v1453 = vand.u32 %v296, 4294901760
        %1454 = vmatmul.f32.gmra.mxu0 %v1453
        %v1455 = vpop.f32.mrf.mxu0
        %v1456 = vadd.f32 %v1215, %v1455
        %v1457 = vand.u32 %v299, 4294901760
        %1458 = vmatmul.f32.gmra.mxu0 %v1457
        %v1459 = vpop.f32.mrf.mxu0
        %v1460 = vadd.f32 %v1221, %v1459
        %v1461 = vand.u32 %v302, 4294901760
        %1462 = vmatmul.f32.gmra.mxu0 %v1461
        %v1463 = vpop.f32.mrf.mxu0
        %v1464 = vadd.f32 %v1227, %v1463
        %v1465 = vand.u32 %v305, 4294901760
        %1466 = vmatmul.f32.gmra.mxu0 %v1465
        %v1467 = vpop.f32.mrf.mxu0
        %v1468 = vadd.f32 %v1233, %v1467
        %v1469 = vand.u32 %v308, 4294901760
        %1470 = vmatmul.f32.gmra.mxu0 %v1469
        %v1471 = vpop.f32.mrf.mxu0
        %v1472 = vadd.f32 %v1239, %v1471
        %v1473 = vand.u32 %v311, 4294901760
        %1474 = vmatmul.f32.gmra.mxu0 %v1473
        %v1475 = vpop.f32.mrf.mxu0
        %v1476 = vadd.f32 %v1245, %v1475
        %v1477 = vand.u32 %v314, 4294901760
        %1478 = vmatmul.f32.gmra.mxu0 %v1477
        %v1479 = vpop.f32.mrf.mxu0
        %v1480 = vadd.f32 %v1251, %v1479
        %v1481 = vand.u32 %v317, 4294901760
        %1482 = vmatmul.f32.gmra.mxu0 %v1481
        %v1483 = vpop.f32.mrf.mxu0
        %v1484 = vadd.f32 %v1257, %v1483
        %v1485 = vand.u32 %v320, 4294901760
        %1486 = vmatmul.f32.gmra.mxu0 %v1485
        %v1487 = vpop.f32.mrf.mxu0
        %v1488 = vadd.f32 %v1263, %v1487
        %v1489 = vand.u32 %v323, 4294901760
        %1490 = vmatmul.f32.gmra.mxu0 %v1489
        %v1491 = vpop.f32.mrf.mxu0
        %v1492 = vadd.f32 %v1269, %v1491
        %v1493 = vand.u32 %v326, 4294901760
        %1494 = vmatmul.f32.gmra.mxu0 %v1493
        %v1495 = vpop.f32.mrf.mxu0
        %v1496 = vadd.f32 %v1275, %v1495
        %v1497 = vand.u32 %v329, 4294901760
        %1498 = vmatmul.f32.gmra.mxu0 %v1497
        %v1499 = vpop.f32.mrf.mxu0
        %v1500 = vadd.f32 %v1281, %v1499
        %v1501 = vand.u32 %v332, 4294901760
        %1502 = vmatmul.f32.gmra.mxu0 %v1501
        %v1503 = vpop.f32.mrf.mxu0
        %v1504 = vadd.f32 %v1287, %v1503
        %v1505 = vand.u32 %v335, 4294901760
        %1506 = vmatmul.f32.gmra.mxu0 %v1505
        %v1507 = vpop.f32.mrf.mxu0
        %v1508 = vadd.f32 %v1293, %v1507
        %v1509 = vand.u32 %v338, 4294901760
        %1510 = vmatmul.f32.gmra.mxu0 %v1509
        %v1511 = vpop.f32.mrf.mxu0
        %v1512 = vadd.f32 %v1299, %v1511
        %v1513 = vand.u32 %v341, 4294901760
        %1514 = vmatmul.f32.gmra.mxu0 %v1513
        %v1515 = vpop.f32.mrf.mxu0
        %v1516 = vadd.f32 %v1305, %v1515
        %v1517 = vand.u32 %v344, 4294901760
        %1518 = vmatmul.f32.gmra.mxu0 %v1517
        %v1519 = vpop.f32.mrf.mxu0
        %v1520 = vadd.f32 %v1311, %v1519
        %v1521 = vand.u32 %v347, 4294901760
        %1522 = vmatmul.f32.gmra.mxu0 %v1521
        %v1523 = vpop.f32.mrf.mxu0
        %v1524 = vadd.f32 %v1317, %v1523
        %v1525 = vand.u32 %v350, 4294901760
        %1526 = vmatmul.f32.gmra.mxu0 %v1525
        %v1527 = vpop.f32.mrf.mxu0
        %v1528 = vadd.f32 %v1323, %v1527
        %v1529 = vand.u32 %v353, 4294901760
        %1530 = vmatmul.f32.gmra.mxu0 %v1529
        %v1531 = vpop.f32.mrf.mxu0
        %v1532 = vadd.f32 %v1329, %v1531
        %v1533 = vand.u32 %v356, 4294901760
        %1534 = vmatmul.f32.gmra.mxu0 %v1533
        %v1535 = vpop.f32.mrf.mxu0
        %v1536 = vadd.f32 %v1335, %v1535
        %v1537 = vand.u32 %v359, 4294901760
        %1538 = vmatmul.f32.gmra.mxu0 %v1537
        %v1539 = vpop.f32.mrf.mxu0
        %v1540 = vadd.f32 %v1341, %v1539
        %v1541 = vand.u32 %v362, 4294901760
        %1542 = vmatmul.f32.gmra.mxu0 %v1541
        %v1543 = vpop.f32.mrf.mxu0
        %v1544 = vadd.f32 %v1347, %v1543
        %v1545 = vand.u32 %v365, 4294901760
        %1546 = vmatmul.f32.gmra.mxu0 %v1545
        %v1547 = vpop.f32.mrf.mxu0
        %v1548 = vadd.f32 %v1353, %v1547
        %v1549 = vand.u32 %v368, 4294901760
        %1550 = vmatmul.f32.gmra.mxu0 %v1549
        %v1551 = vpop.f32.mrf.mxu0
        %v1552 = vadd.f32 %v1359, %v1551
        %v1553 = vand.u32 %v371, 4294901760
        %1554 = vmatmul.f32.gmra.mxu0 %v1553
        %v1555 = vpop.f32.mrf.mxu0
        %v1556 = vadd.f32 %v1365, %v1555
        %v1557 = vand.u32 %v374, 4294901760
        %1558 = vmatmul.f32.gmra.mxu0 %v1557
        %v1559 = vpop.f32.mrf.mxu0
        %v1560 = vadd.f32 %v1371, %v1559
        %v1561 = vand.u32 %v377, 4294901760
        %1562 = vmatmul.f32.gmra.mxu0 %v1561
        %v1563 = vpop.f32.mrf.mxu0
        %v1564 = vadd.f32 %v1377, %v1563
        %v1565 = vand.u32 %v380, 4294901760
        %1566 = vmatmul.f32.gmra.mxu0 %v1565
        %v1567 = vpop.f32.mrf.mxu0
        %v1568 = vadd.f32 %v1383, %v1567
        %v1569 = vand.u32 %v383, 4294901760
        %1570 = vmatmul.f32.gmra.mxu0 %v1569
        %v1571 = vpop.f32.mrf.mxu0
        %v1572 = vadd.f32 %v1389, %v1571
        %1573 = vdwg.mxu0
        %1574 = vmatpush.msra.mxu0 0.0
        %1575 = vmatpush.msra.mxu0 0.0
        %1576 = vmatpush.msra.mxu0 0.0
        %1577 = vmatpush.msra.mxu0 0.0
        %1578 = vmatpush.msra.mxu0 0.0
        %1579 = vmatpush.msra.mxu0 0.0
        %1580 = vmatpush.msra.mxu0 0.0
        %1581 = vmatpush.msra.mxu0 0.0
        %1582 = vmatpush.msra.mxu0 0.0
        %1583 = vmatpush.msra.mxu0 0.0
        %1584 = vmatpush.msra.mxu0 0.0
        %1585 = vmatpush.msra.mxu0 0.0
        %1586 = vmatpush.msra.mxu0 0.0
        %1587 = vmatpush.msra.mxu0 0.0
        %v1588 = vand.u32 %v221, 4294901760
        %1589 = vmatpush.msra.mxu0 %v1588
        %v1590 = vand.u32 %v220, 4294901760
        %1591 = vmatpush.msra.mxu0 %v1590
        %v1592 = vand.u32 %v266, 4294901760
        %1593 = vmatmul.f32.gmra.mxu0 %v1592
        %v1594 = vpop.f32.mrf.mxu0
        %v1595 = vadd.f32 %v1416, %v1594
        %v1596 = vand.u32 %v269, 4294901760
        %1597 = vmatmul.f32.gmra.mxu0 %v1596
        %v1598 = vpop.f32.mrf.mxu0
        %v1599 = vadd.f32 %v1420, %v1598
        %v1600 = vand.u32 %v272, 4294901760
        %1601 = vmatmul.f32.gmra.mxu0 %v1600
        %v1602 = vpop.f32.mrf.mxu0
        %v1603 = vadd.f32 %v1424, %v1602
        %v1604 = vand.u32 %v275, 4294901760
        %1605 = vmatmul.f32.gmra.mxu0 %v1604
        %v1606 = vpop.f32.mrf.mxu0
        %v1607 = vadd.f32 %v1428, %v1606
        %v1608 = vand.u32 %v278, 4294901760
        %1609 = vmatmul.f32.gmra.mxu0 %v1608
        %v1610 = vpop.f32.mrf.mxu0
        %v1611 = vadd.f32 %v1432, %v1610
        %v1612 = vand.u32 %v281, 4294901760
        %1613 = vmatmul.f32.gmra.mxu0 %v1612
        %v1614 = vpop.f32.mrf.mxu0
        %v1615 = vadd.f32 %v1436, %v1614
        %v1616 = vand.u32 %v284, 4294901760
        %1617 = vmatmul.f32.gmra.mxu0 %v1616
        %v1618 = vpop.f32.mrf.mxu0
        %v1619 = vadd.f32 %v1440, %v1618
        %v1620 = vand.u32 %v287, 4294901760
        %1621 = vmatmul.f32.gmra.mxu0 %v1620
        %v1622 = vpop.f32.mrf.mxu0
        %v1623 = vadd.f32 %v1444, %v1622
        %v1624 = vand.u32 %v290, 4294901760
        %1625 = vmatmul.f32.gmra.mxu0 %v1624
        %v1626 = vpop.f32.mrf.mxu0
        %v1627 = vadd.f32 %v1448, %v1626
        %v1628 = vand.u32 %v293, 4294901760
        %1629 = vmatmul.f32.gmra.mxu0 %v1628
        %v1630 = vpop.f32.mrf.mxu0
        %v1631 = vadd.f32 %v1452, %v1630
        %v1632 = vand.u32 %v296, 4294901760
        %1633 = vmatmul.f32.gmra.mxu0 %v1632
        %v1634 = vpop.f32.mrf.mxu0
        %v1635 = vadd.f32 %v1456, %v1634
        %v1636 = vand.u32 %v299, 4294901760
        %1637 = vmatmul.f32.gmra.mxu0 %v1636
        %v1638 = vpop.f32.mrf.mxu0
        %v1639 = vadd.f32 %v1460, %v1638
        %v1640 = vand.u32 %v302, 4294901760
        %1641 = vmatmul.f32.gmra.mxu0 %v1640
        %v1642 = vpop.f32.mrf.mxu0
        %v1643 = vadd.f32 %v1464, %v1642
        %v1644 = vand.u32 %v305, 4294901760
        %1645 = vmatmul.f32.gmra.mxu0 %v1644
        %v1646 = vpop.f32.mrf.mxu0
        %v1647 = vadd.f32 %v1468, %v1646
        %v1648 = vand.u32 %v308, 4294901760
        %1649 = vmatmul.f32.gmra.mxu0 %v1648
        %v1650 = vpop.f32.mrf.mxu0
        %v1651 = vadd.f32 %v1472, %v1650
        %v1652 = vand.u32 %v311, 4294901760
        %1653 = vmatmul.f32.gmra.mxu0 %v1652
        %v1654 = vpop.f32.mrf.mxu0
        %v1655 = vadd.f32 %v1476, %v1654
        %v1656 = vand.u32 %v314, 4294901760
        %1657 = vmatmul.f32.gmra.mxu0 %v1656
        %v1658 = vpop.f32.mrf.mxu0
        %v1659 = vadd.f32 %v1480, %v1658
        %v1660 = vand.u32 %v317, 4294901760
        %1661 = vmatmul.f32.gmra.mxu0 %v1660
        %v1662 = vpop.f32.mrf.mxu0
        %v1663 = vadd.f32 %v1484, %v1662
        %v1664 = vand.u32 %v320, 4294901760
        %1665 = vmatmul.f32.gmra.mxu0 %v1664
        %v1666 = vpop.f32.mrf.mxu0
        %v1667 = vadd.f32 %v1488, %v1666
        %v1668 = vand.u32 %v323, 4294901760
        %1669 = vmatmul.f32.gmra.mxu0 %v1668
        %v1670 = vpop.f32.mrf.mxu0
        %v1671 = vadd.f32 %v1492, %v1670
        %v1672 = vand.u32 %v326, 4294901760
        %1673 = vmatmul.f32.gmra.mxu0 %v1672
        %v1674 = vpop.f32.mrf.mxu0
        %v1675 = vadd.f32 %v1496, %v1674
        %v1676 = vand.u32 %v329, 4294901760
        %1677 = vmatmul.f32.gmra.mxu0 %v1676
        %v1678 = vpop.f32.mrf.mxu0
        %v1679 = vadd.f32 %v1500, %v1678
        %v1680 = vand.u32 %v332, 4294901760
        %1681 = vmatmul.f32.gmra.mxu0 %v1680
        %v1682 = vpop.f32.mrf.mxu0
        %v1683 = vadd.f32 %v1504, %v1682
        %v1684 = vand.u32 %v335, 4294901760
        %1685 = vmatmul.f32.gmra.mxu0 %v1684
        %v1686 = vpop.f32.mrf.mxu0
        %v1687 = vadd.f32 %v1508, %v1686
        %v1688 = vand.u32 %v338, 4294901760
        %1689 = vmatmul.f32.gmra.mxu0 %v1688
        %v1690 = vpop.f32.mrf.mxu0
        %v1691 = vadd.f32 %v1512, %v1690
        %v1692 = vand.u32 %v341, 4294901760
        %1693 = vmatmul.f32.gmra.mxu0 %v1692
        %v1694 = vpop.f32.mrf.mxu0
        %v1695 = vadd.f32 %v1516, %v1694
        %v1696 = vand.u32 %v344, 4294901760
        %1697 = vmatmul.f32.gmra.mxu0 %v1696
        %v1698 = vpop.f32.mrf.mxu0
        %v1699 = vadd.f32 %v1520, %v1698
        %v1700 = vand.u32 %v347, 4294901760
        %1701 = vmatmul.f32.gmra.mxu0 %v1700
        %v1702 = vpop.f32.mrf.mxu0
        %v1703 = vadd.f32 %v1524, %v1702
        %v1704 = vand.u32 %v350, 4294901760
        %1705 = vmatmul.f32.gmra.mxu0 %v1704
        %v1706 = vpop.f32.mrf.mxu0
        %v1707 = vadd.f32 %v1528, %v1706
        %v1708 = vand.u32 %v353, 4294901760
        %1709 = vmatmul.f32.gmra.mxu0 %v1708
        %v1710 = vpop.f32.mrf.mxu0
        %v1711 = vadd.f32 %v1532, %v1710
        %v1712 = vand.u32 %v356, 4294901760
        %1713 = vmatmul.f32.gmra.mxu0 %v1712
        %v1714 = vpop.f32.mrf.mxu0
        %v1715 = vadd.f32 %v1536, %v1714
        %v1716 = vand.u32 %v359, 4294901760
        %1717 = vmatmul.f32.gmra.mxu0 %v1716
        %v1718 = vpop.f32.mrf.mxu0
        %v1719 = vadd.f32 %v1540, %v1718
        %v1720 = vand.u32 %v362, 4294901760
        %1721 = vmatmul.f32.gmra.mxu0 %v1720
        %v1722 = vpop.f32.mrf.mxu0
        %v1723 = vadd.f32 %v1544, %v1722
        %v1724 = vand.u32 %v365, 4294901760
        %1725 = vmatmul.f32.gmra.mxu0 %v1724
        %v1726 = vpop.f32.mrf.mxu0
        %v1727 = vadd.f32 %v1548, %v1726
        %v1728 = vand.u32 %v368, 4294901760
        %1729 = vmatmul.f32.gmra.mxu0 %v1728
        %v1730 = vpop.f32.mrf.mxu0
        %v1731 = vadd.f32 %v1552, %v1730
        %v1732 = vand.u32 %v371, 4294901760
        %1733 = vmatmul.f32.gmra.mxu0 %v1732
        %v1734 = vpop.f32.mrf.mxu0
        %v1735 = vadd.f32 %v1556, %v1734
        %v1736 = vand.u32 %v374, 4294901760
        %1737 = vmatmul.f32.gmra.mxu0 %v1736
        %v1738 = vpop.f32.mrf.mxu0
        %v1739 = vadd.f32 %v1560, %v1738
        %v1740 = vand.u32 %v377, 4294901760
        %1741 = vmatmul.f32.gmra.mxu0 %v1740
        %v1742 = vpop.f32.mrf.mxu0
        %v1743 = vadd.f32 %v1564, %v1742
        %v1744 = vand.u32 %v380, 4294901760
        %1745 = vmatmul.f32.gmra.mxu0 %v1744
        %v1746 = vpop.f32.mrf.mxu0
        %v1747 = vadd.f32 %v1568, %v1746
        %v1748 = vand.u32 %v383, 4294901760
        %1749 = vmatmul.f32.gmra.mxu0 %v1748
        %v1750 = vpop.f32.mrf.mxu0
        %v1751 = vadd.f32 %v1572, %v1750
        %1752 = vdwg.mxu0
        %v1754 = vsel %vm264, %v222, 0
        %v1757 = vsel %vm264, %v223, 0
        %1759 = vmatpush.msra.mxu0 0.0
        %1760 = vmatpush.msra.mxu0 0.0
        %1761 = vmatpush.msra.mxu0 0.0
        %1762 = vmatpush.msra.mxu0 0.0
        %1763 = vmatpush.msra.mxu0 0.0
        %1764 = vmatpush.msra.mxu0 0.0
        %1765 = vmatpush.msra.mxu0 0.0
        %1766 = vmatpush.msra.mxu0 0.0
        %1767 = vmatpush.msra.mxu0 0.0
        %1768 = vmatpush.msra.mxu0 0.0
        %1769 = vmatpush.msra.mxu0 0.0
        %1770 = vmatpush.msra.mxu0 0.0
        %1771 = vmatpush.msra.mxu0 0.0
        %1772 = vmatpush.msra.mxu0 0.0
        %v1773 = vand.u32 %v1599, 4294901760
        %1774 = vmatpush.msra.mxu0 %v1773
        %v1775 = vand.u32 %v1595, 4294901760
        %1776 = vmatpush.msra.mxu0 %v1775
        %v1777 = vand.u32 %v1754, 4294901760
        %v1778 = vsub.f32 %v1754, %v1777
        %v1779 = vand.u32 %v1778, 4294901760
        %v1780 = vsub.f32 %v1778, %v1779
        %v1781 = vand.u32 %v1780, 4294901760
        %1782 = vmatmul.f32.gmra.mxu0 %v1781
        %v1783 = vpop.f32.mrf.mxu0
        %v1784 = vadd.f32 0.0, %v1783
        %v1785 = vand.u32 %v1757, 4294901760
        %v1786 = vsub.f32 %v1757, %v1785
        %v1787 = vand.u32 %v1786, 4294901760
        %v1788 = vsub.f32 %v1786, %v1787
        %v1789 = vand.u32 %v1788, 4294901760
        %1790 = vmatmul.f32.gmra.mxu0 %v1789
        %v1791 = vpop.f32.mrf.mxu0
        %v1792 = vadd.f32 0.0, %v1791
        %1793 = vdwg.mxu0
        %1794 = vmatpush.msra.mxu0 0.0
        %1795 = vmatpush.msra.mxu0 0.0
        %1796 = vmatpush.msra.mxu0 0.0
        %1797 = vmatpush.msra.mxu0 0.0
        %1798 = vmatpush.msra.mxu0 0.0
        %1799 = vmatpush.msra.mxu0 0.0
        %1800 = vmatpush.msra.mxu0 0.0
        %1801 = vmatpush.msra.mxu0 0.0
        %1802 = vmatpush.msra.mxu0 0.0
        %1803 = vmatpush.msra.mxu0 0.0
        %1804 = vmatpush.msra.mxu0 0.0
        %1805 = vmatpush.msra.mxu0 0.0
        %1806 = vmatpush.msra.mxu0 0.0
        %1807 = vmatpush.msra.mxu0 0.0
        %v1808 = vand.u32 %v1599, 4294901760
        %v1809 = vsub.f32 %v1599, %v1808
        %v1810 = vand.u32 %v1809, 4294901760
        %v1811 = vsub.f32 %v1809, %v1810
        %v1812 = vand.u32 %v1811, 4294901760
        %1813 = vmatpush.msra.mxu0 %v1812
        %v1814 = vand.u32 %v1595, 4294901760
        %v1815 = vsub.f32 %v1595, %v1814
        %v1816 = vand.u32 %v1815, 4294901760
        %v1817 = vsub.f32 %v1815, %v1816
        %v1818 = vand.u32 %v1817, 4294901760
        %1819 = vmatpush.msra.mxu0 %v1818
        %v1820 = vand.u32 %v1754, 4294901760
        %1821 = vmatmul.f32.gmra.mxu0 %v1820
        %v1822 = vpop.f32.mrf.mxu0
        %v1823 = vadd.f32 %v1784, %v1822
        %v1824 = vand.u32 %v1757, 4294901760
        %1825 = vmatmul.f32.gmra.mxu0 %v1824
        %v1826 = vpop.f32.mrf.mxu0
        %v1827 = vadd.f32 %v1792, %v1826
        %1828 = vdwg.mxu0
        %1829 = vmatpush.msra.mxu0 0.0
        %1830 = vmatpush.msra.mxu0 0.0
        %1831 = vmatpush.msra.mxu0 0.0
        %1832 = vmatpush.msra.mxu0 0.0
        %1833 = vmatpush.msra.mxu0 0.0
        %1834 = vmatpush.msra.mxu0 0.0
        %1835 = vmatpush.msra.mxu0 0.0
        %1836 = vmatpush.msra.mxu0 0.0
        %1837 = vmatpush.msra.mxu0 0.0
        %1838 = vmatpush.msra.mxu0 0.0
        %1839 = vmatpush.msra.mxu0 0.0
        %1840 = vmatpush.msra.mxu0 0.0
        %1841 = vmatpush.msra.mxu0 0.0
        %1842 = vmatpush.msra.mxu0 0.0
        %v1843 = vand.u32 %v1599, 4294901760
        %v1844 = vsub.f32 %v1599, %v1843
        %1845 = vmatpush.msra.mxu0 %v1844
        %v1846 = vand.u32 %v1595, 4294901760
        %v1847 = vsub.f32 %v1595, %v1846
        %1848 = vmatpush.msra.mxu0 %v1847
        %v1849 = vand.u32 %v1754, 4294901760
        %v1850 = vsub.f32 %v1754, %v1849
        %1851 = vmatmul.f32.gmra.mxu0 %v1850
        %v1852 = vpop.f32.mrf.mxu0
        %v1853 = vadd.f32 %v1823, %v1852
        %v1854 = vand.u32 %v1757, 4294901760
        %v1855 = vsub.f32 %v1757, %v1854
        %1856 = vmatmul.f32.gmra.mxu0 %v1855
        %v1857 = vpop.f32.mrf.mxu0
        %v1858 = vadd.f32 %v1827, %v1857
        %1859 = vdwg.mxu0
        %1860 = vmatpush.msra.mxu0 0.0
        %1861 = vmatpush.msra.mxu0 0.0
        %1862 = vmatpush.msra.mxu0 0.0
        %1863 = vmatpush.msra.mxu0 0.0
        %1864 = vmatpush.msra.mxu0 0.0
        %1865 = vmatpush.msra.mxu0 0.0
        %1866 = vmatpush.msra.mxu0 0.0
        %1867 = vmatpush.msra.mxu0 0.0
        %1868 = vmatpush.msra.mxu0 0.0
        %1869 = vmatpush.msra.mxu0 0.0
        %1870 = vmatpush.msra.mxu0 0.0
        %1871 = vmatpush.msra.mxu0 0.0
        %1872 = vmatpush.msra.mxu0 0.0
        %1873 = vmatpush.msra.mxu0 0.0
        %v1874 = vand.u32 %v1599, 4294901760
        %1875 = vmatpush.msra.mxu0 %v1874
        %v1876 = vand.u32 %v1595, 4294901760
        %1877 = vmatpush.msra.mxu0 %v1876
        %v1878 = vand.u32 %v1754, 4294901760
        %v1879 = vsub.f32 %v1754, %v1878
        %v1880 = vand.u32 %v1879, 4294901760
        %1881 = vmatmul.f32.gmra.mxu0 %v1880
        %v1882 = vpop.f32.mrf.mxu0
        %v1883 = vadd.f32 %v1853, %v1882
        %v1884 = vand.u32 %v1757, 4294901760
        %v1885 = vsub.f32 %v1757, %v1884
        %v1886 = vand.u32 %v1885, 4294901760
        %1887 = vmatmul.f32.gmra.mxu0 %v1886
        %v1888 = vpop.f32.mrf.mxu0
        %v1889 = vadd.f32 %v1858, %v1888
        %1890 = vdwg.mxu0
        %1891 = vmatpush.msra.mxu0 0.0
        %1892 = vmatpush.msra.mxu0 0.0
        %1893 = vmatpush.msra.mxu0 0.0
        %1894 = vmatpush.msra.mxu0 0.0
        %1895 = vmatpush.msra.mxu0 0.0
        %1896 = vmatpush.msra.mxu0 0.0
        %1897 = vmatpush.msra.mxu0 0.0
        %1898 = vmatpush.msra.mxu0 0.0
        %1899 = vmatpush.msra.mxu0 0.0
        %1900 = vmatpush.msra.mxu0 0.0
        %1901 = vmatpush.msra.mxu0 0.0
        %1902 = vmatpush.msra.mxu0 0.0
        %1903 = vmatpush.msra.mxu0 0.0
        %1904 = vmatpush.msra.mxu0 0.0
        %v1905 = vand.u32 %v1599, 4294901760
        %v1906 = vsub.f32 %v1599, %v1905
        %v1907 = vand.u32 %v1906, 4294901760
        %1908 = vmatpush.msra.mxu0 %v1907
        %v1909 = vand.u32 %v1595, 4294901760
        %v1910 = vsub.f32 %v1595, %v1909
        %v1911 = vand.u32 %v1910, 4294901760
        %1912 = vmatpush.msra.mxu0 %v1911
        %v1913 = vand.u32 %v1754, 4294901760
        %1914 = vmatmul.f32.gmra.mxu0 %v1913
        %v1915 = vpop.f32.mrf.mxu0
        %v1916 = vadd.f32 %v1883, %v1915
        %v1917 = vand.u32 %v1757, 4294901760
        %1918 = vmatmul.f32.gmra.mxu0 %v1917
        %v1919 = vpop.f32.mrf.mxu0
        %v1920 = vadd.f32 %v1889, %v1919
        %1921 = vdwg.mxu0
        %1922 = vmatpush.msra.mxu0 0.0
        %1923 = vmatpush.msra.mxu0 0.0
        %1924 = vmatpush.msra.mxu0 0.0
        %1925 = vmatpush.msra.mxu0 0.0
        %1926 = vmatpush.msra.mxu0 0.0
        %1927 = vmatpush.msra.mxu0 0.0
        %1928 = vmatpush.msra.mxu0 0.0
        %1929 = vmatpush.msra.mxu0 0.0
        %1930 = vmatpush.msra.mxu0 0.0
        %1931 = vmatpush.msra.mxu0 0.0
        %1932 = vmatpush.msra.mxu0 0.0
        %1933 = vmatpush.msra.mxu0 0.0
        %1934 = vmatpush.msra.mxu0 0.0
        %1935 = vmatpush.msra.mxu0 0.0
        %v1936 = vand.u32 %v1599, 4294901760
        %1937 = vmatpush.msra.mxu0 %v1936
        %v1938 = vand.u32 %v1595, 4294901760
        %1939 = vmatpush.msra.mxu0 %v1938
        %v1940 = vand.u32 %v1754, 4294901760
        %1941 = vmatmul.f32.gmra.mxu0 %v1940
        %v1942 = vpop.f32.mrf.mxu0
        %v1943 = vadd.f32 %v1916, %v1942
        %v1944 = vand.u32 %v1757, 4294901760
        %1945 = vmatmul.f32.gmra.mxu0 %v1944
        %v1946 = vpop.f32.mrf.mxu0
        %v1947 = vadd.f32 %v1920, %v1946
        %1948 = vdwg.mxu0
        %1949 = vmatpush.msra.mxu0 0.0
        %1950 = vmatpush.msra.mxu0 0.0
        %1951 = vmatpush.msra.mxu0 0.0
        %1952 = vmatpush.msra.mxu0 0.0
        %1953 = vmatpush.msra.mxu0 0.0
        %1954 = vmatpush.msra.mxu0 0.0
        %1955 = vmatpush.msra.mxu0 0.0
        %1956 = vmatpush.msra.mxu0 0.0
        %1957 = vmatpush.msra.mxu0 0.0
        %1958 = vmatpush.msra.mxu0 0.0
        %1959 = vmatpush.msra.mxu0 0.0
        %1960 = vmatpush.msra.mxu0 0.0
        %1961 = vmatpush.msra.mxu0 0.0
        %1962 = vmatpush.msra.mxu0 0.0
        %v1963 = vand.u32 %v1607, 4294901760
        %1964 = vmatpush.msra.mxu0 %v1963
        %v1965 = vand.u32 %v1603, 4294901760
        %1966 = vmatpush.msra.mxu0 %v1965
        %v1967 = vand.u32 %v1754, 4294901760
        %v1968 = vsub.f32 %v1754, %v1967
        %v1969 = vand.u32 %v1968, 4294901760
        %v1970 = vsub.f32 %v1968, %v1969
        %v1971 = vand.u32 %v1970, 4294901760
        %1972 = vmatmul.f32.gmra.mxu0 %v1971
        %v1973 = vpop.f32.mrf.mxu0
        %v1974 = vadd.f32 0.0, %v1973
        %v1975 = vand.u32 %v1757, 4294901760
        %v1976 = vsub.f32 %v1757, %v1975
        %v1977 = vand.u32 %v1976, 4294901760
        %v1978 = vsub.f32 %v1976, %v1977
        %v1979 = vand.u32 %v1978, 4294901760
        %1980 = vmatmul.f32.gmra.mxu0 %v1979
        %v1981 = vpop.f32.mrf.mxu0
        %v1982 = vadd.f32 0.0, %v1981
        %1983 = vdwg.mxu0
        %1984 = vmatpush.msra.mxu0 0.0
        %1985 = vmatpush.msra.mxu0 0.0
        %1986 = vmatpush.msra.mxu0 0.0
        %1987 = vmatpush.msra.mxu0 0.0
        %1988 = vmatpush.msra.mxu0 0.0
        %1989 = vmatpush.msra.mxu0 0.0
        %1990 = vmatpush.msra.mxu0 0.0
        %1991 = vmatpush.msra.mxu0 0.0
        %1992 = vmatpush.msra.mxu0 0.0
        %1993 = vmatpush.msra.mxu0 0.0
        %1994 = vmatpush.msra.mxu0 0.0
        %1995 = vmatpush.msra.mxu0 0.0
        %1996 = vmatpush.msra.mxu0 0.0
        %1997 = vmatpush.msra.mxu0 0.0
        %v1998 = vand.u32 %v1607, 4294901760
        %v1999 = vsub.f32 %v1607, %v1998
        %v2000 = vand.u32 %v1999, 4294901760
        %v2001 = vsub.f32 %v1999, %v2000
        %v2002 = vand.u32 %v2001, 4294901760
        %2003 = vmatpush.msra.mxu0 %v2002
        %v2004 = vand.u32 %v1603, 4294901760
        %v2005 = vsub.f32 %v1603, %v2004
        %v2006 = vand.u32 %v2005, 4294901760
        %v2007 = vsub.f32 %v2005, %v2006
        %v2008 = vand.u32 %v2007, 4294901760
        %2009 = vmatpush.msra.mxu0 %v2008
        %v2010 = vand.u32 %v1754, 4294901760
        %2011 = vmatmul.f32.gmra.mxu0 %v2010
        %v2012 = vpop.f32.mrf.mxu0
        %v2013 = vadd.f32 %v1974, %v2012
        %v2014 = vand.u32 %v1757, 4294901760
        %2015 = vmatmul.f32.gmra.mxu0 %v2014
        %v2016 = vpop.f32.mrf.mxu0
        %v2017 = vadd.f32 %v1982, %v2016
        %2018 = vdwg.mxu0
        %2019 = vmatpush.msra.mxu0 0.0
        %2020 = vmatpush.msra.mxu0 0.0
        %2021 = vmatpush.msra.mxu0 0.0
        %2022 = vmatpush.msra.mxu0 0.0
        %2023 = vmatpush.msra.mxu0 0.0
        %2024 = vmatpush.msra.mxu0 0.0
        %2025 = vmatpush.msra.mxu0 0.0
        %2026 = vmatpush.msra.mxu0 0.0
        %2027 = vmatpush.msra.mxu0 0.0
        %2028 = vmatpush.msra.mxu0 0.0
        %2029 = vmatpush.msra.mxu0 0.0
        %2030 = vmatpush.msra.mxu0 0.0
        %2031 = vmatpush.msra.mxu0 0.0
        %2032 = vmatpush.msra.mxu0 0.0
        %v2033 = vand.u32 %v1607, 4294901760
        %v2034 = vsub.f32 %v1607, %v2033
        %2035 = vmatpush.msra.mxu0 %v2034
        %v2036 = vand.u32 %v1603, 4294901760
        %v2037 = vsub.f32 %v1603, %v2036
        %2038 = vmatpush.msra.mxu0 %v2037
        %v2039 = vand.u32 %v1754, 4294901760
        %v2040 = vsub.f32 %v1754, %v2039
        %2041 = vmatmul.f32.gmra.mxu0 %v2040
        %v2042 = vpop.f32.mrf.mxu0
        %v2043 = vadd.f32 %v2013, %v2042
        %v2044 = vand.u32 %v1757, 4294901760
        %v2045 = vsub.f32 %v1757, %v2044
        %2046 = vmatmul.f32.gmra.mxu0 %v2045
        %v2047 = vpop.f32.mrf.mxu0
        %v2048 = vadd.f32 %v2017, %v2047
        %2049 = vdwg.mxu0
        %2050 = vmatpush.msra.mxu0 0.0
        %2051 = vmatpush.msra.mxu0 0.0
        %2052 = vmatpush.msra.mxu0 0.0
        %2053 = vmatpush.msra.mxu0 0.0
        %2054 = vmatpush.msra.mxu0 0.0
        %2055 = vmatpush.msra.mxu0 0.0
        %2056 = vmatpush.msra.mxu0 0.0
        %2057 = vmatpush.msra.mxu0 0.0
        %2058 = vmatpush.msra.mxu0 0.0
        %2059 = vmatpush.msra.mxu0 0.0
        %2060 = vmatpush.msra.mxu0 0.0
        %2061 = vmatpush.msra.mxu0 0.0
        %2062 = vmatpush.msra.mxu0 0.0
        %2063 = vmatpush.msra.mxu0 0.0
        %v2064 = vand.u32 %v1607, 4294901760
        %2065 = vmatpush.msra.mxu0 %v2064
        %v2066 = vand.u32 %v1603, 4294901760
        %2067 = vmatpush.msra.mxu0 %v2066
        %v2068 = vand.u32 %v1754, 4294901760
        %v2069 = vsub.f32 %v1754, %v2068
        %v2070 = vand.u32 %v2069, 4294901760
        %2071 = vmatmul.f32.gmra.mxu0 %v2070
        %v2072 = vpop.f32.mrf.mxu0
        %v2073 = vadd.f32 %v2043, %v2072
        %v2074 = vand.u32 %v1757, 4294901760
        %v2075 = vsub.f32 %v1757, %v2074
        %v2076 = vand.u32 %v2075, 4294901760
        %2077 = vmatmul.f32.gmra.mxu0 %v2076
        %v2078 = vpop.f32.mrf.mxu0
        %v2079 = vadd.f32 %v2048, %v2078
        %2080 = vdwg.mxu0
        %2081 = vmatpush.msra.mxu0 0.0
        %2082 = vmatpush.msra.mxu0 0.0
        %2083 = vmatpush.msra.mxu0 0.0
        %2084 = vmatpush.msra.mxu0 0.0
        %2085 = vmatpush.msra.mxu0 0.0
        %2086 = vmatpush.msra.mxu0 0.0
        %2087 = vmatpush.msra.mxu0 0.0
        %2088 = vmatpush.msra.mxu0 0.0
        %2089 = vmatpush.msra.mxu0 0.0
        %2090 = vmatpush.msra.mxu0 0.0
        %2091 = vmatpush.msra.mxu0 0.0
        %2092 = vmatpush.msra.mxu0 0.0
        %2093 = vmatpush.msra.mxu0 0.0
        %2094 = vmatpush.msra.mxu0 0.0
        %v2095 = vand.u32 %v1607, 4294901760
        %v2096 = vsub.f32 %v1607, %v2095
        %v2097 = vand.u32 %v2096, 4294901760
        %2098 = vmatpush.msra.mxu0 %v2097
        %v2099 = vand.u32 %v1603, 4294901760
        %v2100 = vsub.f32 %v1603, %v2099
        %v2101 = vand.u32 %v2100, 4294901760
        %2102 = vmatpush.msra.mxu0 %v2101
        %v2103 = vand.u32 %v1754, 4294901760
        %2104 = vmatmul.f32.gmra.mxu0 %v2103
        %v2105 = vpop.f32.mrf.mxu0
        %v2106 = vadd.f32 %v2073, %v2105
        %v2107 = vand.u32 %v1757, 4294901760
        %2108 = vmatmul.f32.gmra.mxu0 %v2107
        %v2109 = vpop.f32.mrf.mxu0
        %v2110 = vadd.f32 %v2079, %v2109
        %2111 = vdwg.mxu0
        %2112 = vmatpush.msra.mxu0 0.0
        %2113 = vmatpush.msra.mxu0 0.0
        %2114 = vmatpush.msra.mxu0 0.0
        %2115 = vmatpush.msra.mxu0 0.0
        %2116 = vmatpush.msra.mxu0 0.0
        %2117 = vmatpush.msra.mxu0 0.0
        %2118 = vmatpush.msra.mxu0 0.0
        %2119 = vmatpush.msra.mxu0 0.0
        %2120 = vmatpush.msra.mxu0 0.0
        %2121 = vmatpush.msra.mxu0 0.0
        %2122 = vmatpush.msra.mxu0 0.0
        %2123 = vmatpush.msra.mxu0 0.0
        %2124 = vmatpush.msra.mxu0 0.0
        %2125 = vmatpush.msra.mxu0 0.0
        %v2126 = vand.u32 %v1607, 4294901760
        %2127 = vmatpush.msra.mxu0 %v2126
        %v2128 = vand.u32 %v1603, 4294901760
        %2129 = vmatpush.msra.mxu0 %v2128
        %v2130 = vand.u32 %v1754, 4294901760
        %2131 = vmatmul.f32.gmra.mxu0 %v2130
        %v2132 = vpop.f32.mrf.mxu0
        %v2133 = vadd.f32 %v2106, %v2132
        %v2134 = vand.u32 %v1757, 4294901760
        %2135 = vmatmul.f32.gmra.mxu0 %v2134
        %v2136 = vpop.f32.mrf.mxu0
        %v2137 = vadd.f32 %v2110, %v2136
        %2138 = vdwg.mxu0
        %2139 = vmatpush.msra.mxu0 0.0
        %2140 = vmatpush.msra.mxu0 0.0
        %2141 = vmatpush.msra.mxu0 0.0
        %2142 = vmatpush.msra.mxu0 0.0
        %2143 = vmatpush.msra.mxu0 0.0
        %2144 = vmatpush.msra.mxu0 0.0
        %2145 = vmatpush.msra.mxu0 0.0
        %2146 = vmatpush.msra.mxu0 0.0
        %2147 = vmatpush.msra.mxu0 0.0
        %2148 = vmatpush.msra.mxu0 0.0
        %2149 = vmatpush.msra.mxu0 0.0
        %2150 = vmatpush.msra.mxu0 0.0
        %2151 = vmatpush.msra.mxu0 0.0
        %2152 = vmatpush.msra.mxu0 0.0
        %v2153 = vand.u32 %v1615, 4294901760
        %2154 = vmatpush.msra.mxu0 %v2153
        %v2155 = vand.u32 %v1611, 4294901760
        %2156 = vmatpush.msra.mxu0 %v2155
        %v2157 = vand.u32 %v1754, 4294901760
        %v2158 = vsub.f32 %v1754, %v2157
        %v2159 = vand.u32 %v2158, 4294901760
        %v2160 = vsub.f32 %v2158, %v2159
        %v2161 = vand.u32 %v2160, 4294901760
        %2162 = vmatmul.f32.gmra.mxu0 %v2161
        %v2163 = vpop.f32.mrf.mxu0
        %v2164 = vadd.f32 0.0, %v2163
        %v2165 = vand.u32 %v1757, 4294901760
        %v2166 = vsub.f32 %v1757, %v2165
        %v2167 = vand.u32 %v2166, 4294901760
        %v2168 = vsub.f32 %v2166, %v2167
        %v2169 = vand.u32 %v2168, 4294901760
        %2170 = vmatmul.f32.gmra.mxu0 %v2169
        %v2171 = vpop.f32.mrf.mxu0
        %v2172 = vadd.f32 0.0, %v2171
        %2173 = vdwg.mxu0
        %2174 = vmatpush.msra.mxu0 0.0
        %2175 = vmatpush.msra.mxu0 0.0
        %2176 = vmatpush.msra.mxu0 0.0
        %2177 = vmatpush.msra.mxu0 0.0
        %2178 = vmatpush.msra.mxu0 0.0
        %2179 = vmatpush.msra.mxu0 0.0
        %2180 = vmatpush.msra.mxu0 0.0
        %2181 = vmatpush.msra.mxu0 0.0
        %2182 = vmatpush.msra.mxu0 0.0
        %2183 = vmatpush.msra.mxu0 0.0
        %2184 = vmatpush.msra.mxu0 0.0
        %2185 = vmatpush.msra.mxu0 0.0
        %2186 = vmatpush.msra.mxu0 0.0
        %2187 = vmatpush.msra.mxu0 0.0
        %v2188 = vand.u32 %v1615, 4294901760
        %v2189 = vsub.f32 %v1615, %v2188
        %v2190 = vand.u32 %v2189, 4294901760
        %v2191 = vsub.f32 %v2189, %v2190
        %v2192 = vand.u32 %v2191, 4294901760
        %2193 = vmatpush.msra.mxu0 %v2192
        %v2194 = vand.u32 %v1611, 4294901760
        %v2195 = vsub.f32 %v1611, %v2194
        %v2196 = vand.u32 %v2195, 4294901760
        %v2197 = vsub.f32 %v2195, %v2196
        %v2198 = vand.u32 %v2197, 4294901760
        %2199 = vmatpush.msra.mxu0 %v2198
        %v2200 = vand.u32 %v1754, 4294901760
        %2201 = vmatmul.f32.gmra.mxu0 %v2200
        %v2202 = vpop.f32.mrf.mxu0
        %v2203 = vadd.f32 %v2164, %v2202
        %v2204 = vand.u32 %v1757, 4294901760
        %2205 = vmatmul.f32.gmra.mxu0 %v2204
        %v2206 = vpop.f32.mrf.mxu0
        %v2207 = vadd.f32 %v2172, %v2206
        %2208 = vdwg.mxu0
        %2209 = vmatpush.msra.mxu0 0.0
        %2210 = vmatpush.msra.mxu0 0.0
        %2211 = vmatpush.msra.mxu0 0.0
        %2212 = vmatpush.msra.mxu0 0.0
        %2213 = vmatpush.msra.mxu0 0.0
        %2214 = vmatpush.msra.mxu0 0.0
        %2215 = vmatpush.msra.mxu0 0.0
        %2216 = vmatpush.msra.mxu0 0.0
        %2217 = vmatpush.msra.mxu0 0.0
        %2218 = vmatpush.msra.mxu0 0.0
        %2219 = vmatpush.msra.mxu0 0.0
        %2220 = vmatpush.msra.mxu0 0.0
        %2221 = vmatpush.msra.mxu0 0.0
        %2222 = vmatpush.msra.mxu0 0.0
        %v2223 = vand.u32 %v1615, 4294901760
        %v2224 = vsub.f32 %v1615, %v2223
        %2225 = vmatpush.msra.mxu0 %v2224
        %v2226 = vand.u32 %v1611, 4294901760
        %v2227 = vsub.f32 %v1611, %v2226
        %2228 = vmatpush.msra.mxu0 %v2227
        %v2229 = vand.u32 %v1754, 4294901760
        %v2230 = vsub.f32 %v1754, %v2229
        %2231 = vmatmul.f32.gmra.mxu0 %v2230
        %v2232 = vpop.f32.mrf.mxu0
        %v2233 = vadd.f32 %v2203, %v2232
        %v2234 = vand.u32 %v1757, 4294901760
        %v2235 = vsub.f32 %v1757, %v2234
        %2236 = vmatmul.f32.gmra.mxu0 %v2235
        %v2237 = vpop.f32.mrf.mxu0
        %v2238 = vadd.f32 %v2207, %v2237
        %2239 = vdwg.mxu0
        %2240 = vmatpush.msra.mxu0 0.0
        %2241 = vmatpush.msra.mxu0 0.0
        %2242 = vmatpush.msra.mxu0 0.0
        %2243 = vmatpush.msra.mxu0 0.0
        %2244 = vmatpush.msra.mxu0 0.0
        %2245 = vmatpush.msra.mxu0 0.0
        %2246 = vmatpush.msra.mxu0 0.0
        %2247 = vmatpush.msra.mxu0 0.0
        %2248 = vmatpush.msra.mxu0 0.0
        %2249 = vmatpush.msra.mxu0 0.0
        %2250 = vmatpush.msra.mxu0 0.0
        %2251 = vmatpush.msra.mxu0 0.0
        %2252 = vmatpush.msra.mxu0 0.0
        %2253 = vmatpush.msra.mxu0 0.0
        %v2254 = vand.u32 %v1615, 4294901760
        %2255 = vmatpush.msra.mxu0 %v2254
        %v2256 = vand.u32 %v1611, 4294901760
        %2257 = vmatpush.msra.mxu0 %v2256
        %v2258 = vand.u32 %v1754, 4294901760
        %v2259 = vsub.f32 %v1754, %v2258
        %v2260 = vand.u32 %v2259, 4294901760
        %2261 = vmatmul.f32.gmra.mxu0 %v2260
        %v2262 = vpop.f32.mrf.mxu0
        %v2263 = vadd.f32 %v2233, %v2262
        %v2264 = vand.u32 %v1757, 4294901760
        %v2265 = vsub.f32 %v1757, %v2264
        %v2266 = vand.u32 %v2265, 4294901760
        %2267 = vmatmul.f32.gmra.mxu0 %v2266
        %v2268 = vpop.f32.mrf.mxu0
        %v2269 = vadd.f32 %v2238, %v2268
        %2270 = vdwg.mxu0
        %2271 = vmatpush.msra.mxu0 0.0
        %2272 = vmatpush.msra.mxu0 0.0
        %2273 = vmatpush.msra.mxu0 0.0
        %2274 = vmatpush.msra.mxu0 0.0
        %2275 = vmatpush.msra.mxu0 0.0
        %2276 = vmatpush.msra.mxu0 0.0
        %2277 = vmatpush.msra.mxu0 0.0
        %2278 = vmatpush.msra.mxu0 0.0
        %2279 = vmatpush.msra.mxu0 0.0
        %2280 = vmatpush.msra.mxu0 0.0
        %2281 = vmatpush.msra.mxu0 0.0
        %2282 = vmatpush.msra.mxu0 0.0
        %2283 = vmatpush.msra.mxu0 0.0
        %2284 = vmatpush.msra.mxu0 0.0
        %v2285 = vand.u32 %v1615, 4294901760
        %v2286 = vsub.f32 %v1615, %v2285
        %v2287 = vand.u32 %v2286, 4294901760
        %2288 = vmatpush.msra.mxu0 %v2287
        %v2289 = vand.u32 %v1611, 4294901760
        %v2290 = vsub.f32 %v1611, %v2289
        %v2291 = vand.u32 %v2290, 4294901760
        %2292 = vmatpush.msra.mxu0 %v2291
        %v2293 = vand.u32 %v1754, 4294901760
        %2294 = vmatmul.f32.gmra.mxu0 %v2293
        %v2295 = vpop.f32.mrf.mxu0
        %v2296 = vadd.f32 %v2263, %v2295
        %v2297 = vand.u32 %v1757, 4294901760
        %2298 = vmatmul.f32.gmra.mxu0 %v2297
        %v2299 = vpop.f32.mrf.mxu0
        %v2300 = vadd.f32 %v2269, %v2299
        %2301 = vdwg.mxu0
        %2302 = vmatpush.msra.mxu0 0.0
        %2303 = vmatpush.msra.mxu0 0.0
        %2304 = vmatpush.msra.mxu0 0.0
        %2305 = vmatpush.msra.mxu0 0.0
        %2306 = vmatpush.msra.mxu0 0.0
        %2307 = vmatpush.msra.mxu0 0.0
        %2308 = vmatpush.msra.mxu0 0.0
        %2309 = vmatpush.msra.mxu0 0.0
        %2310 = vmatpush.msra.mxu0 0.0
        %2311 = vmatpush.msra.mxu0 0.0
        %2312 = vmatpush.msra.mxu0 0.0
        %2313 = vmatpush.msra.mxu0 0.0
        %2314 = vmatpush.msra.mxu0 0.0
        %2315 = vmatpush.msra.mxu0 0.0
        %v2316 = vand.u32 %v1615, 4294901760
        %2317 = vmatpush.msra.mxu0 %v2316
        %v2318 = vand.u32 %v1611, 4294901760
        %2319 = vmatpush.msra.mxu0 %v2318
        %v2320 = vand.u32 %v1754, 4294901760
        %2321 = vmatmul.f32.gmra.mxu0 %v2320
        %v2322 = vpop.f32.mrf.mxu0
        %v2323 = vadd.f32 %v2296, %v2322
        %v2324 = vand.u32 %v1757, 4294901760
        %2325 = vmatmul.f32.gmra.mxu0 %v2324
        %v2326 = vpop.f32.mrf.mxu0
        %v2327 = vadd.f32 %v2300, %v2326
        %2328 = vdwg.mxu0
        %2329 = vmatpush.msra.mxu0 0.0
        %2330 = vmatpush.msra.mxu0 0.0
        %2331 = vmatpush.msra.mxu0 0.0
        %2332 = vmatpush.msra.mxu0 0.0
        %2333 = vmatpush.msra.mxu0 0.0
        %2334 = vmatpush.msra.mxu0 0.0
        %2335 = vmatpush.msra.mxu0 0.0
        %2336 = vmatpush.msra.mxu0 0.0
        %2337 = vmatpush.msra.mxu0 0.0
        %2338 = vmatpush.msra.mxu0 0.0
        %2339 = vmatpush.msra.mxu0 0.0
        %2340 = vmatpush.msra.mxu0 0.0
        %2341 = vmatpush.msra.mxu0 0.0
        %2342 = vmatpush.msra.mxu0 0.0
        %v2343 = vand.u32 %v1623, 4294901760
        %2344 = vmatpush.msra.mxu0 %v2343
        %v2345 = vand.u32 %v1619, 4294901760
        %2346 = vmatpush.msra.mxu0 %v2345
        %v2347 = vand.u32 %v1754, 4294901760
        %v2348 = vsub.f32 %v1754, %v2347
        %v2349 = vand.u32 %v2348, 4294901760
        %v2350 = vsub.f32 %v2348, %v2349
        %v2351 = vand.u32 %v2350, 4294901760
        %2352 = vmatmul.f32.gmra.mxu0 %v2351
        %v2353 = vpop.f32.mrf.mxu0
        %v2354 = vadd.f32 0.0, %v2353
        %v2355 = vand.u32 %v1757, 4294901760
        %v2356 = vsub.f32 %v1757, %v2355
        %v2357 = vand.u32 %v2356, 4294901760
        %v2358 = vsub.f32 %v2356, %v2357
        %v2359 = vand.u32 %v2358, 4294901760
        %2360 = vmatmul.f32.gmra.mxu0 %v2359
        %v2361 = vpop.f32.mrf.mxu0
        %v2362 = vadd.f32 0.0, %v2361
        %2363 = vdwg.mxu0
        %2364 = vmatpush.msra.mxu0 0.0
        %2365 = vmatpush.msra.mxu0 0.0
        %2366 = vmatpush.msra.mxu0 0.0
        %2367 = vmatpush.msra.mxu0 0.0
        %2368 = vmatpush.msra.mxu0 0.0
        %2369 = vmatpush.msra.mxu0 0.0
        %2370 = vmatpush.msra.mxu0 0.0
        %2371 = vmatpush.msra.mxu0 0.0
        %2372 = vmatpush.msra.mxu0 0.0
        %2373 = vmatpush.msra.mxu0 0.0
        %2374 = vmatpush.msra.mxu0 0.0
        %2375 = vmatpush.msra.mxu0 0.0
        %2376 = vmatpush.msra.mxu0 0.0
        %2377 = vmatpush.msra.mxu0 0.0
        %v2378 = vand.u32 %v1623, 4294901760
        %v2379 = vsub.f32 %v1623, %v2378
        %v2380 = vand.u32 %v2379, 4294901760
        %v2381 = vsub.f32 %v2379, %v2380
        %v2382 = vand.u32 %v2381, 4294901760
        %2383 = vmatpush.msra.mxu0 %v2382
        %v2384 = vand.u32 %v1619, 4294901760
        %v2385 = vsub.f32 %v1619, %v2384
        %v2386 = vand.u32 %v2385, 4294901760
        %v2387 = vsub.f32 %v2385, %v2386
        %v2388 = vand.u32 %v2387, 4294901760
        %2389 = vmatpush.msra.mxu0 %v2388
        %v2390 = vand.u32 %v1754, 4294901760
        %2391 = vmatmul.f32.gmra.mxu0 %v2390
        %v2392 = vpop.f32.mrf.mxu0
        %v2393 = vadd.f32 %v2354, %v2392
        %v2394 = vand.u32 %v1757, 4294901760
        %2395 = vmatmul.f32.gmra.mxu0 %v2394
        %v2396 = vpop.f32.mrf.mxu0
        %v2397 = vadd.f32 %v2362, %v2396
        %2398 = vdwg.mxu0
        %2399 = vmatpush.msra.mxu0 0.0
        %2400 = vmatpush.msra.mxu0 0.0
        %2401 = vmatpush.msra.mxu0 0.0
        %2402 = vmatpush.msra.mxu0 0.0
        %2403 = vmatpush.msra.mxu0 0.0
        %2404 = vmatpush.msra.mxu0 0.0
        %2405 = vmatpush.msra.mxu0 0.0
        %2406 = vmatpush.msra.mxu0 0.0
        %2407 = vmatpush.msra.mxu0 0.0
        %2408 = vmatpush.msra.mxu0 0.0
        %2409 = vmatpush.msra.mxu0 0.0
        %2410 = vmatpush.msra.mxu0 0.0
        %2411 = vmatpush.msra.mxu0 0.0
        %2412 = vmatpush.msra.mxu0 0.0
        %v2413 = vand.u32 %v1623, 4294901760
        %v2414 = vsub.f32 %v1623, %v2413
        %2415 = vmatpush.msra.mxu0 %v2414
        %v2416 = vand.u32 %v1619, 4294901760
        %v2417 = vsub.f32 %v1619, %v2416
        %2418 = vmatpush.msra.mxu0 %v2417
        %v2419 = vand.u32 %v1754, 4294901760
        %v2420 = vsub.f32 %v1754, %v2419
        %2421 = vmatmul.f32.gmra.mxu0 %v2420
        %v2422 = vpop.f32.mrf.mxu0
        %v2423 = vadd.f32 %v2393, %v2422
        %v2424 = vand.u32 %v1757, 4294901760
        %v2425 = vsub.f32 %v1757, %v2424
        %2426 = vmatmul.f32.gmra.mxu0 %v2425
        %v2427 = vpop.f32.mrf.mxu0
        %v2428 = vadd.f32 %v2397, %v2427
        %2429 = vdwg.mxu0
        %2430 = vmatpush.msra.mxu0 0.0
        %2431 = vmatpush.msra.mxu0 0.0
        %2432 = vmatpush.msra.mxu0 0.0
        %2433 = vmatpush.msra.mxu0 0.0
        %2434 = vmatpush.msra.mxu0 0.0
        %2435 = vmatpush.msra.mxu0 0.0
        %2436 = vmatpush.msra.mxu0 0.0
        %2437 = vmatpush.msra.mxu0 0.0
        %2438 = vmatpush.msra.mxu0 0.0
        %2439 = vmatpush.msra.mxu0 0.0
        %2440 = vmatpush.msra.mxu0 0.0
        %2441 = vmatpush.msra.mxu0 0.0
        %2442 = vmatpush.msra.mxu0 0.0
        %2443 = vmatpush.msra.mxu0 0.0
        %v2444 = vand.u32 %v1623, 4294901760
        %2445 = vmatpush.msra.mxu0 %v2444
        %v2446 = vand.u32 %v1619, 4294901760
        %2447 = vmatpush.msra.mxu0 %v2446
        %v2448 = vand.u32 %v1754, 4294901760
        %v2449 = vsub.f32 %v1754, %v2448
        %v2450 = vand.u32 %v2449, 4294901760
        %2451 = vmatmul.f32.gmra.mxu0 %v2450
        %v2452 = vpop.f32.mrf.mxu0
        %v2453 = vadd.f32 %v2423, %v2452
        %v2454 = vand.u32 %v1757, 4294901760
        %v2455 = vsub.f32 %v1757, %v2454
        %v2456 = vand.u32 %v2455, 4294901760
        %2457 = vmatmul.f32.gmra.mxu0 %v2456
        %v2458 = vpop.f32.mrf.mxu0
        %v2459 = vadd.f32 %v2428, %v2458
        %2460 = vdwg.mxu0
        %2461 = vmatpush.msra.mxu0 0.0
        %2462 = vmatpush.msra.mxu0 0.0
        %2463 = vmatpush.msra.mxu0 0.0
        %2464 = vmatpush.msra.mxu0 0.0
        %2465 = vmatpush.msra.mxu0 0.0
        %2466 = vmatpush.msra.mxu0 0.0
        %2467 = vmatpush.msra.mxu0 0.0
        %2468 = vmatpush.msra.mxu0 0.0
        %2469 = vmatpush.msra.mxu0 0.0
        %2470 = vmatpush.msra.mxu0 0.0
        %2471 = vmatpush.msra.mxu0 0.0
        %2472 = vmatpush.msra.mxu0 0.0
        %2473 = vmatpush.msra.mxu0 0.0
        %2474 = vmatpush.msra.mxu0 0.0
        %v2475 = vand.u32 %v1623, 4294901760
        %v2476 = vsub.f32 %v1623, %v2475
        %v2477 = vand.u32 %v2476, 4294901760
        %2478 = vmatpush.msra.mxu0 %v2477
        %v2479 = vand.u32 %v1619, 4294901760
        %v2480 = vsub.f32 %v1619, %v2479
        %v2481 = vand.u32 %v2480, 4294901760
        %2482 = vmatpush.msra.mxu0 %v2481
        %v2483 = vand.u32 %v1754, 4294901760
        %2484 = vmatmul.f32.gmra.mxu0 %v2483
        %v2485 = vpop.f32.mrf.mxu0
        %v2486 = vadd.f32 %v2453, %v2485
        %v2487 = vand.u32 %v1757, 4294901760
        %2488 = vmatmul.f32.gmra.mxu0 %v2487
        %v2489 = vpop.f32.mrf.mxu0
        %v2490 = vadd.f32 %v2459, %v2489
        %2491 = vdwg.mxu0
        %2492 = vmatpush.msra.mxu0 0.0
        %2493 = vmatpush.msra.mxu0 0.0
        %2494 = vmatpush.msra.mxu0 0.0
        %2495 = vmatpush.msra.mxu0 0.0
        %2496 = vmatpush.msra.mxu0 0.0
        %2497 = vmatpush.msra.mxu0 0.0
        %2498 = vmatpush.msra.mxu0 0.0
        %2499 = vmatpush.msra.mxu0 0.0
        %2500 = vmatpush.msra.mxu0 0.0
        %2501 = vmatpush.msra.mxu0 0.0
        %2502 = vmatpush.msra.mxu0 0.0
        %2503 = vmatpush.msra.mxu0 0.0
        %2504 = vmatpush.msra.mxu0 0.0
        %2505 = vmatpush.msra.mxu0 0.0
        %v2506 = vand.u32 %v1623, 4294901760
        %2507 = vmatpush.msra.mxu0 %v2506
        %v2508 = vand.u32 %v1619, 4294901760
        %2509 = vmatpush.msra.mxu0 %v2508
        %v2510 = vand.u32 %v1754, 4294901760
        %2511 = vmatmul.f32.gmra.mxu0 %v2510
        %v2512 = vpop.f32.mrf.mxu0
        %v2513 = vadd.f32 %v2486, %v2512
        %v2514 = vand.u32 %v1757, 4294901760
        %2515 = vmatmul.f32.gmra.mxu0 %v2514
        %v2516 = vpop.f32.mrf.mxu0
        %v2517 = vadd.f32 %v2490, %v2516
        %2518 = vdwg.mxu0
        %2519 = vmatpush.msra.mxu0 0.0
        %2520 = vmatpush.msra.mxu0 0.0
        %2521 = vmatpush.msra.mxu0 0.0
        %2522 = vmatpush.msra.mxu0 0.0
        %2523 = vmatpush.msra.mxu0 0.0
        %2524 = vmatpush.msra.mxu0 0.0
        %2525 = vmatpush.msra.mxu0 0.0
        %2526 = vmatpush.msra.mxu0 0.0
        %2527 = vmatpush.msra.mxu0 0.0
        %2528 = vmatpush.msra.mxu0 0.0
        %2529 = vmatpush.msra.mxu0 0.0
        %2530 = vmatpush.msra.mxu0 0.0
        %2531 = vmatpush.msra.mxu0 0.0
        %2532 = vmatpush.msra.mxu0 0.0
        %v2533 = vand.u32 %v1631, 4294901760
        %2534 = vmatpush.msra.mxu0 %v2533
        %v2535 = vand.u32 %v1627, 4294901760
        %2536 = vmatpush.msra.mxu0 %v2535
        %v2537 = vand.u32 %v1754, 4294901760
        %v2538 = vsub.f32 %v1754, %v2537
        %v2539 = vand.u32 %v2538, 4294901760
        %v2540 = vsub.f32 %v2538, %v2539
        %v2541 = vand.u32 %v2540, 4294901760
        %2542 = vmatmul.f32.gmra.mxu0 %v2541
        %v2543 = vpop.f32.mrf.mxu0
        %v2544 = vadd.f32 0.0, %v2543
        %v2545 = vand.u32 %v1757, 4294901760
        %v2546 = vsub.f32 %v1757, %v2545
        %v2547 = vand.u32 %v2546, 4294901760
        %v2548 = vsub.f32 %v2546, %v2547
        %v2549 = vand.u32 %v2548, 4294901760
        %2550 = vmatmul.f32.gmra.mxu0 %v2549
        %v2551 = vpop.f32.mrf.mxu0
        %v2552 = vadd.f32 0.0, %v2551
        %2553 = vdwg.mxu0
        %2554 = vmatpush.msra.mxu0 0.0
        %2555 = vmatpush.msra.mxu0 0.0
        %2556 = vmatpush.msra.mxu0 0.0
        %2557 = vmatpush.msra.mxu0 0.0
        %2558 = vmatpush.msra.mxu0 0.0
        %2559 = vmatpush.msra.mxu0 0.0
        %2560 = vmatpush.msra.mxu0 0.0
        %2561 = vmatpush.msra.mxu0 0.0
        %2562 = vmatpush.msra.mxu0 0.0
        %2563 = vmatpush.msra.mxu0 0.0
        %2564 = vmatpush.msra.mxu0 0.0
        %2565 = vmatpush.msra.mxu0 0.0
        %2566 = vmatpush.msra.mxu0 0.0
        %2567 = vmatpush.msra.mxu0 0.0
        %v2568 = vand.u32 %v1631, 4294901760
        %v2569 = vsub.f32 %v1631, %v2568
        %v2570 = vand.u32 %v2569, 4294901760
        %v2571 = vsub.f32 %v2569, %v2570
        %v2572 = vand.u32 %v2571, 4294901760
        %2573 = vmatpush.msra.mxu0 %v2572
        %v2574 = vand.u32 %v1627, 4294901760
        %v2575 = vsub.f32 %v1627, %v2574
        %v2576 = vand.u32 %v2575, 4294901760
        %v2577 = vsub.f32 %v2575, %v2576
        %v2578 = vand.u32 %v2577, 4294901760
        %2579 = vmatpush.msra.mxu0 %v2578
        %v2580 = vand.u32 %v1754, 4294901760
        %2581 = vmatmul.f32.gmra.mxu0 %v2580
        %v2582 = vpop.f32.mrf.mxu0
        %v2583 = vadd.f32 %v2544, %v2582
        %v2584 = vand.u32 %v1757, 4294901760
        %2585 = vmatmul.f32.gmra.mxu0 %v2584
        %v2586 = vpop.f32.mrf.mxu0
        %v2587 = vadd.f32 %v2552, %v2586
        %2588 = vdwg.mxu0
        %2589 = vmatpush.msra.mxu0 0.0
        %2590 = vmatpush.msra.mxu0 0.0
        %2591 = vmatpush.msra.mxu0 0.0
        %2592 = vmatpush.msra.mxu0 0.0
        %2593 = vmatpush.msra.mxu0 0.0
        %2594 = vmatpush.msra.mxu0 0.0
        %2595 = vmatpush.msra.mxu0 0.0
        %2596 = vmatpush.msra.mxu0 0.0
        %2597 = vmatpush.msra.mxu0 0.0
        %2598 = vmatpush.msra.mxu0 0.0
        %2599 = vmatpush.msra.mxu0 0.0
        %2600 = vmatpush.msra.mxu0 0.0
        %2601 = vmatpush.msra.mxu0 0.0
        %2602 = vmatpush.msra.mxu0 0.0
        %v2603 = vand.u32 %v1631, 4294901760
        %v2604 = vsub.f32 %v1631, %v2603
        %2605 = vmatpush.msra.mxu0 %v2604
        %v2606 = vand.u32 %v1627, 4294901760
        %v2607 = vsub.f32 %v1627, %v2606
        %2608 = vmatpush.msra.mxu0 %v2607
        %v2609 = vand.u32 %v1754, 4294901760
        %v2610 = vsub.f32 %v1754, %v2609
        %2611 = vmatmul.f32.gmra.mxu0 %v2610
        %v2612 = vpop.f32.mrf.mxu0
        %v2613 = vadd.f32 %v2583, %v2612
        %v2614 = vand.u32 %v1757, 4294901760
        %v2615 = vsub.f32 %v1757, %v2614
        %2616 = vmatmul.f32.gmra.mxu0 %v2615
        %v2617 = vpop.f32.mrf.mxu0
        %v2618 = vadd.f32 %v2587, %v2617
        %2619 = vdwg.mxu0
        %2620 = vmatpush.msra.mxu0 0.0
        %2621 = vmatpush.msra.mxu0 0.0
        %2622 = vmatpush.msra.mxu0 0.0
        %2623 = vmatpush.msra.mxu0 0.0
        %2624 = vmatpush.msra.mxu0 0.0
        %2625 = vmatpush.msra.mxu0 0.0
        %2626 = vmatpush.msra.mxu0 0.0
        %2627 = vmatpush.msra.mxu0 0.0
        %2628 = vmatpush.msra.mxu0 0.0
        %2629 = vmatpush.msra.mxu0 0.0
        %2630 = vmatpush.msra.mxu0 0.0
        %2631 = vmatpush.msra.mxu0 0.0
        %2632 = vmatpush.msra.mxu0 0.0
        %2633 = vmatpush.msra.mxu0 0.0
        %v2634 = vand.u32 %v1631, 4294901760
        %2635 = vmatpush.msra.mxu0 %v2634
        %v2636 = vand.u32 %v1627, 4294901760
        %2637 = vmatpush.msra.mxu0 %v2636
        %v2638 = vand.u32 %v1754, 4294901760
        %v2639 = vsub.f32 %v1754, %v2638
        %v2640 = vand.u32 %v2639, 4294901760
        %2641 = vmatmul.f32.gmra.mxu0 %v2640
        %v2642 = vpop.f32.mrf.mxu0
        %v2643 = vadd.f32 %v2613, %v2642
        %v2644 = vand.u32 %v1757, 4294901760
        %v2645 = vsub.f32 %v1757, %v2644
        %v2646 = vand.u32 %v2645, 4294901760
        %2647 = vmatmul.f32.gmra.mxu0 %v2646
        %v2648 = vpop.f32.mrf.mxu0
        %v2649 = vadd.f32 %v2618, %v2648
        %2650 = vdwg.mxu0
        %2651 = vmatpush.msra.mxu0 0.0
        %2652 = vmatpush.msra.mxu0 0.0
        %2653 = vmatpush.msra.mxu0 0.0
        %2654 = vmatpush.msra.mxu0 0.0
        %2655 = vmatpush.msra.mxu0 0.0
        %2656 = vmatpush.msra.mxu0 0.0
        %2657 = vmatpush.msra.mxu0 0.0
        %2658 = vmatpush.msra.mxu0 0.0
        %2659 = vmatpush.msra.mxu0 0.0
        %2660 = vmatpush.msra.mxu0 0.0
        %2661 = vmatpush.msra.mxu0 0.0
        %2662 = vmatpush.msra.mxu0 0.0
        %2663 = vmatpush.msra.mxu0 0.0
        %2664 = vmatpush.msra.mxu0 0.0
        %v2665 = vand.u32 %v1631, 4294901760
        %v2666 = vsub.f32 %v1631, %v2665
        %v2667 = vand.u32 %v2666, 4294901760
        %2668 = vmatpush.msra.mxu0 %v2667
        %v2669 = vand.u32 %v1627, 4294901760
        %v2670 = vsub.f32 %v1627, %v2669
        %v2671 = vand.u32 %v2670, 4294901760
        %2672 = vmatpush.msra.mxu0 %v2671
        %v2673 = vand.u32 %v1754, 4294901760
        %2674 = vmatmul.f32.gmra.mxu0 %v2673
        %v2675 = vpop.f32.mrf.mxu0
        %v2676 = vadd.f32 %v2643, %v2675
        %v2677 = vand.u32 %v1757, 4294901760
        %2678 = vmatmul.f32.gmra.mxu0 %v2677
        %v2679 = vpop.f32.mrf.mxu0
        %v2680 = vadd.f32 %v2649, %v2679
        %2681 = vdwg.mxu0
        %2682 = vmatpush.msra.mxu0 0.0
        %2683 = vmatpush.msra.mxu0 0.0
        %2684 = vmatpush.msra.mxu0 0.0
        %2685 = vmatpush.msra.mxu0 0.0
        %2686 = vmatpush.msra.mxu0 0.0
        %2687 = vmatpush.msra.mxu0 0.0
        %2688 = vmatpush.msra.mxu0 0.0
        %2689 = vmatpush.msra.mxu0 0.0
        %2690 = vmatpush.msra.mxu0 0.0
        %2691 = vmatpush.msra.mxu0 0.0
        %2692 = vmatpush.msra.mxu0 0.0
        %2693 = vmatpush.msra.mxu0 0.0
        %2694 = vmatpush.msra.mxu0 0.0
        %2695 = vmatpush.msra.mxu0 0.0
        %v2696 = vand.u32 %v1631, 4294901760
        %2697 = vmatpush.msra.mxu0 %v2696
        %v2698 = vand.u32 %v1627, 4294901760
        %2699 = vmatpush.msra.mxu0 %v2698
        %v2700 = vand.u32 %v1754, 4294901760
        %2701 = vmatmul.f32.gmra.mxu0 %v2700
        %v2702 = vpop.f32.mrf.mxu0
        %v2703 = vadd.f32 %v2676, %v2702
        %v2704 = vand.u32 %v1757, 4294901760
        %2705 = vmatmul.f32.gmra.mxu0 %v2704
        %v2706 = vpop.f32.mrf.mxu0
        %v2707 = vadd.f32 %v2680, %v2706
        %2708 = vdwg.mxu0
        %2709 = vmatpush.msra.mxu0 0.0
        %2710 = vmatpush.msra.mxu0 0.0
        %2711 = vmatpush.msra.mxu0 0.0
        %2712 = vmatpush.msra.mxu0 0.0
        %2713 = vmatpush.msra.mxu0 0.0
        %2714 = vmatpush.msra.mxu0 0.0
        %2715 = vmatpush.msra.mxu0 0.0
        %2716 = vmatpush.msra.mxu0 0.0
        %2717 = vmatpush.msra.mxu0 0.0
        %2718 = vmatpush.msra.mxu0 0.0
        %2719 = vmatpush.msra.mxu0 0.0
        %2720 = vmatpush.msra.mxu0 0.0
        %2721 = vmatpush.msra.mxu0 0.0
        %2722 = vmatpush.msra.mxu0 0.0
        %v2723 = vand.u32 %v1639, 4294901760
        %2724 = vmatpush.msra.mxu0 %v2723
        %v2725 = vand.u32 %v1635, 4294901760
        %2726 = vmatpush.msra.mxu0 %v2725
        %v2727 = vand.u32 %v1754, 4294901760
        %v2728 = vsub.f32 %v1754, %v2727
        %v2729 = vand.u32 %v2728, 4294901760
        %v2730 = vsub.f32 %v2728, %v2729
        %v2731 = vand.u32 %v2730, 4294901760
        %2732 = vmatmul.f32.gmra.mxu0 %v2731
        %v2733 = vpop.f32.mrf.mxu0
        %v2734 = vadd.f32 0.0, %v2733
        %v2735 = vand.u32 %v1757, 4294901760
        %v2736 = vsub.f32 %v1757, %v2735
        %v2737 = vand.u32 %v2736, 4294901760
        %v2738 = vsub.f32 %v2736, %v2737
        %v2739 = vand.u32 %v2738, 4294901760
        %2740 = vmatmul.f32.gmra.mxu0 %v2739
        %v2741 = vpop.f32.mrf.mxu0
        %v2742 = vadd.f32 0.0, %v2741
        %2743 = vdwg.mxu0
        %2744 = vmatpush.msra.mxu0 0.0
        %2745 = vmatpush.msra.mxu0 0.0
        %2746 = vmatpush.msra.mxu0 0.0
        %2747 = vmatpush.msra.mxu0 0.0
        %2748 = vmatpush.msra.mxu0 0.0
        %2749 = vmatpush.msra.mxu0 0.0
        %2750 = vmatpush.msra.mxu0 0.0
        %2751 = vmatpush.msra.mxu0 0.0
        %2752 = vmatpush.msra.mxu0 0.0
        %2753 = vmatpush.msra.mxu0 0.0
        %2754 = vmatpush.msra.mxu0 0.0
        %2755 = vmatpush.msra.mxu0 0.0
        %2756 = vmatpush.msra.mxu0 0.0
        %2757 = vmatpush.msra.mxu0 0.0
        %v2758 = vand.u32 %v1639, 4294901760
        %v2759 = vsub.f32 %v1639, %v2758
        %v2760 = vand.u32 %v2759, 4294901760
        %v2761 = vsub.f32 %v2759, %v2760
        %v2762 = vand.u32 %v2761, 4294901760
        %2763 = vmatpush.msra.mxu0 %v2762
        %v2764 = vand.u32 %v1635, 4294901760
        %v2765 = vsub.f32 %v1635, %v2764
        %v2766 = vand.u32 %v2765, 4294901760
        %v2767 = vsub.f32 %v2765, %v2766
        %v2768 = vand.u32 %v2767, 4294901760
        %2769 = vmatpush.msra.mxu0 %v2768
        %v2770 = vand.u32 %v1754, 4294901760
        %2771 = vmatmul.f32.gmra.mxu0 %v2770
        %v2772 = vpop.f32.mrf.mxu0
        %v2773 = vadd.f32 %v2734, %v2772
        %v2774 = vand.u32 %v1757, 4294901760
        %2775 = vmatmul.f32.gmra.mxu0 %v2774
        %v2776 = vpop.f32.mrf.mxu0
        %v2777 = vadd.f32 %v2742, %v2776
        %2778 = vdwg.mxu0
        %2779 = vmatpush.msra.mxu0 0.0
        %2780 = vmatpush.msra.mxu0 0.0
        %2781 = vmatpush.msra.mxu0 0.0
        %2782 = vmatpush.msra.mxu0 0.0
        %2783 = vmatpush.msra.mxu0 0.0
        %2784 = vmatpush.msra.mxu0 0.0
        %2785 = vmatpush.msra.mxu0 0.0
        %2786 = vmatpush.msra.mxu0 0.0
        %2787 = vmatpush.msra.mxu0 0.0
        %2788 = vmatpush.msra.mxu0 0.0
        %2789 = vmatpush.msra.mxu0 0.0
        %2790 = vmatpush.msra.mxu0 0.0
        %2791 = vmatpush.msra.mxu0 0.0
        %2792 = vmatpush.msra.mxu0 0.0
        %v2793 = vand.u32 %v1639, 4294901760
        %v2794 = vsub.f32 %v1639, %v2793
        %2795 = vmatpush.msra.mxu0 %v2794
        %v2796 = vand.u32 %v1635, 4294901760
        %v2797 = vsub.f32 %v1635, %v2796
        %2798 = vmatpush.msra.mxu0 %v2797
        %v2799 = vand.u32 %v1754, 4294901760
        %v2800 = vsub.f32 %v1754, %v2799
        %2801 = vmatmul.f32.gmra.mxu0 %v2800
        %v2802 = vpop.f32.mrf.mxu0
        %v2803 = vadd.f32 %v2773, %v2802
        %v2804 = vand.u32 %v1757, 4294901760
        %v2805 = vsub.f32 %v1757, %v2804
        %2806 = vmatmul.f32.gmra.mxu0 %v2805
        %v2807 = vpop.f32.mrf.mxu0
        %v2808 = vadd.f32 %v2777, %v2807
        %2809 = vdwg.mxu0
        %2810 = vmatpush.msra.mxu0 0.0
        %2811 = vmatpush.msra.mxu0 0.0
        %2812 = vmatpush.msra.mxu0 0.0
        %2813 = vmatpush.msra.mxu0 0.0
        %2814 = vmatpush.msra.mxu0 0.0
        %2815 = vmatpush.msra.mxu0 0.0
        %2816 = vmatpush.msra.mxu0 0.0
        %2817 = vmatpush.msra.mxu0 0.0
        %2818 = vmatpush.msra.mxu0 0.0
        %2819 = vmatpush.msra.mxu0 0.0
        %2820 = vmatpush.msra.mxu0 0.0
        %2821 = vmatpush.msra.mxu0 0.0
        %2822 = vmatpush.msra.mxu0 0.0
        %2823 = vmatpush.msra.mxu0 0.0
        %v2824 = vand.u32 %v1639, 4294901760
        %2825 = vmatpush.msra.mxu0 %v2824
        %v2826 = vand.u32 %v1635, 4294901760
        %2827 = vmatpush.msra.mxu0 %v2826
        %v2828 = vand.u32 %v1754, 4294901760
        %v2829 = vsub.f32 %v1754, %v2828
        %v2830 = vand.u32 %v2829, 4294901760
        %2831 = vmatmul.f32.gmra.mxu0 %v2830
        %v2832 = vpop.f32.mrf.mxu0
        %v2833 = vadd.f32 %v2803, %v2832
        %v2834 = vand.u32 %v1757, 4294901760
        %v2835 = vsub.f32 %v1757, %v2834
        %v2836 = vand.u32 %v2835, 4294901760
        %2837 = vmatmul.f32.gmra.mxu0 %v2836
        %v2838 = vpop.f32.mrf.mxu0
        %v2839 = vadd.f32 %v2808, %v2838
        %2840 = vdwg.mxu0
        %2841 = vmatpush.msra.mxu0 0.0
        %2842 = vmatpush.msra.mxu0 0.0
        %2843 = vmatpush.msra.mxu0 0.0
        %2844 = vmatpush.msra.mxu0 0.0
        %2845 = vmatpush.msra.mxu0 0.0
        %2846 = vmatpush.msra.mxu0 0.0
        %2847 = vmatpush.msra.mxu0 0.0
        %2848 = vmatpush.msra.mxu0 0.0
        %2849 = vmatpush.msra.mxu0 0.0
        %2850 = vmatpush.msra.mxu0 0.0
        %2851 = vmatpush.msra.mxu0 0.0
        %2852 = vmatpush.msra.mxu0 0.0
        %2853 = vmatpush.msra.mxu0 0.0
        %2854 = vmatpush.msra.mxu0 0.0
        %v2855 = vand.u32 %v1639, 4294901760
        %v2856 = vsub.f32 %v1639, %v2855
        %v2857 = vand.u32 %v2856, 4294901760
        %2858 = vmatpush.msra.mxu0 %v2857
        %v2859 = vand.u32 %v1635, 4294901760
        %v2860 = vsub.f32 %v1635, %v2859
        %v2861 = vand.u32 %v2860, 4294901760
        %2862 = vmatpush.msra.mxu0 %v2861
        %v2863 = vand.u32 %v1754, 4294901760
        %2864 = vmatmul.f32.gmra.mxu0 %v2863
        %v2865 = vpop.f32.mrf.mxu0
        %v2866 = vadd.f32 %v2833, %v2865
        %v2867 = vand.u32 %v1757, 4294901760
        %2868 = vmatmul.f32.gmra.mxu0 %v2867
        %v2869 = vpop.f32.mrf.mxu0
        %v2870 = vadd.f32 %v2839, %v2869
        %2871 = vdwg.mxu0
        %2872 = vmatpush.msra.mxu0 0.0
        %2873 = vmatpush.msra.mxu0 0.0
        %2874 = vmatpush.msra.mxu0 0.0
        %2875 = vmatpush.msra.mxu0 0.0
        %2876 = vmatpush.msra.mxu0 0.0
        %2877 = vmatpush.msra.mxu0 0.0
        %2878 = vmatpush.msra.mxu0 0.0
        %2879 = vmatpush.msra.mxu0 0.0
        %2880 = vmatpush.msra.mxu0 0.0
        %2881 = vmatpush.msra.mxu0 0.0
        %2882 = vmatpush.msra.mxu0 0.0
        %2883 = vmatpush.msra.mxu0 0.0
        %2884 = vmatpush.msra.mxu0 0.0
        %2885 = vmatpush.msra.mxu0 0.0
        %v2886 = vand.u32 %v1639, 4294901760
        %2887 = vmatpush.msra.mxu0 %v2886
        %v2888 = vand.u32 %v1635, 4294901760
        %2889 = vmatpush.msra.mxu0 %v2888
        %v2890 = vand.u32 %v1754, 4294901760
        %2891 = vmatmul.f32.gmra.mxu0 %v2890
        %v2892 = vpop.f32.mrf.mxu0
        %v2893 = vadd.f32 %v2866, %v2892
        %v2894 = vand.u32 %v1757, 4294901760
        %2895 = vmatmul.f32.gmra.mxu0 %v2894
        %v2896 = vpop.f32.mrf.mxu0
        %v2897 = vadd.f32 %v2870, %v2896
        %2898 = vdwg.mxu0
        %2899 = vmatpush.msra.mxu0 0.0
        %2900 = vmatpush.msra.mxu0 0.0
        %2901 = vmatpush.msra.mxu0 0.0
        %2902 = vmatpush.msra.mxu0 0.0
        %2903 = vmatpush.msra.mxu0 0.0
        %2904 = vmatpush.msra.mxu0 0.0
        %2905 = vmatpush.msra.mxu0 0.0
        %2906 = vmatpush.msra.mxu0 0.0
        %2907 = vmatpush.msra.mxu0 0.0
        %2908 = vmatpush.msra.mxu0 0.0
        %2909 = vmatpush.msra.mxu0 0.0
        %2910 = vmatpush.msra.mxu0 0.0
        %2911 = vmatpush.msra.mxu0 0.0
        %2912 = vmatpush.msra.mxu0 0.0
        %v2913 = vand.u32 %v1647, 4294901760
        %2914 = vmatpush.msra.mxu0 %v2913
        %v2915 = vand.u32 %v1643, 4294901760
        %2916 = vmatpush.msra.mxu0 %v2915
        %v2917 = vand.u32 %v1754, 4294901760
        %v2918 = vsub.f32 %v1754, %v2917
        %v2919 = vand.u32 %v2918, 4294901760
        %v2920 = vsub.f32 %v2918, %v2919
        %v2921 = vand.u32 %v2920, 4294901760
        %2922 = vmatmul.f32.gmra.mxu0 %v2921
        %v2923 = vpop.f32.mrf.mxu0
        %v2924 = vadd.f32 0.0, %v2923
        %v2925 = vand.u32 %v1757, 4294901760
        %v2926 = vsub.f32 %v1757, %v2925
        %v2927 = vand.u32 %v2926, 4294901760
        %v2928 = vsub.f32 %v2926, %v2927
        %v2929 = vand.u32 %v2928, 4294901760
        %2930 = vmatmul.f32.gmra.mxu0 %v2929
        %v2931 = vpop.f32.mrf.mxu0
        %v2932 = vadd.f32 0.0, %v2931
        %2933 = vdwg.mxu0
        %2934 = vmatpush.msra.mxu0 0.0
        %2935 = vmatpush.msra.mxu0 0.0
        %2936 = vmatpush.msra.mxu0 0.0
        %2937 = vmatpush.msra.mxu0 0.0
        %2938 = vmatpush.msra.mxu0 0.0
        %2939 = vmatpush.msra.mxu0 0.0
        %2940 = vmatpush.msra.mxu0 0.0
        %2941 = vmatpush.msra.mxu0 0.0
        %2942 = vmatpush.msra.mxu0 0.0
        %2943 = vmatpush.msra.mxu0 0.0
        %2944 = vmatpush.msra.mxu0 0.0
        %2945 = vmatpush.msra.mxu0 0.0
        %2946 = vmatpush.msra.mxu0 0.0
        %2947 = vmatpush.msra.mxu0 0.0
        %v2948 = vand.u32 %v1647, 4294901760
        %v2949 = vsub.f32 %v1647, %v2948
        %v2950 = vand.u32 %v2949, 4294901760
        %v2951 = vsub.f32 %v2949, %v2950
        %v2952 = vand.u32 %v2951, 4294901760
        %2953 = vmatpush.msra.mxu0 %v2952
        %v2954 = vand.u32 %v1643, 4294901760
        %v2955 = vsub.f32 %v1643, %v2954
        %v2956 = vand.u32 %v2955, 4294901760
        %v2957 = vsub.f32 %v2955, %v2956
        %v2958 = vand.u32 %v2957, 4294901760
        %2959 = vmatpush.msra.mxu0 %v2958
        %v2960 = vand.u32 %v1754, 4294901760
        %2961 = vmatmul.f32.gmra.mxu0 %v2960
        %v2962 = vpop.f32.mrf.mxu0
        %v2963 = vadd.f32 %v2924, %v2962
        %v2964 = vand.u32 %v1757, 4294901760
        %2965 = vmatmul.f32.gmra.mxu0 %v2964
        %v2966 = vpop.f32.mrf.mxu0
        %v2967 = vadd.f32 %v2932, %v2966
        %2968 = vdwg.mxu0
        %2969 = vmatpush.msra.mxu0 0.0
        %2970 = vmatpush.msra.mxu0 0.0
        %2971 = vmatpush.msra.mxu0 0.0
        %2972 = vmatpush.msra.mxu0 0.0
        %2973 = vmatpush.msra.mxu0 0.0
        %2974 = vmatpush.msra.mxu0 0.0
        %2975 = vmatpush.msra.mxu0 0.0
        %2976 = vmatpush.msra.mxu0 0.0
        %2977 = vmatpush.msra.mxu0 0.0
        %2978 = vmatpush.msra.mxu0 0.0
        %2979 = vmatpush.msra.mxu0 0.0
        %2980 = vmatpush.msra.mxu0 0.0
        %2981 = vmatpush.msra.mxu0 0.0
        %2982 = vmatpush.msra.mxu0 0.0
        %v2983 = vand.u32 %v1647, 4294901760
        %v2984 = vsub.f32 %v1647, %v2983
        %2985 = vmatpush.msra.mxu0 %v2984
        %v2986 = vand.u32 %v1643, 4294901760
        %v2987 = vsub.f32 %v1643, %v2986
        %2988 = vmatpush.msra.mxu0 %v2987
        %v2989 = vand.u32 %v1754, 4294901760
        %v2990 = vsub.f32 %v1754, %v2989
        %2991 = vmatmul.f32.gmra.mxu0 %v2990
        %v2992 = vpop.f32.mrf.mxu0
        %v2993 = vadd.f32 %v2963, %v2992
        %v2994 = vand.u32 %v1757, 4294901760
        %v2995 = vsub.f32 %v1757, %v2994
        %2996 = vmatmul.f32.gmra.mxu0 %v2995
        %v2997 = vpop.f32.mrf.mxu0
        %v2998 = vadd.f32 %v2967, %v2997
        %2999 = vdwg.mxu0
        %3000 = vmatpush.msra.mxu0 0.0
        %3001 = vmatpush.msra.mxu0 0.0
        %3002 = vmatpush.msra.mxu0 0.0
        %3003 = vmatpush.msra.mxu0 0.0
        %3004 = vmatpush.msra.mxu0 0.0
        %3005 = vmatpush.msra.mxu0 0.0
        %3006 = vmatpush.msra.mxu0 0.0
        %3007 = vmatpush.msra.mxu0 0.0
        %3008 = vmatpush.msra.mxu0 0.0
        %3009 = vmatpush.msra.mxu0 0.0
        %3010 = vmatpush.msra.mxu0 0.0
        %3011 = vmatpush.msra.mxu0 0.0
        %3012 = vmatpush.msra.mxu0 0.0
        %3013 = vmatpush.msra.mxu0 0.0
        %v3014 = vand.u32 %v1647, 4294901760
        %3015 = vmatpush.msra.mxu0 %v3014
        %v3016 = vand.u32 %v1643, 4294901760
        %3017 = vmatpush.msra.mxu0 %v3016
        %v3018 = vand.u32 %v1754, 4294901760
        %v3019 = vsub.f32 %v1754, %v3018
        %v3020 = vand.u32 %v3019, 4294901760
        %3021 = vmatmul.f32.gmra.mxu0 %v3020
        %v3022 = vpop.f32.mrf.mxu0
        %v3023 = vadd.f32 %v2993, %v3022
        %v3024 = vand.u32 %v1757, 4294901760
        %v3025 = vsub.f32 %v1757, %v3024
        %v3026 = vand.u32 %v3025, 4294901760
        %3027 = vmatmul.f32.gmra.mxu0 %v3026
        %v3028 = vpop.f32.mrf.mxu0
        %v3029 = vadd.f32 %v2998, %v3028
        %3030 = vdwg.mxu0
        %3031 = vmatpush.msra.mxu0 0.0
        %3032 = vmatpush.msra.mxu0 0.0
        %3033 = vmatpush.msra.mxu0 0.0
        %3034 = vmatpush.msra.mxu0 0.0
        %3035 = vmatpush.msra.mxu0 0.0
        %3036 = vmatpush.msra.mxu0 0.0
        %3037 = vmatpush.msra.mxu0 0.0
        %3038 = vmatpush.msra.mxu0 0.0
        %3039 = vmatpush.msra.mxu0 0.0
        %3040 = vmatpush.msra.mxu0 0.0
        %3041 = vmatpush.msra.mxu0 0.0
        %3042 = vmatpush.msra.mxu0 0.0
        %3043 = vmatpush.msra.mxu0 0.0
        %3044 = vmatpush.msra.mxu0 0.0
        %v3045 = vand.u32 %v1647, 4294901760
        %v3046 = vsub.f32 %v1647, %v3045
        %v3047 = vand.u32 %v3046, 4294901760
        %3048 = vmatpush.msra.mxu0 %v3047
        %v3049 = vand.u32 %v1643, 4294901760
        %v3050 = vsub.f32 %v1643, %v3049
        %v3051 = vand.u32 %v3050, 4294901760
        %3052 = vmatpush.msra.mxu0 %v3051
        %v3053 = vand.u32 %v1754, 4294901760
        %3054 = vmatmul.f32.gmra.mxu0 %v3053
        %v3055 = vpop.f32.mrf.mxu0
        %v3056 = vadd.f32 %v3023, %v3055
        %v3057 = vand.u32 %v1757, 4294901760
        %3058 = vmatmul.f32.gmra.mxu0 %v3057
        %v3059 = vpop.f32.mrf.mxu0
        %v3060 = vadd.f32 %v3029, %v3059
        %3061 = vdwg.mxu0
        %3062 = vmatpush.msra.mxu0 0.0
        %3063 = vmatpush.msra.mxu0 0.0
        %3064 = vmatpush.msra.mxu0 0.0
        %3065 = vmatpush.msra.mxu0 0.0
        %3066 = vmatpush.msra.mxu0 0.0
        %3067 = vmatpush.msra.mxu0 0.0
        %3068 = vmatpush.msra.mxu0 0.0
        %3069 = vmatpush.msra.mxu0 0.0
        %3070 = vmatpush.msra.mxu0 0.0
        %3071 = vmatpush.msra.mxu0 0.0
        %3072 = vmatpush.msra.mxu0 0.0
        %3073 = vmatpush.msra.mxu0 0.0
        %3074 = vmatpush.msra.mxu0 0.0
        %3075 = vmatpush.msra.mxu0 0.0
        %v3076 = vand.u32 %v1647, 4294901760
        %3077 = vmatpush.msra.mxu0 %v3076
        %v3078 = vand.u32 %v1643, 4294901760
        %3079 = vmatpush.msra.mxu0 %v3078
        %v3080 = vand.u32 %v1754, 4294901760
        %3081 = vmatmul.f32.gmra.mxu0 %v3080
        %v3082 = vpop.f32.mrf.mxu0
        %v3083 = vadd.f32 %v3056, %v3082
        %v3084 = vand.u32 %v1757, 4294901760
        %3085 = vmatmul.f32.gmra.mxu0 %v3084
        %v3086 = vpop.f32.mrf.mxu0
        %v3087 = vadd.f32 %v3060, %v3086
        %3088 = vdwg.mxu0
        %3089 = vmatpush.msra.mxu0 0.0
        %3090 = vmatpush.msra.mxu0 0.0
        %3091 = vmatpush.msra.mxu0 0.0
        %3092 = vmatpush.msra.mxu0 0.0
        %3093 = vmatpush.msra.mxu0 0.0
        %3094 = vmatpush.msra.mxu0 0.0
        %3095 = vmatpush.msra.mxu0 0.0
        %3096 = vmatpush.msra.mxu0 0.0
        %3097 = vmatpush.msra.mxu0 0.0
        %3098 = vmatpush.msra.mxu0 0.0
        %3099 = vmatpush.msra.mxu0 0.0
        %3100 = vmatpush.msra.mxu0 0.0
        %3101 = vmatpush.msra.mxu0 0.0
        %3102 = vmatpush.msra.mxu0 0.0
        %v3103 = vand.u32 %v1655, 4294901760
        %3104 = vmatpush.msra.mxu0 %v3103
        %v3105 = vand.u32 %v1651, 4294901760
        %3106 = vmatpush.msra.mxu0 %v3105
        %v3107 = vand.u32 %v1754, 4294901760
        %v3108 = vsub.f32 %v1754, %v3107
        %v3109 = vand.u32 %v3108, 4294901760
        %v3110 = vsub.f32 %v3108, %v3109
        %v3111 = vand.u32 %v3110, 4294901760
        %3112 = vmatmul.f32.gmra.mxu0 %v3111
        %v3113 = vpop.f32.mrf.mxu0
        %v3114 = vadd.f32 0.0, %v3113
        %v3115 = vand.u32 %v1757, 4294901760
        %v3116 = vsub.f32 %v1757, %v3115
        %v3117 = vand.u32 %v3116, 4294901760
        %v3118 = vsub.f32 %v3116, %v3117
        %v3119 = vand.u32 %v3118, 4294901760
        %3120 = vmatmul.f32.gmra.mxu0 %v3119
        %v3121 = vpop.f32.mrf.mxu0
        %v3122 = vadd.f32 0.0, %v3121
        %3123 = vdwg.mxu0
        %3124 = vmatpush.msra.mxu0 0.0
        %3125 = vmatpush.msra.mxu0 0.0
        %3126 = vmatpush.msra.mxu0 0.0
        %3127 = vmatpush.msra.mxu0 0.0
        %3128 = vmatpush.msra.mxu0 0.0
        %3129 = vmatpush.msra.mxu0 0.0
        %3130 = vmatpush.msra.mxu0 0.0
        %3131 = vmatpush.msra.mxu0 0.0
        %3132 = vmatpush.msra.mxu0 0.0
        %3133 = vmatpush.msra.mxu0 0.0
        %3134 = vmatpush.msra.mxu0 0.0
        %3135 = vmatpush.msra.mxu0 0.0
        %3136 = vmatpush.msra.mxu0 0.0
        %3137 = vmatpush.msra.mxu0 0.0
        %v3138 = vand.u32 %v1655, 4294901760
        %v3139 = vsub.f32 %v1655, %v3138
        %v3140 = vand.u32 %v3139, 4294901760
        %v3141 = vsub.f32 %v3139, %v3140
        %v3142 = vand.u32 %v3141, 4294901760
        %3143 = vmatpush.msra.mxu0 %v3142
        %v3144 = vand.u32 %v1651, 4294901760
        %v3145 = vsub.f32 %v1651, %v3144
        %v3146 = vand.u32 %v3145, 4294901760
        %v3147 = vsub.f32 %v3145, %v3146
        %v3148 = vand.u32 %v3147, 4294901760
        %3149 = vmatpush.msra.mxu0 %v3148
        %v3150 = vand.u32 %v1754, 4294901760
        %3151 = vmatmul.f32.gmra.mxu0 %v3150
        %v3152 = vpop.f32.mrf.mxu0
        %v3153 = vadd.f32 %v3114, %v3152
        %v3154 = vand.u32 %v1757, 4294901760
        %3155 = vmatmul.f32.gmra.mxu0 %v3154
        %v3156 = vpop.f32.mrf.mxu0
        %v3157 = vadd.f32 %v3122, %v3156
        %3158 = vdwg.mxu0
        %3159 = vmatpush.msra.mxu0 0.0
        %3160 = vmatpush.msra.mxu0 0.0
        %3161 = vmatpush.msra.mxu0 0.0
        %3162 = vmatpush.msra.mxu0 0.0
        %3163 = vmatpush.msra.mxu0 0.0
        %3164 = vmatpush.msra.mxu0 0.0
        %3165 = vmatpush.msra.mxu0 0.0
        %3166 = vmatpush.msra.mxu0 0.0
        %3167 = vmatpush.msra.mxu0 0.0
        %3168 = vmatpush.msra.mxu0 0.0
        %3169 = vmatpush.msra.mxu0 0.0
        %3170 = vmatpush.msra.mxu0 0.0
        %3171 = vmatpush.msra.mxu0 0.0
        %3172 = vmatpush.msra.mxu0 0.0
        %v3173 = vand.u32 %v1655, 4294901760
        %v3174 = vsub.f32 %v1655, %v3173
        %3175 = vmatpush.msra.mxu0 %v3174
        %v3176 = vand.u32 %v1651, 4294901760
        %v3177 = vsub.f32 %v1651, %v3176
        %3178 = vmatpush.msra.mxu0 %v3177
        %v3179 = vand.u32 %v1754, 4294901760
        %v3180 = vsub.f32 %v1754, %v3179
        %3181 = vmatmul.f32.gmra.mxu0 %v3180
        %v3182 = vpop.f32.mrf.mxu0
        %v3183 = vadd.f32 %v3153, %v3182
        %v3184 = vand.u32 %v1757, 4294901760
        %v3185 = vsub.f32 %v1757, %v3184
        %3186 = vmatmul.f32.gmra.mxu0 %v3185
        %v3187 = vpop.f32.mrf.mxu0
        %v3188 = vadd.f32 %v3157, %v3187
        %3189 = vdwg.mxu0
        %3190 = vmatpush.msra.mxu0 0.0
        %3191 = vmatpush.msra.mxu0 0.0
        %3192 = vmatpush.msra.mxu0 0.0
        %3193 = vmatpush.msra.mxu0 0.0
        %3194 = vmatpush.msra.mxu0 0.0
        %3195 = vmatpush.msra.mxu0 0.0
        %3196 = vmatpush.msra.mxu0 0.0
        %3197 = vmatpush.msra.mxu0 0.0
        %3198 = vmatpush.msra.mxu0 0.0
        %3199 = vmatpush.msra.mxu0 0.0
        %3200 = vmatpush.msra.mxu0 0.0
        %3201 = vmatpush.msra.mxu0 0.0
        %3202 = vmatpush.msra.mxu0 0.0
        %3203 = vmatpush.msra.mxu0 0.0
        %v3204 = vand.u32 %v1655, 4294901760
        %3205 = vmatpush.msra.mxu0 %v3204
        %v3206 = vand.u32 %v1651, 4294901760
        %3207 = vmatpush.msra.mxu0 %v3206
        %v3208 = vand.u32 %v1754, 4294901760
        %v3209 = vsub.f32 %v1754, %v3208
        %v3210 = vand.u32 %v3209, 4294901760
        %3211 = vmatmul.f32.gmra.mxu0 %v3210
        %v3212 = vpop.f32.mrf.mxu0
        %v3213 = vadd.f32 %v3183, %v3212
        %v3214 = vand.u32 %v1757, 4294901760
        %v3215 = vsub.f32 %v1757, %v3214
        %v3216 = vand.u32 %v3215, 4294901760
        %3217 = vmatmul.f32.gmra.mxu0 %v3216
        %v3218 = vpop.f32.mrf.mxu0
        %v3219 = vadd.f32 %v3188, %v3218
        %3220 = vdwg.mxu0
        %3221 = vmatpush.msra.mxu0 0.0
        %3222 = vmatpush.msra.mxu0 0.0
        %3223 = vmatpush.msra.mxu0 0.0
        %3224 = vmatpush.msra.mxu0 0.0
        %3225 = vmatpush.msra.mxu0 0.0
        %3226 = vmatpush.msra.mxu0 0.0
        %3227 = vmatpush.msra.mxu0 0.0
        %3228 = vmatpush.msra.mxu0 0.0
        %3229 = vmatpush.msra.mxu0 0.0
        %3230 = vmatpush.msra.mxu0 0.0
        %3231 = vmatpush.msra.mxu0 0.0
        %3232 = vmatpush.msra.mxu0 0.0
        %3233 = vmatpush.msra.mxu0 0.0
        %3234 = vmatpush.msra.mxu0 0.0
        %v3235 = vand.u32 %v1655, 4294901760
        %v3236 = vsub.f32 %v1655, %v3235
        %v3237 = vand.u32 %v3236, 4294901760
        %3238 = vmatpush.msra.mxu0 %v3237
        %v3239 = vand.u32 %v1651, 4294901760
        %v3240 = vsub.f32 %v1651, %v3239
        %v3241 = vand.u32 %v3240, 4294901760
        %3242 = vmatpush.msra.mxu0 %v3241
        %v3243 = vand.u32 %v1754, 4294901760
        %3244 = vmatmul.f32.gmra.mxu0 %v3243
        %v3245 = vpop.f32.mrf.mxu0
        %v3246 = vadd.f32 %v3213, %v3245
        %v3247 = vand.u32 %v1757, 4294901760
        %3248 = vmatmul.f32.gmra.mxu0 %v3247
        %v3249 = vpop.f32.mrf.mxu0
        %v3250 = vadd.f32 %v3219, %v3249
        %3251 = vdwg.mxu0
        %3252 = vmatpush.msra.mxu0 0.0
        %3253 = vmatpush.msra.mxu0 0.0
        %3254 = vmatpush.msra.mxu0 0.0
        %3255 = vmatpush.msra.mxu0 0.0
        %3256 = vmatpush.msra.mxu0 0.0
        %3257 = vmatpush.msra.mxu0 0.0
        %3258 = vmatpush.msra.mxu0 0.0
        %3259 = vmatpush.msra.mxu0 0.0
        %3260 = vmatpush.msra.mxu0 0.0
        %3261 = vmatpush.msra.mxu0 0.0
        %3262 = vmatpush.msra.mxu0 0.0
        %3263 = vmatpush.msra.mxu0 0.0
        %3264 = vmatpush.msra.mxu0 0.0
        %3265 = vmatpush.msra.mxu0 0.0
        %v3266 = vand.u32 %v1655, 4294901760
        %3267 = vmatpush.msra.mxu0 %v3266
        %v3268 = vand.u32 %v1651, 4294901760
        %3269 = vmatpush.msra.mxu0 %v3268
        %v3270 = vand.u32 %v1754, 4294901760
        %3271 = vmatmul.f32.gmra.mxu0 %v3270
        %v3272 = vpop.f32.mrf.mxu0
        %v3273 = vadd.f32 %v3246, %v3272
        %v3274 = vand.u32 %v1757, 4294901760
        %3275 = vmatmul.f32.gmra.mxu0 %v3274
        %v3276 = vpop.f32.mrf.mxu0
        %v3277 = vadd.f32 %v3250, %v3276
        %3278 = vdwg.mxu0
        %3279 = vmatpush.msra.mxu0 0.0
        %3280 = vmatpush.msra.mxu0 0.0
        %3281 = vmatpush.msra.mxu0 0.0
        %3282 = vmatpush.msra.mxu0 0.0
        %3283 = vmatpush.msra.mxu0 0.0
        %3284 = vmatpush.msra.mxu0 0.0
        %3285 = vmatpush.msra.mxu0 0.0
        %3286 = vmatpush.msra.mxu0 0.0
        %3287 = vmatpush.msra.mxu0 0.0
        %3288 = vmatpush.msra.mxu0 0.0
        %3289 = vmatpush.msra.mxu0 0.0
        %3290 = vmatpush.msra.mxu0 0.0
        %3291 = vmatpush.msra.mxu0 0.0
        %3292 = vmatpush.msra.mxu0 0.0
        %v3293 = vand.u32 %v1663, 4294901760
        %3294 = vmatpush.msra.mxu0 %v3293
        %v3295 = vand.u32 %v1659, 4294901760
        %3296 = vmatpush.msra.mxu0 %v3295
        %v3297 = vand.u32 %v1754, 4294901760
        %v3298 = vsub.f32 %v1754, %v3297
        %v3299 = vand.u32 %v3298, 4294901760
        %v3300 = vsub.f32 %v3298, %v3299
        %v3301 = vand.u32 %v3300, 4294901760
        %3302 = vmatmul.f32.gmra.mxu0 %v3301
        %v3303 = vpop.f32.mrf.mxu0
        %v3304 = vadd.f32 0.0, %v3303
        %v3305 = vand.u32 %v1757, 4294901760
        %v3306 = vsub.f32 %v1757, %v3305
        %v3307 = vand.u32 %v3306, 4294901760
        %v3308 = vsub.f32 %v3306, %v3307
        %v3309 = vand.u32 %v3308, 4294901760
        %3310 = vmatmul.f32.gmra.mxu0 %v3309
        %v3311 = vpop.f32.mrf.mxu0
        %v3312 = vadd.f32 0.0, %v3311
        %3313 = vdwg.mxu0
        %3314 = vmatpush.msra.mxu0 0.0
        %3315 = vmatpush.msra.mxu0 0.0
        %3316 = vmatpush.msra.mxu0 0.0
        %3317 = vmatpush.msra.mxu0 0.0
        %3318 = vmatpush.msra.mxu0 0.0
        %3319 = vmatpush.msra.mxu0 0.0
        %3320 = vmatpush.msra.mxu0 0.0
        %3321 = vmatpush.msra.mxu0 0.0
        %3322 = vmatpush.msra.mxu0 0.0
        %3323 = vmatpush.msra.mxu0 0.0
        %3324 = vmatpush.msra.mxu0 0.0
        %3325 = vmatpush.msra.mxu0 0.0
        %3326 = vmatpush.msra.mxu0 0.0
        %3327 = vmatpush.msra.mxu0 0.0
        %v3328 = vand.u32 %v1663, 4294901760
        %v3329 = vsub.f32 %v1663, %v3328
        %v3330 = vand.u32 %v3329, 4294901760
        %v3331 = vsub.f32 %v3329, %v3330
        %v3332 = vand.u32 %v3331, 4294901760
        %3333 = vmatpush.msra.mxu0 %v3332
        %v3334 = vand.u32 %v1659, 4294901760
        %v3335 = vsub.f32 %v1659, %v3334
        %v3336 = vand.u32 %v3335, 4294901760
        %v3337 = vsub.f32 %v3335, %v3336
        %v3338 = vand.u32 %v3337, 4294901760
        %3339 = vmatpush.msra.mxu0 %v3338
        %v3340 = vand.u32 %v1754, 4294901760
        %3341 = vmatmul.f32.gmra.mxu0 %v3340
        %v3342 = vpop.f32.mrf.mxu0
        %v3343 = vadd.f32 %v3304, %v3342
        %v3344 = vand.u32 %v1757, 4294901760
        %3345 = vmatmul.f32.gmra.mxu0 %v3344
        %v3346 = vpop.f32.mrf.mxu0
        %v3347 = vadd.f32 %v3312, %v3346
        %3348 = vdwg.mxu0
        %3349 = vmatpush.msra.mxu0 0.0
        %3350 = vmatpush.msra.mxu0 0.0
        %3351 = vmatpush.msra.mxu0 0.0
        %3352 = vmatpush.msra.mxu0 0.0
        %3353 = vmatpush.msra.mxu0 0.0
        %3354 = vmatpush.msra.mxu0 0.0
        %3355 = vmatpush.msra.mxu0 0.0
        %3356 = vmatpush.msra.mxu0 0.0
        %3357 = vmatpush.msra.mxu0 0.0
        %3358 = vmatpush.msra.mxu0 0.0
        %3359 = vmatpush.msra.mxu0 0.0
        %3360 = vmatpush.msra.mxu0 0.0
        %3361 = vmatpush.msra.mxu0 0.0
        %3362 = vmatpush.msra.mxu0 0.0
        %v3363 = vand.u32 %v1663, 4294901760
        %v3364 = vsub.f32 %v1663, %v3363
        %3365 = vmatpush.msra.mxu0 %v3364
        %v3366 = vand.u32 %v1659, 4294901760
        %v3367 = vsub.f32 %v1659, %v3366
        %3368 = vmatpush.msra.mxu0 %v3367
        %v3369 = vand.u32 %v1754, 4294901760
        %v3370 = vsub.f32 %v1754, %v3369
        %3371 = vmatmul.f32.gmra.mxu0 %v3370
        %v3372 = vpop.f32.mrf.mxu0
        %v3373 = vadd.f32 %v3343, %v3372
        %v3374 = vand.u32 %v1757, 4294901760
        %v3375 = vsub.f32 %v1757, %v3374
        %3376 = vmatmul.f32.gmra.mxu0 %v3375
        %v3377 = vpop.f32.mrf.mxu0
        %v3378 = vadd.f32 %v3347, %v3377
        %3379 = vdwg.mxu0
        %3380 = vmatpush.msra.mxu0 0.0
        %3381 = vmatpush.msra.mxu0 0.0
        %3382 = vmatpush.msra.mxu0 0.0
        %3383 = vmatpush.msra.mxu0 0.0
        %3384 = vmatpush.msra.mxu0 0.0
        %3385 = vmatpush.msra.mxu0 0.0
        %3386 = vmatpush.msra.mxu0 0.0
        %3387 = vmatpush.msra.mxu0 0.0
        %3388 = vmatpush.msra.mxu0 0.0
        %3389 = vmatpush.msra.mxu0 0.0
        %3390 = vmatpush.msra.mxu0 0.0
        %3391 = vmatpush.msra.mxu0 0.0
        %3392 = vmatpush.msra.mxu0 0.0
        %3393 = vmatpush.msra.mxu0 0.0
        %v3394 = vand.u32 %v1663, 4294901760
        %3395 = vmatpush.msra.mxu0 %v3394
        %v3396 = vand.u32 %v1659, 4294901760
        %3397 = vmatpush.msra.mxu0 %v3396
        %v3398 = vand.u32 %v1754, 4294901760
        %v3399 = vsub.f32 %v1754, %v3398
        %v3400 = vand.u32 %v3399, 4294901760
        %3401 = vmatmul.f32.gmra.mxu0 %v3400
        %v3402 = vpop.f32.mrf.mxu0
        %v3403 = vadd.f32 %v3373, %v3402
        %v3404 = vand.u32 %v1757, 4294901760
        %v3405 = vsub.f32 %v1757, %v3404
        %v3406 = vand.u32 %v3405, 4294901760
        %3407 = vmatmul.f32.gmra.mxu0 %v3406
        %v3408 = vpop.f32.mrf.mxu0
        %v3409 = vadd.f32 %v3378, %v3408
        %3410 = vdwg.mxu0
        %3411 = vmatpush.msra.mxu0 0.0
        %3412 = vmatpush.msra.mxu0 0.0
        %3413 = vmatpush.msra.mxu0 0.0
        %3414 = vmatpush.msra.mxu0 0.0
        %3415 = vmatpush.msra.mxu0 0.0
        %3416 = vmatpush.msra.mxu0 0.0
        %3417 = vmatpush.msra.mxu0 0.0
        %3418 = vmatpush.msra.mxu0 0.0
        %3419 = vmatpush.msra.mxu0 0.0
        %3420 = vmatpush.msra.mxu0 0.0
        %3421 = vmatpush.msra.mxu0 0.0
        %3422 = vmatpush.msra.mxu0 0.0
        %3423 = vmatpush.msra.mxu0 0.0
        %3424 = vmatpush.msra.mxu0 0.0
        %v3425 = vand.u32 %v1663, 4294901760
        %v3426 = vsub.f32 %v1663, %v3425
        %v3427 = vand.u32 %v3426, 4294901760
        %3428 = vmatpush.msra.mxu0 %v3427
        %v3429 = vand.u32 %v1659, 4294901760
        %v3430 = vsub.f32 %v1659, %v3429
        %v3431 = vand.u32 %v3430, 4294901760
        %3432 = vmatpush.msra.mxu0 %v3431
        %v3433 = vand.u32 %v1754, 4294901760
        %3434 = vmatmul.f32.gmra.mxu0 %v3433
        %v3435 = vpop.f32.mrf.mxu0
        %v3436 = vadd.f32 %v3403, %v3435
        %v3437 = vand.u32 %v1757, 4294901760
        %3438 = vmatmul.f32.gmra.mxu0 %v3437
        %v3439 = vpop.f32.mrf.mxu0
        %v3440 = vadd.f32 %v3409, %v3439
        %3441 = vdwg.mxu0
        %3442 = vmatpush.msra.mxu0 0.0
        %3443 = vmatpush.msra.mxu0 0.0
        %3444 = vmatpush.msra.mxu0 0.0
        %3445 = vmatpush.msra.mxu0 0.0
        %3446 = vmatpush.msra.mxu0 0.0
        %3447 = vmatpush.msra.mxu0 0.0
        %3448 = vmatpush.msra.mxu0 0.0
        %3449 = vmatpush.msra.mxu0 0.0
        %3450 = vmatpush.msra.mxu0 0.0
        %3451 = vmatpush.msra.mxu0 0.0
        %3452 = vmatpush.msra.mxu0 0.0
        %3453 = vmatpush.msra.mxu0 0.0
        %3454 = vmatpush.msra.mxu0 0.0
        %3455 = vmatpush.msra.mxu0 0.0
        %v3456 = vand.u32 %v1663, 4294901760
        %3457 = vmatpush.msra.mxu0 %v3456
        %v3458 = vand.u32 %v1659, 4294901760
        %3459 = vmatpush.msra.mxu0 %v3458
        %v3460 = vand.u32 %v1754, 4294901760
        %3461 = vmatmul.f32.gmra.mxu0 %v3460
        %v3462 = vpop.f32.mrf.mxu0
        %v3463 = vadd.f32 %v3436, %v3462
        %v3464 = vand.u32 %v1757, 4294901760
        %3465 = vmatmul.f32.gmra.mxu0 %v3464
        %v3466 = vpop.f32.mrf.mxu0
        %v3467 = vadd.f32 %v3440, %v3466
        %3468 = vdwg.mxu0
        %3469 = vmatpush.msra.mxu0 0.0
        %3470 = vmatpush.msra.mxu0 0.0
        %3471 = vmatpush.msra.mxu0 0.0
        %3472 = vmatpush.msra.mxu0 0.0
        %3473 = vmatpush.msra.mxu0 0.0
        %3474 = vmatpush.msra.mxu0 0.0
        %3475 = vmatpush.msra.mxu0 0.0
        %3476 = vmatpush.msra.mxu0 0.0
        %3477 = vmatpush.msra.mxu0 0.0
        %3478 = vmatpush.msra.mxu0 0.0
        %3479 = vmatpush.msra.mxu0 0.0
        %3480 = vmatpush.msra.mxu0 0.0
        %3481 = vmatpush.msra.mxu0 0.0
        %3482 = vmatpush.msra.mxu0 0.0
        %v3483 = vand.u32 %v1671, 4294901760
        %3484 = vmatpush.msra.mxu0 %v3483
        %v3485 = vand.u32 %v1667, 4294901760
        %3486 = vmatpush.msra.mxu0 %v3485
        %v3487 = vand.u32 %v1754, 4294901760
        %v3488 = vsub.f32 %v1754, %v3487
        %v3489 = vand.u32 %v3488, 4294901760
        %v3490 = vsub.f32 %v3488, %v3489
        %v3491 = vand.u32 %v3490, 4294901760
        %3492 = vmatmul.f32.gmra.mxu0 %v3491
        %v3493 = vpop.f32.mrf.mxu0
        %v3494 = vadd.f32 0.0, %v3493
        %v3495 = vand.u32 %v1757, 4294901760
        %v3496 = vsub.f32 %v1757, %v3495
        %v3497 = vand.u32 %v3496, 4294901760
        %v3498 = vsub.f32 %v3496, %v3497
        %v3499 = vand.u32 %v3498, 4294901760
        %3500 = vmatmul.f32.gmra.mxu0 %v3499
        %v3501 = vpop.f32.mrf.mxu0
        %v3502 = vadd.f32 0.0, %v3501
        %3503 = vdwg.mxu0
        %3504 = vmatpush.msra.mxu0 0.0
        %3505 = vmatpush.msra.mxu0 0.0
        %3506 = vmatpush.msra.mxu0 0.0
        %3507 = vmatpush.msra.mxu0 0.0
        %3508 = vmatpush.msra.mxu0 0.0
        %3509 = vmatpush.msra.mxu0 0.0
        %3510 = vmatpush.msra.mxu0 0.0
        %3511 = vmatpush.msra.mxu0 0.0
        %3512 = vmatpush.msra.mxu0 0.0
        %3513 = vmatpush.msra.mxu0 0.0
        %3514 = vmatpush.msra.mxu0 0.0
        %3515 = vmatpush.msra.mxu0 0.0
        %3516 = vmatpush.msra.mxu0 0.0
        %3517 = vmatpush.msra.mxu0 0.0
        %v3518 = vand.u32 %v1671, 4294901760
        %v3519 = vsub.f32 %v1671, %v3518
        %v3520 = vand.u32 %v3519, 4294901760
        %v3521 = vsub.f32 %v3519, %v3520
        %v3522 = vand.u32 %v3521, 4294901760
        %3523 = vmatpush.msra.mxu0 %v3522
        %v3524 = vand.u32 %v1667, 4294901760
        %v3525 = vsub.f32 %v1667, %v3524
        %v3526 = vand.u32 %v3525, 4294901760
        %v3527 = vsub.f32 %v3525, %v3526
        %v3528 = vand.u32 %v3527, 4294901760
        %3529 = vmatpush.msra.mxu0 %v3528
        %v3530 = vand.u32 %v1754, 4294901760
        %3531 = vmatmul.f32.gmra.mxu0 %v3530
        %v3532 = vpop.f32.mrf.mxu0
        %v3533 = vadd.f32 %v3494, %v3532
        %v3534 = vand.u32 %v1757, 4294901760
        %3535 = vmatmul.f32.gmra.mxu0 %v3534
        %v3536 = vpop.f32.mrf.mxu0
        %v3537 = vadd.f32 %v3502, %v3536
        %3538 = vdwg.mxu0
        %3539 = vmatpush.msra.mxu0 0.0
        %3540 = vmatpush.msra.mxu0 0.0
        %3541 = vmatpush.msra.mxu0 0.0
        %3542 = vmatpush.msra.mxu0 0.0
        %3543 = vmatpush.msra.mxu0 0.0
        %3544 = vmatpush.msra.mxu0 0.0
        %3545 = vmatpush.msra.mxu0 0.0
        %3546 = vmatpush.msra.mxu0 0.0
        %3547 = vmatpush.msra.mxu0 0.0
        %3548 = vmatpush.msra.mxu0 0.0
        %3549 = vmatpush.msra.mxu0 0.0
        %3550 = vmatpush.msra.mxu0 0.0
        %3551 = vmatpush.msra.mxu0 0.0
        %3552 = vmatpush.msra.mxu0 0.0
        %v3553 = vand.u32 %v1671, 4294901760
        %v3554 = vsub.f32 %v1671, %v3553
        %3555 = vmatpush.msra.mxu0 %v3554
        %v3556 = vand.u32 %v1667, 4294901760
        %v3557 = vsub.f32 %v1667, %v3556
        %3558 = vmatpush.msra.mxu0 %v3557
        %v3559 = vand.u32 %v1754, 4294901760
        %v3560 = vsub.f32 %v1754, %v3559
        %3561 = vmatmul.f32.gmra.mxu0 %v3560
        %v3562 = vpop.f32.mrf.mxu0
        %v3563 = vadd.f32 %v3533, %v3562
        %v3564 = vand.u32 %v1757, 4294901760
        %v3565 = vsub.f32 %v1757, %v3564
        %3566 = vmatmul.f32.gmra.mxu0 %v3565
        %v3567 = vpop.f32.mrf.mxu0
        %v3568 = vadd.f32 %v3537, %v3567
        %3569 = vdwg.mxu0
        %3570 = vmatpush.msra.mxu0 0.0
        %3571 = vmatpush.msra.mxu0 0.0
        %3572 = vmatpush.msra.mxu0 0.0
        %3573 = vmatpush.msra.mxu0 0.0
        %3574 = vmatpush.msra.mxu0 0.0
        %3575 = vmatpush.msra.mxu0 0.0
        %3576 = vmatpush.msra.mxu0 0.0
        %3577 = vmatpush.msra.mxu0 0.0
        %3578 = vmatpush.msra.mxu0 0.0
        %3579 = vmatpush.msra.mxu0 0.0
        %3580 = vmatpush.msra.mxu0 0.0
        %3581 = vmatpush.msra.mxu0 0.0
        %3582 = vmatpush.msra.mxu0 0.0
        %3583 = vmatpush.msra.mxu0 0.0
        %v3584 = vand.u32 %v1671, 4294901760
        %3585 = vmatpush.msra.mxu0 %v3584
        %v3586 = vand.u32 %v1667, 4294901760
        %3587 = vmatpush.msra.mxu0 %v3586
        %v3588 = vand.u32 %v1754, 4294901760
        %v3589 = vsub.f32 %v1754, %v3588
        %v3590 = vand.u32 %v3589, 4294901760
        %3591 = vmatmul.f32.gmra.mxu0 %v3590
        %v3592 = vpop.f32.mrf.mxu0
        %v3593 = vadd.f32 %v3563, %v3592
        %v3594 = vand.u32 %v1757, 4294901760
        %v3595 = vsub.f32 %v1757, %v3594
        %v3596 = vand.u32 %v3595, 4294901760
        %3597 = vmatmul.f32.gmra.mxu0 %v3596
        %v3598 = vpop.f32.mrf.mxu0
        %v3599 = vadd.f32 %v3568, %v3598
        %3600 = vdwg.mxu0
        %3601 = vmatpush.msra.mxu0 0.0
        %3602 = vmatpush.msra.mxu0 0.0
        %3603 = vmatpush.msra.mxu0 0.0
        %3604 = vmatpush.msra.mxu0 0.0
        %3605 = vmatpush.msra.mxu0 0.0
        %3606 = vmatpush.msra.mxu0 0.0
        %3607 = vmatpush.msra.mxu0 0.0
        %3608 = vmatpush.msra.mxu0 0.0
        %3609 = vmatpush.msra.mxu0 0.0
        %3610 = vmatpush.msra.mxu0 0.0
        %3611 = vmatpush.msra.mxu0 0.0
        %3612 = vmatpush.msra.mxu0 0.0
        %3613 = vmatpush.msra.mxu0 0.0
        %3614 = vmatpush.msra.mxu0 0.0
        %v3615 = vand.u32 %v1671, 4294901760
        %v3616 = vsub.f32 %v1671, %v3615
        %v3617 = vand.u32 %v3616, 4294901760
        %3618 = vmatpush.msra.mxu0 %v3617
        %v3619 = vand.u32 %v1667, 4294901760
        %v3620 = vsub.f32 %v1667, %v3619
        %v3621 = vand.u32 %v3620, 4294901760
        %3622 = vmatpush.msra.mxu0 %v3621
        %v3623 = vand.u32 %v1754, 4294901760
        %3624 = vmatmul.f32.gmra.mxu0 %v3623
        %v3625 = vpop.f32.mrf.mxu0
        %v3626 = vadd.f32 %v3593, %v3625
        %v3627 = vand.u32 %v1757, 4294901760
        %3628 = vmatmul.f32.gmra.mxu0 %v3627
        %v3629 = vpop.f32.mrf.mxu0
        %v3630 = vadd.f32 %v3599, %v3629
        %3631 = vdwg.mxu0
        %3632 = vmatpush.msra.mxu0 0.0
        %3633 = vmatpush.msra.mxu0 0.0
        %3634 = vmatpush.msra.mxu0 0.0
        %3635 = vmatpush.msra.mxu0 0.0
        %3636 = vmatpush.msra.mxu0 0.0
        %3637 = vmatpush.msra.mxu0 0.0
        %3638 = vmatpush.msra.mxu0 0.0
        %3639 = vmatpush.msra.mxu0 0.0
        %3640 = vmatpush.msra.mxu0 0.0
        %3641 = vmatpush.msra.mxu0 0.0
        %3642 = vmatpush.msra.mxu0 0.0
        %3643 = vmatpush.msra.mxu0 0.0
        %3644 = vmatpush.msra.mxu0 0.0
        %3645 = vmatpush.msra.mxu0 0.0
        %v3646 = vand.u32 %v1671, 4294901760
        %3647 = vmatpush.msra.mxu0 %v3646
        %v3648 = vand.u32 %v1667, 4294901760
        %3649 = vmatpush.msra.mxu0 %v3648
        %v3650 = vand.u32 %v1754, 4294901760
        %3651 = vmatmul.f32.gmra.mxu0 %v3650
        %v3652 = vpop.f32.mrf.mxu0
        %v3653 = vadd.f32 %v3626, %v3652
        %v3654 = vand.u32 %v1757, 4294901760
        %3655 = vmatmul.f32.gmra.mxu0 %v3654
        %v3656 = vpop.f32.mrf.mxu0
        %v3657 = vadd.f32 %v3630, %v3656
        %3658 = vdwg.mxu0
        %3659 = vmatpush.msra.mxu0 0.0
        %3660 = vmatpush.msra.mxu0 0.0
        %3661 = vmatpush.msra.mxu0 0.0
        %3662 = vmatpush.msra.mxu0 0.0
        %3663 = vmatpush.msra.mxu0 0.0
        %3664 = vmatpush.msra.mxu0 0.0
        %3665 = vmatpush.msra.mxu0 0.0
        %3666 = vmatpush.msra.mxu0 0.0
        %3667 = vmatpush.msra.mxu0 0.0
        %3668 = vmatpush.msra.mxu0 0.0
        %3669 = vmatpush.msra.mxu0 0.0
        %3670 = vmatpush.msra.mxu0 0.0
        %3671 = vmatpush.msra.mxu0 0.0
        %3672 = vmatpush.msra.mxu0 0.0
        %v3673 = vand.u32 %v1679, 4294901760
        %3674 = vmatpush.msra.mxu0 %v3673
        %v3675 = vand.u32 %v1675, 4294901760
        %3676 = vmatpush.msra.mxu0 %v3675
        %v3677 = vand.u32 %v1754, 4294901760
        %v3678 = vsub.f32 %v1754, %v3677
        %v3679 = vand.u32 %v3678, 4294901760
        %v3680 = vsub.f32 %v3678, %v3679
        %v3681 = vand.u32 %v3680, 4294901760
        %3682 = vmatmul.f32.gmra.mxu0 %v3681
        %v3683 = vpop.f32.mrf.mxu0
        %v3684 = vadd.f32 0.0, %v3683
        %v3685 = vand.u32 %v1757, 4294901760
        %v3686 = vsub.f32 %v1757, %v3685
        %v3687 = vand.u32 %v3686, 4294901760
        %v3688 = vsub.f32 %v3686, %v3687
        %v3689 = vand.u32 %v3688, 4294901760
        %3690 = vmatmul.f32.gmra.mxu0 %v3689
        %v3691 = vpop.f32.mrf.mxu0
        %v3692 = vadd.f32 0.0, %v3691
        %3693 = vdwg.mxu0
        %3694 = vmatpush.msra.mxu0 0.0
        %3695 = vmatpush.msra.mxu0 0.0
        %3696 = vmatpush.msra.mxu0 0.0
        %3697 = vmatpush.msra.mxu0 0.0
        %3698 = vmatpush.msra.mxu0 0.0
        %3699 = vmatpush.msra.mxu0 0.0
        %3700 = vmatpush.msra.mxu0 0.0
        %3701 = vmatpush.msra.mxu0 0.0
        %3702 = vmatpush.msra.mxu0 0.0
        %3703 = vmatpush.msra.mxu0 0.0
        %3704 = vmatpush.msra.mxu0 0.0
        %3705 = vmatpush.msra.mxu0 0.0
        %3706 = vmatpush.msra.mxu0 0.0
        %3707 = vmatpush.msra.mxu0 0.0
        %v3708 = vand.u32 %v1679, 4294901760
        %v3709 = vsub.f32 %v1679, %v3708
        %v3710 = vand.u32 %v3709, 4294901760
        %v3711 = vsub.f32 %v3709, %v3710
        %v3712 = vand.u32 %v3711, 4294901760
        %3713 = vmatpush.msra.mxu0 %v3712
        %v3714 = vand.u32 %v1675, 4294901760
        %v3715 = vsub.f32 %v1675, %v3714
        %v3716 = vand.u32 %v3715, 4294901760
        %v3717 = vsub.f32 %v3715, %v3716
        %v3718 = vand.u32 %v3717, 4294901760
        %3719 = vmatpush.msra.mxu0 %v3718
        %v3720 = vand.u32 %v1754, 4294901760
        %3721 = vmatmul.f32.gmra.mxu0 %v3720
        %v3722 = vpop.f32.mrf.mxu0
        %v3723 = vadd.f32 %v3684, %v3722
        %v3724 = vand.u32 %v1757, 4294901760
        %3725 = vmatmul.f32.gmra.mxu0 %v3724
        %v3726 = vpop.f32.mrf.mxu0
        %v3727 = vadd.f32 %v3692, %v3726
        %3728 = vdwg.mxu0
        %3729 = vmatpush.msra.mxu0 0.0
        %3730 = vmatpush.msra.mxu0 0.0
        %3731 = vmatpush.msra.mxu0 0.0
        %3732 = vmatpush.msra.mxu0 0.0
        %3733 = vmatpush.msra.mxu0 0.0
        %3734 = vmatpush.msra.mxu0 0.0
        %3735 = vmatpush.msra.mxu0 0.0
        %3736 = vmatpush.msra.mxu0 0.0
        %3737 = vmatpush.msra.mxu0 0.0
        %3738 = vmatpush.msra.mxu0 0.0
        %3739 = vmatpush.msra.mxu0 0.0
        %3740 = vmatpush.msra.mxu0 0.0
        %3741 = vmatpush.msra.mxu0 0.0
        %3742 = vmatpush.msra.mxu0 0.0
        %v3743 = vand.u32 %v1679, 4294901760
        %v3744 = vsub.f32 %v1679, %v3743
        %3745 = vmatpush.msra.mxu0 %v3744
        %v3746 = vand.u32 %v1675, 4294901760
        %v3747 = vsub.f32 %v1675, %v3746
        %3748 = vmatpush.msra.mxu0 %v3747
        %v3749 = vand.u32 %v1754, 4294901760
        %v3750 = vsub.f32 %v1754, %v3749
        %3751 = vmatmul.f32.gmra.mxu0 %v3750
        %v3752 = vpop.f32.mrf.mxu0
        %v3753 = vadd.f32 %v3723, %v3752
        %v3754 = vand.u32 %v1757, 4294901760
        %v3755 = vsub.f32 %v1757, %v3754
        %3756 = vmatmul.f32.gmra.mxu0 %v3755
        %v3757 = vpop.f32.mrf.mxu0
        %v3758 = vadd.f32 %v3727, %v3757
        %3759 = vdwg.mxu0
        %3760 = vmatpush.msra.mxu0 0.0
        %3761 = vmatpush.msra.mxu0 0.0
        %3762 = vmatpush.msra.mxu0 0.0
        %3763 = vmatpush.msra.mxu0 0.0
        %3764 = vmatpush.msra.mxu0 0.0
        %3765 = vmatpush.msra.mxu0 0.0
        %3766 = vmatpush.msra.mxu0 0.0
        %3767 = vmatpush.msra.mxu0 0.0
        %3768 = vmatpush.msra.mxu0 0.0
        %3769 = vmatpush.msra.mxu0 0.0
        %3770 = vmatpush.msra.mxu0 0.0
        %3771 = vmatpush.msra.mxu0 0.0
        %3772 = vmatpush.msra.mxu0 0.0
        %3773 = vmatpush.msra.mxu0 0.0
        %v3774 = vand.u32 %v1679, 4294901760
        %3775 = vmatpush.msra.mxu0 %v3774
        %v3776 = vand.u32 %v1675, 4294901760
        %3777 = vmatpush.msra.mxu0 %v3776
        %v3778 = vand.u32 %v1754, 4294901760
        %v3779 = vsub.f32 %v1754, %v3778
        %v3780 = vand.u32 %v3779, 4294901760
        %3781 = vmatmul.f32.gmra.mxu0 %v3780
        %v3782 = vpop.f32.mrf.mxu0
        %v3783 = vadd.f32 %v3753, %v3782
        %v3784 = vand.u32 %v1757, 4294901760
        %v3785 = vsub.f32 %v1757, %v3784
        %v3786 = vand.u32 %v3785, 4294901760
        %3787 = vmatmul.f32.gmra.mxu0 %v3786
        %v3788 = vpop.f32.mrf.mxu0
        %v3789 = vadd.f32 %v3758, %v3788
        %3790 = vdwg.mxu0
        %3791 = vmatpush.msra.mxu0 0.0
        %3792 = vmatpush.msra.mxu0 0.0
        %3793 = vmatpush.msra.mxu0 0.0
        %3794 = vmatpush.msra.mxu0 0.0
        %3795 = vmatpush.msra.mxu0 0.0
        %3796 = vmatpush.msra.mxu0 0.0
        %3797 = vmatpush.msra.mxu0 0.0
        %3798 = vmatpush.msra.mxu0 0.0
        %3799 = vmatpush.msra.mxu0 0.0
        %3800 = vmatpush.msra.mxu0 0.0
        %3801 = vmatpush.msra.mxu0 0.0
        %3802 = vmatpush.msra.mxu0 0.0
        %3803 = vmatpush.msra.mxu0 0.0
        %3804 = vmatpush.msra.mxu0 0.0
        %v3805 = vand.u32 %v1679, 4294901760
        %v3806 = vsub.f32 %v1679, %v3805
        %v3807 = vand.u32 %v3806, 4294901760
        %3808 = vmatpush.msra.mxu0 %v3807
        %v3809 = vand.u32 %v1675, 4294901760
        %v3810 = vsub.f32 %v1675, %v3809
        %v3811 = vand.u32 %v3810, 4294901760
        %3812 = vmatpush.msra.mxu0 %v3811
        %v3813 = vand.u32 %v1754, 4294901760
        %3814 = vmatmul.f32.gmra.mxu0 %v3813
        %v3815 = vpop.f32.mrf.mxu0
        %v3816 = vadd.f32 %v3783, %v3815
        %v3817 = vand.u32 %v1757, 4294901760
        %3818 = vmatmul.f32.gmra.mxu0 %v3817
        %v3819 = vpop.f32.mrf.mxu0
        %v3820 = vadd.f32 %v3789, %v3819
        %3821 = vdwg.mxu0
        %3822 = vmatpush.msra.mxu0 0.0
        %3823 = vmatpush.msra.mxu0 0.0
        %3824 = vmatpush.msra.mxu0 0.0
        %3825 = vmatpush.msra.mxu0 0.0
        %3826 = vmatpush.msra.mxu0 0.0
        %3827 = vmatpush.msra.mxu0 0.0
        %3828 = vmatpush.msra.mxu0 0.0
        %3829 = vmatpush.msra.mxu0 0.0
        %3830 = vmatpush.msra.mxu0 0.0
        %3831 = vmatpush.msra.mxu0 0.0
        %3832 = vmatpush.msra.mxu0 0.0
        %3833 = vmatpush.msra.mxu0 0.0
        %3834 = vmatpush.msra.mxu0 0.0
        %3835 = vmatpush.msra.mxu0 0.0
        %v3836 = vand.u32 %v1679, 4294901760
        %3837 = vmatpush.msra.mxu0 %v3836
        %v3838 = vand.u32 %v1675, 4294901760
        %3839 = vmatpush.msra.mxu0 %v3838
        %v3840 = vand.u32 %v1754, 4294901760
        %3841 = vmatmul.f32.gmra.mxu0 %v3840
        %v3842 = vpop.f32.mrf.mxu0
        %v3843 = vadd.f32 %v3816, %v3842
        %v3844 = vand.u32 %v1757, 4294901760
        %3845 = vmatmul.f32.gmra.mxu0 %v3844
        %v3846 = vpop.f32.mrf.mxu0
        %v3847 = vadd.f32 %v3820, %v3846
        %3848 = vdwg.mxu0
        %3849 = vmatpush.msra.mxu0 0.0
        %3850 = vmatpush.msra.mxu0 0.0
        %3851 = vmatpush.msra.mxu0 0.0
        %3852 = vmatpush.msra.mxu0 0.0
        %3853 = vmatpush.msra.mxu0 0.0
        %3854 = vmatpush.msra.mxu0 0.0
        %3855 = vmatpush.msra.mxu0 0.0
        %3856 = vmatpush.msra.mxu0 0.0
        %3857 = vmatpush.msra.mxu0 0.0
        %3858 = vmatpush.msra.mxu0 0.0
        %3859 = vmatpush.msra.mxu0 0.0
        %3860 = vmatpush.msra.mxu0 0.0
        %3861 = vmatpush.msra.mxu0 0.0
        %3862 = vmatpush.msra.mxu0 0.0
        %v3863 = vand.u32 %v1687, 4294901760
        %3864 = vmatpush.msra.mxu0 %v3863
        %v3865 = vand.u32 %v1683, 4294901760
        %3866 = vmatpush.msra.mxu0 %v3865
        %v3867 = vand.u32 %v1754, 4294901760
        %v3868 = vsub.f32 %v1754, %v3867
        %v3869 = vand.u32 %v3868, 4294901760
        %v3870 = vsub.f32 %v3868, %v3869
        %v3871 = vand.u32 %v3870, 4294901760
        %3872 = vmatmul.f32.gmra.mxu0 %v3871
        %v3873 = vpop.f32.mrf.mxu0
        %v3874 = vadd.f32 0.0, %v3873
        %v3875 = vand.u32 %v1757, 4294901760
        %v3876 = vsub.f32 %v1757, %v3875
        %v3877 = vand.u32 %v3876, 4294901760
        %v3878 = vsub.f32 %v3876, %v3877
        %v3879 = vand.u32 %v3878, 4294901760
        %3880 = vmatmul.f32.gmra.mxu0 %v3879
        %v3881 = vpop.f32.mrf.mxu0
        %v3882 = vadd.f32 0.0, %v3881
        %3883 = vdwg.mxu0
        %3884 = vmatpush.msra.mxu0 0.0
        %3885 = vmatpush.msra.mxu0 0.0
        %3886 = vmatpush.msra.mxu0 0.0
        %3887 = vmatpush.msra.mxu0 0.0
        %3888 = vmatpush.msra.mxu0 0.0
        %3889 = vmatpush.msra.mxu0 0.0
        %3890 = vmatpush.msra.mxu0 0.0
        %3891 = vmatpush.msra.mxu0 0.0
        %3892 = vmatpush.msra.mxu0 0.0
        %3893 = vmatpush.msra.mxu0 0.0
        %3894 = vmatpush.msra.mxu0 0.0
        %3895 = vmatpush.msra.mxu0 0.0
        %3896 = vmatpush.msra.mxu0 0.0
        %3897 = vmatpush.msra.mxu0 0.0
        %v3898 = vand.u32 %v1687, 4294901760
        %v3899 = vsub.f32 %v1687, %v3898
        %v3900 = vand.u32 %v3899, 4294901760
        %v3901 = vsub.f32 %v3899, %v3900
        %v3902 = vand.u32 %v3901, 4294901760
        %3903 = vmatpush.msra.mxu0 %v3902
        %v3904 = vand.u32 %v1683, 4294901760
        %v3905 = vsub.f32 %v1683, %v3904
        %v3906 = vand.u32 %v3905, 4294901760
        %v3907 = vsub.f32 %v3905, %v3906
        %v3908 = vand.u32 %v3907, 4294901760
        %3909 = vmatpush.msra.mxu0 %v3908
        %v3910 = vand.u32 %v1754, 4294901760
        %3911 = vmatmul.f32.gmra.mxu0 %v3910
        %v3912 = vpop.f32.mrf.mxu0
        %v3913 = vadd.f32 %v3874, %v3912
        %v3914 = vand.u32 %v1757, 4294901760
        %3915 = vmatmul.f32.gmra.mxu0 %v3914
        %v3916 = vpop.f32.mrf.mxu0
        %v3917 = vadd.f32 %v3882, %v3916
        %3918 = vdwg.mxu0
        %3919 = vmatpush.msra.mxu0 0.0
        %3920 = vmatpush.msra.mxu0 0.0
        %3921 = vmatpush.msra.mxu0 0.0
        %3922 = vmatpush.msra.mxu0 0.0
        %3923 = vmatpush.msra.mxu0 0.0
        %3924 = vmatpush.msra.mxu0 0.0
        %3925 = vmatpush.msra.mxu0 0.0
        %3926 = vmatpush.msra.mxu0 0.0
        %3927 = vmatpush.msra.mxu0 0.0
        %3928 = vmatpush.msra.mxu0 0.0
        %3929 = vmatpush.msra.mxu0 0.0
        %3930 = vmatpush.msra.mxu0 0.0
        %3931 = vmatpush.msra.mxu0 0.0
        %3932 = vmatpush.msra.mxu0 0.0
        %v3933 = vand.u32 %v1687, 4294901760
        %v3934 = vsub.f32 %v1687, %v3933
        %3935 = vmatpush.msra.mxu0 %v3934
        %v3936 = vand.u32 %v1683, 4294901760
        %v3937 = vsub.f32 %v1683, %v3936
        %3938 = vmatpush.msra.mxu0 %v3937
        %v3939 = vand.u32 %v1754, 4294901760
        %v3940 = vsub.f32 %v1754, %v3939
        %3941 = vmatmul.f32.gmra.mxu0 %v3940
        %v3942 = vpop.f32.mrf.mxu0
        %v3943 = vadd.f32 %v3913, %v3942
        %v3944 = vand.u32 %v1757, 4294901760
        %v3945 = vsub.f32 %v1757, %v3944
        %3946 = vmatmul.f32.gmra.mxu0 %v3945
        %v3947 = vpop.f32.mrf.mxu0
        %v3948 = vadd.f32 %v3917, %v3947
        %3949 = vdwg.mxu0
        %3950 = vmatpush.msra.mxu0 0.0
        %3951 = vmatpush.msra.mxu0 0.0
        %3952 = vmatpush.msra.mxu0 0.0
        %3953 = vmatpush.msra.mxu0 0.0
        %3954 = vmatpush.msra.mxu0 0.0
        %3955 = vmatpush.msra.mxu0 0.0
        %3956 = vmatpush.msra.mxu0 0.0
        %3957 = vmatpush.msra.mxu0 0.0
        %3958 = vmatpush.msra.mxu0 0.0
        %3959 = vmatpush.msra.mxu0 0.0
        %3960 = vmatpush.msra.mxu0 0.0
        %3961 = vmatpush.msra.mxu0 0.0
        %3962 = vmatpush.msra.mxu0 0.0
        %3963 = vmatpush.msra.mxu0 0.0
        %v3964 = vand.u32 %v1687, 4294901760
        %3965 = vmatpush.msra.mxu0 %v3964
        %v3966 = vand.u32 %v1683, 4294901760
        %3967 = vmatpush.msra.mxu0 %v3966
        %v3968 = vand.u32 %v1754, 4294901760
        %v3969 = vsub.f32 %v1754, %v3968
        %v3970 = vand.u32 %v3969, 4294901760
        %3971 = vmatmul.f32.gmra.mxu0 %v3970
        %v3972 = vpop.f32.mrf.mxu0
        %v3973 = vadd.f32 %v3943, %v3972
        %v3974 = vand.u32 %v1757, 4294901760
        %v3975 = vsub.f32 %v1757, %v3974
        %v3976 = vand.u32 %v3975, 4294901760
        %3977 = vmatmul.f32.gmra.mxu0 %v3976
        %v3978 = vpop.f32.mrf.mxu0
        %v3979 = vadd.f32 %v3948, %v3978
        %3980 = vdwg.mxu0
        %3981 = vmatpush.msra.mxu0 0.0
        %3982 = vmatpush.msra.mxu0 0.0
        %3983 = vmatpush.msra.mxu0 0.0
        %3984 = vmatpush.msra.mxu0 0.0
        %3985 = vmatpush.msra.mxu0 0.0
        %3986 = vmatpush.msra.mxu0 0.0
        %3987 = vmatpush.msra.mxu0 0.0
        %3988 = vmatpush.msra.mxu0 0.0
        %3989 = vmatpush.msra.mxu0 0.0
        %3990 = vmatpush.msra.mxu0 0.0
        %3991 = vmatpush.msra.mxu0 0.0
        %3992 = vmatpush.msra.mxu0 0.0
        %3993 = vmatpush.msra.mxu0 0.0
        %3994 = vmatpush.msra.mxu0 0.0
        %v3995 = vand.u32 %v1687, 4294901760
        %v3996 = vsub.f32 %v1687, %v3995
        %v3997 = vand.u32 %v3996, 4294901760
        %3998 = vmatpush.msra.mxu0 %v3997
        %v3999 = vand.u32 %v1683, 4294901760
        %v4000 = vsub.f32 %v1683, %v3999
        %v4001 = vand.u32 %v4000, 4294901760
        %4002 = vmatpush.msra.mxu0 %v4001
        %v4003 = vand.u32 %v1754, 4294901760
        %4004 = vmatmul.f32.gmra.mxu0 %v4003
        %v4005 = vpop.f32.mrf.mxu0
        %v4006 = vadd.f32 %v3973, %v4005
        %v4007 = vand.u32 %v1757, 4294901760
        %4008 = vmatmul.f32.gmra.mxu0 %v4007
        %v4009 = vpop.f32.mrf.mxu0
        %v4010 = vadd.f32 %v3979, %v4009
        %4011 = vdwg.mxu0
        %4012 = vmatpush.msra.mxu0 0.0
        %4013 = vmatpush.msra.mxu0 0.0
        %4014 = vmatpush.msra.mxu0 0.0
        %4015 = vmatpush.msra.mxu0 0.0
        %4016 = vmatpush.msra.mxu0 0.0
        %4017 = vmatpush.msra.mxu0 0.0
        %4018 = vmatpush.msra.mxu0 0.0
        %4019 = vmatpush.msra.mxu0 0.0
        %4020 = vmatpush.msra.mxu0 0.0
        %4021 = vmatpush.msra.mxu0 0.0
        %4022 = vmatpush.msra.mxu0 0.0
        %4023 = vmatpush.msra.mxu0 0.0
        %4024 = vmatpush.msra.mxu0 0.0
        %4025 = vmatpush.msra.mxu0 0.0
        %v4026 = vand.u32 %v1687, 4294901760
        %4027 = vmatpush.msra.mxu0 %v4026
        %v4028 = vand.u32 %v1683, 4294901760
        %4029 = vmatpush.msra.mxu0 %v4028
        %v4030 = vand.u32 %v1754, 4294901760
        %4031 = vmatmul.f32.gmra.mxu0 %v4030
        %v4032 = vpop.f32.mrf.mxu0
        %v4033 = vadd.f32 %v4006, %v4032
        %v4034 = vand.u32 %v1757, 4294901760
        %4035 = vmatmul.f32.gmra.mxu0 %v4034
        %v4036 = vpop.f32.mrf.mxu0
        %v4037 = vadd.f32 %v4010, %v4036
        %4038 = vdwg.mxu0
        %4039 = vmatpush.msra.mxu0 0.0
        %4040 = vmatpush.msra.mxu0 0.0
        %4041 = vmatpush.msra.mxu0 0.0
        %4042 = vmatpush.msra.mxu0 0.0
        %4043 = vmatpush.msra.mxu0 0.0
        %4044 = vmatpush.msra.mxu0 0.0
        %4045 = vmatpush.msra.mxu0 0.0
        %4046 = vmatpush.msra.mxu0 0.0
        %4047 = vmatpush.msra.mxu0 0.0
        %4048 = vmatpush.msra.mxu0 0.0
        %4049 = vmatpush.msra.mxu0 0.0
        %4050 = vmatpush.msra.mxu0 0.0
        %4051 = vmatpush.msra.mxu0 0.0
        %4052 = vmatpush.msra.mxu0 0.0
        %v4053 = vand.u32 %v1695, 4294901760
        %4054 = vmatpush.msra.mxu0 %v4053
        %v4055 = vand.u32 %v1691, 4294901760
        %4056 = vmatpush.msra.mxu0 %v4055
        %v4057 = vand.u32 %v1754, 4294901760
        %v4058 = vsub.f32 %v1754, %v4057
        %v4059 = vand.u32 %v4058, 4294901760
        %v4060 = vsub.f32 %v4058, %v4059
        %v4061 = vand.u32 %v4060, 4294901760
        %4062 = vmatmul.f32.gmra.mxu0 %v4061
        %v4063 = vpop.f32.mrf.mxu0
        %v4064 = vadd.f32 0.0, %v4063
        %v4065 = vand.u32 %v1757, 4294901760
        %v4066 = vsub.f32 %v1757, %v4065
        %v4067 = vand.u32 %v4066, 4294901760
        %v4068 = vsub.f32 %v4066, %v4067
        %v4069 = vand.u32 %v4068, 4294901760
        %4070 = vmatmul.f32.gmra.mxu0 %v4069
        %v4071 = vpop.f32.mrf.mxu0
        %v4072 = vadd.f32 0.0, %v4071
        %4073 = vdwg.mxu0
        %4074 = vmatpush.msra.mxu0 0.0
        %4075 = vmatpush.msra.mxu0 0.0
        %4076 = vmatpush.msra.mxu0 0.0
        %4077 = vmatpush.msra.mxu0 0.0
        %4078 = vmatpush.msra.mxu0 0.0
        %4079 = vmatpush.msra.mxu0 0.0
        %4080 = vmatpush.msra.mxu0 0.0
        %4081 = vmatpush.msra.mxu0 0.0
        %4082 = vmatpush.msra.mxu0 0.0
        %4083 = vmatpush.msra.mxu0 0.0
        %4084 = vmatpush.msra.mxu0 0.0
        %4085 = vmatpush.msra.mxu0 0.0
        %4086 = vmatpush.msra.mxu0 0.0
        %4087 = vmatpush.msra.mxu0 0.0
        %v4088 = vand.u32 %v1695, 4294901760
        %v4089 = vsub.f32 %v1695, %v4088
        %v4090 = vand.u32 %v4089, 4294901760
        %v4091 = vsub.f32 %v4089, %v4090
        %v4092 = vand.u32 %v4091, 4294901760
        %4093 = vmatpush.msra.mxu0 %v4092
        %v4094 = vand.u32 %v1691, 4294901760
        %v4095 = vsub.f32 %v1691, %v4094
        %v4096 = vand.u32 %v4095, 4294901760
        %v4097 = vsub.f32 %v4095, %v4096
        %v4098 = vand.u32 %v4097, 4294901760
        %4099 = vmatpush.msra.mxu0 %v4098
        %v4100 = vand.u32 %v1754, 4294901760
        %4101 = vmatmul.f32.gmra.mxu0 %v4100
        %v4102 = vpop.f32.mrf.mxu0
        %v4103 = vadd.f32 %v4064, %v4102
        %v4104 = vand.u32 %v1757, 4294901760
        %4105 = vmatmul.f32.gmra.mxu0 %v4104
        %v4106 = vpop.f32.mrf.mxu0
        %v4107 = vadd.f32 %v4072, %v4106
        %4108 = vdwg.mxu0
        %4109 = vmatpush.msra.mxu0 0.0
        %4110 = vmatpush.msra.mxu0 0.0
        %4111 = vmatpush.msra.mxu0 0.0
        %4112 = vmatpush.msra.mxu0 0.0
        %4113 = vmatpush.msra.mxu0 0.0
        %4114 = vmatpush.msra.mxu0 0.0
        %4115 = vmatpush.msra.mxu0 0.0
        %4116 = vmatpush.msra.mxu0 0.0
        %4117 = vmatpush.msra.mxu0 0.0
        %4118 = vmatpush.msra.mxu0 0.0
        %4119 = vmatpush.msra.mxu0 0.0
        %4120 = vmatpush.msra.mxu0 0.0
        %4121 = vmatpush.msra.mxu0 0.0
        %4122 = vmatpush.msra.mxu0 0.0
        %v4123 = vand.u32 %v1695, 4294901760
        %v4124 = vsub.f32 %v1695, %v4123
        %4125 = vmatpush.msra.mxu0 %v4124
        %v4126 = vand.u32 %v1691, 4294901760
        %v4127 = vsub.f32 %v1691, %v4126
        %4128 = vmatpush.msra.mxu0 %v4127
        %v4129 = vand.u32 %v1754, 4294901760
        %v4130 = vsub.f32 %v1754, %v4129
        %4131 = vmatmul.f32.gmra.mxu0 %v4130
        %v4132 = vpop.f32.mrf.mxu0
        %v4133 = vadd.f32 %v4103, %v4132
        %v4134 = vand.u32 %v1757, 4294901760
        %v4135 = vsub.f32 %v1757, %v4134
        %4136 = vmatmul.f32.gmra.mxu0 %v4135
        %v4137 = vpop.f32.mrf.mxu0
        %v4138 = vadd.f32 %v4107, %v4137
        %4139 = vdwg.mxu0
        %4140 = vmatpush.msra.mxu0 0.0
        %4141 = vmatpush.msra.mxu0 0.0
        %4142 = vmatpush.msra.mxu0 0.0
        %4143 = vmatpush.msra.mxu0 0.0
        %4144 = vmatpush.msra.mxu0 0.0
        %4145 = vmatpush.msra.mxu0 0.0
        %4146 = vmatpush.msra.mxu0 0.0
        %4147 = vmatpush.msra.mxu0 0.0
        %4148 = vmatpush.msra.mxu0 0.0
        %4149 = vmatpush.msra.mxu0 0.0
        %4150 = vmatpush.msra.mxu0 0.0
        %4151 = vmatpush.msra.mxu0 0.0
        %4152 = vmatpush.msra.mxu0 0.0
        %4153 = vmatpush.msra.mxu0 0.0
        %v4154 = vand.u32 %v1695, 4294901760
        %4155 = vmatpush.msra.mxu0 %v4154
        %v4156 = vand.u32 %v1691, 4294901760
        %4157 = vmatpush.msra.mxu0 %v4156
        %v4158 = vand.u32 %v1754, 4294901760
        %v4159 = vsub.f32 %v1754, %v4158
        %v4160 = vand.u32 %v4159, 4294901760
        %4161 = vmatmul.f32.gmra.mxu0 %v4160
        %v4162 = vpop.f32.mrf.mxu0
        %v4163 = vadd.f32 %v4133, %v4162
        %v4164 = vand.u32 %v1757, 4294901760
        %v4165 = vsub.f32 %v1757, %v4164
        %v4166 = vand.u32 %v4165, 4294901760
        %4167 = vmatmul.f32.gmra.mxu0 %v4166
        %v4168 = vpop.f32.mrf.mxu0
        %v4169 = vadd.f32 %v4138, %v4168
        %4170 = vdwg.mxu0
        %4171 = vmatpush.msra.mxu0 0.0
        %4172 = vmatpush.msra.mxu0 0.0
        %4173 = vmatpush.msra.mxu0 0.0
        %4174 = vmatpush.msra.mxu0 0.0
        %4175 = vmatpush.msra.mxu0 0.0
        %4176 = vmatpush.msra.mxu0 0.0
        %4177 = vmatpush.msra.mxu0 0.0
        %4178 = vmatpush.msra.mxu0 0.0
        %4179 = vmatpush.msra.mxu0 0.0
        %4180 = vmatpush.msra.mxu0 0.0
        %4181 = vmatpush.msra.mxu0 0.0
        %4182 = vmatpush.msra.mxu0 0.0
        %4183 = vmatpush.msra.mxu0 0.0
        %4184 = vmatpush.msra.mxu0 0.0
        %v4185 = vand.u32 %v1695, 4294901760
        %v4186 = vsub.f32 %v1695, %v4185
        %v4187 = vand.u32 %v4186, 4294901760
        %4188 = vmatpush.msra.mxu0 %v4187
        %v4189 = vand.u32 %v1691, 4294901760
        %v4190 = vsub.f32 %v1691, %v4189
        %v4191 = vand.u32 %v4190, 4294901760
        %4192 = vmatpush.msra.mxu0 %v4191
        %v4193 = vand.u32 %v1754, 4294901760
        %4194 = vmatmul.f32.gmra.mxu0 %v4193
        %v4195 = vpop.f32.mrf.mxu0
        %v4196 = vadd.f32 %v4163, %v4195
        %v4197 = vand.u32 %v1757, 4294901760
        %4198 = vmatmul.f32.gmra.mxu0 %v4197
        %v4199 = vpop.f32.mrf.mxu0
        %v4200 = vadd.f32 %v4169, %v4199
        %4201 = vdwg.mxu0
        %4202 = vmatpush.msra.mxu0 0.0
        %4203 = vmatpush.msra.mxu0 0.0
        %4204 = vmatpush.msra.mxu0 0.0
        %4205 = vmatpush.msra.mxu0 0.0
        %4206 = vmatpush.msra.mxu0 0.0
        %4207 = vmatpush.msra.mxu0 0.0
        %4208 = vmatpush.msra.mxu0 0.0
        %4209 = vmatpush.msra.mxu0 0.0
        %4210 = vmatpush.msra.mxu0 0.0
        %4211 = vmatpush.msra.mxu0 0.0
        %4212 = vmatpush.msra.mxu0 0.0
        %4213 = vmatpush.msra.mxu0 0.0
        %4214 = vmatpush.msra.mxu0 0.0
        %4215 = vmatpush.msra.mxu0 0.0
        %v4216 = vand.u32 %v1695, 4294901760
        %4217 = vmatpush.msra.mxu0 %v4216
        %v4218 = vand.u32 %v1691, 4294901760
        %4219 = vmatpush.msra.mxu0 %v4218
        %v4220 = vand.u32 %v1754, 4294901760
        %4221 = vmatmul.f32.gmra.mxu0 %v4220
        %v4222 = vpop.f32.mrf.mxu0
        %v4223 = vadd.f32 %v4196, %v4222
        %v4224 = vand.u32 %v1757, 4294901760
        %4225 = vmatmul.f32.gmra.mxu0 %v4224
        %v4226 = vpop.f32.mrf.mxu0
        %v4227 = vadd.f32 %v4200, %v4226
        %4228 = vdwg.mxu0
        %4229 = vmatpush.msra.mxu0 0.0
        %4230 = vmatpush.msra.mxu0 0.0
        %4231 = vmatpush.msra.mxu0 0.0
        %4232 = vmatpush.msra.mxu0 0.0
        %4233 = vmatpush.msra.mxu0 0.0
        %4234 = vmatpush.msra.mxu0 0.0
        %4235 = vmatpush.msra.mxu0 0.0
        %4236 = vmatpush.msra.mxu0 0.0
        %4237 = vmatpush.msra.mxu0 0.0
        %4238 = vmatpush.msra.mxu0 0.0
        %4239 = vmatpush.msra.mxu0 0.0
        %4240 = vmatpush.msra.mxu0 0.0
        %4241 = vmatpush.msra.mxu0 0.0
        %4242 = vmatpush.msra.mxu0 0.0
        %v4243 = vand.u32 %v1703, 4294901760
        %4244 = vmatpush.msra.mxu0 %v4243
        %v4245 = vand.u32 %v1699, 4294901760
        %4246 = vmatpush.msra.mxu0 %v4245
        %v4247 = vand.u32 %v1754, 4294901760
        %v4248 = vsub.f32 %v1754, %v4247
        %v4249 = vand.u32 %v4248, 4294901760
        %v4250 = vsub.f32 %v4248, %v4249
        %v4251 = vand.u32 %v4250, 4294901760
        %4252 = vmatmul.f32.gmra.mxu0 %v4251
        %v4253 = vpop.f32.mrf.mxu0
        %v4254 = vadd.f32 0.0, %v4253
        %v4255 = vand.u32 %v1757, 4294901760
        %v4256 = vsub.f32 %v1757, %v4255
        %v4257 = vand.u32 %v4256, 4294901760
        %v4258 = vsub.f32 %v4256, %v4257
        %v4259 = vand.u32 %v4258, 4294901760
        %4260 = vmatmul.f32.gmra.mxu0 %v4259
        %v4261 = vpop.f32.mrf.mxu0
        %v4262 = vadd.f32 0.0, %v4261
        %4263 = vdwg.mxu0
        %4264 = vmatpush.msra.mxu0 0.0
        %4265 = vmatpush.msra.mxu0 0.0
        %4266 = vmatpush.msra.mxu0 0.0
        %4267 = vmatpush.msra.mxu0 0.0
        %4268 = vmatpush.msra.mxu0 0.0
        %4269 = vmatpush.msra.mxu0 0.0
        %4270 = vmatpush.msra.mxu0 0.0
        %4271 = vmatpush.msra.mxu0 0.0
        %4272 = vmatpush.msra.mxu0 0.0
        %4273 = vmatpush.msra.mxu0 0.0
        %4274 = vmatpush.msra.mxu0 0.0
        %4275 = vmatpush.msra.mxu0 0.0
        %4276 = vmatpush.msra.mxu0 0.0
        %4277 = vmatpush.msra.mxu0 0.0
        %v4278 = vand.u32 %v1703, 4294901760
        %v4279 = vsub.f32 %v1703, %v4278
        %v4280 = vand.u32 %v4279, 4294901760
        %v4281 = vsub.f32 %v4279, %v4280
        %v4282 = vand.u32 %v4281, 4294901760
        %4283 = vmatpush.msra.mxu0 %v4282
        %v4284 = vand.u32 %v1699, 4294901760
        %v4285 = vsub.f32 %v1699, %v4284
        %v4286 = vand.u32 %v4285, 4294901760
        %v4287 = vsub.f32 %v4285, %v4286
        %v4288 = vand.u32 %v4287, 4294901760
        %4289 = vmatpush.msra.mxu0 %v4288
        %v4290 = vand.u32 %v1754, 4294901760
        %4291 = vmatmul.f32.gmra.mxu0 %v4290
        %v4292 = vpop.f32.mrf.mxu0
        %v4293 = vadd.f32 %v4254, %v4292
        %v4294 = vand.u32 %v1757, 4294901760
        %4295 = vmatmul.f32.gmra.mxu0 %v4294
        %v4296 = vpop.f32.mrf.mxu0
        %v4297 = vadd.f32 %v4262, %v4296
        %4298 = vdwg.mxu0
        %4299 = vmatpush.msra.mxu0 0.0
        %4300 = vmatpush.msra.mxu0 0.0
        %4301 = vmatpush.msra.mxu0 0.0
        %4302 = vmatpush.msra.mxu0 0.0
        %4303 = vmatpush.msra.mxu0 0.0
        %4304 = vmatpush.msra.mxu0 0.0
        %4305 = vmatpush.msra.mxu0 0.0
        %4306 = vmatpush.msra.mxu0 0.0
        %4307 = vmatpush.msra.mxu0 0.0
        %4308 = vmatpush.msra.mxu0 0.0
        %4309 = vmatpush.msra.mxu0 0.0
        %4310 = vmatpush.msra.mxu0 0.0
        %4311 = vmatpush.msra.mxu0 0.0
        %4312 = vmatpush.msra.mxu0 0.0
        %v4313 = vand.u32 %v1703, 4294901760
        %v4314 = vsub.f32 %v1703, %v4313
        %4315 = vmatpush.msra.mxu0 %v4314
        %v4316 = vand.u32 %v1699, 4294901760
        %v4317 = vsub.f32 %v1699, %v4316
        %4318 = vmatpush.msra.mxu0 %v4317
        %v4319 = vand.u32 %v1754, 4294901760
        %v4320 = vsub.f32 %v1754, %v4319
        %4321 = vmatmul.f32.gmra.mxu0 %v4320
        %v4322 = vpop.f32.mrf.mxu0
        %v4323 = vadd.f32 %v4293, %v4322
        %v4324 = vand.u32 %v1757, 4294901760
        %v4325 = vsub.f32 %v1757, %v4324
        %4326 = vmatmul.f32.gmra.mxu0 %v4325
        %v4327 = vpop.f32.mrf.mxu0
        %v4328 = vadd.f32 %v4297, %v4327
        %4329 = vdwg.mxu0
        %4330 = vmatpush.msra.mxu0 0.0
        %4331 = vmatpush.msra.mxu0 0.0
        %4332 = vmatpush.msra.mxu0 0.0
        %4333 = vmatpush.msra.mxu0 0.0
        %4334 = vmatpush.msra.mxu0 0.0
        %4335 = vmatpush.msra.mxu0 0.0
        %4336 = vmatpush.msra.mxu0 0.0
        %4337 = vmatpush.msra.mxu0 0.0
        %4338 = vmatpush.msra.mxu0 0.0
        %4339 = vmatpush.msra.mxu0 0.0
        %4340 = vmatpush.msra.mxu0 0.0
        %4341 = vmatpush.msra.mxu0 0.0
        %4342 = vmatpush.msra.mxu0 0.0
        %4343 = vmatpush.msra.mxu0 0.0
        %v4344 = vand.u32 %v1703, 4294901760
        %4345 = vmatpush.msra.mxu0 %v4344
        %v4346 = vand.u32 %v1699, 4294901760
        %4347 = vmatpush.msra.mxu0 %v4346
        %v4348 = vand.u32 %v1754, 4294901760
        %v4349 = vsub.f32 %v1754, %v4348
        %v4350 = vand.u32 %v4349, 4294901760
        %4351 = vmatmul.f32.gmra.mxu0 %v4350
        %v4352 = vpop.f32.mrf.mxu0
        %v4353 = vadd.f32 %v4323, %v4352
        %v4354 = vand.u32 %v1757, 4294901760
        %v4355 = vsub.f32 %v1757, %v4354
        %v4356 = vand.u32 %v4355, 4294901760
        %4357 = vmatmul.f32.gmra.mxu0 %v4356
        %v4358 = vpop.f32.mrf.mxu0
        %v4359 = vadd.f32 %v4328, %v4358
        %4360 = vdwg.mxu0
        %4361 = vmatpush.msra.mxu0 0.0
        %4362 = vmatpush.msra.mxu0 0.0
        %4363 = vmatpush.msra.mxu0 0.0
        %4364 = vmatpush.msra.mxu0 0.0
        %4365 = vmatpush.msra.mxu0 0.0
        %4366 = vmatpush.msra.mxu0 0.0
        %4367 = vmatpush.msra.mxu0 0.0
        %4368 = vmatpush.msra.mxu0 0.0
        %4369 = vmatpush.msra.mxu0 0.0
        %4370 = vmatpush.msra.mxu0 0.0
        %4371 = vmatpush.msra.mxu0 0.0
        %4372 = vmatpush.msra.mxu0 0.0
        %4373 = vmatpush.msra.mxu0 0.0
        %4374 = vmatpush.msra.mxu0 0.0
        %v4375 = vand.u32 %v1703, 4294901760
        %v4376 = vsub.f32 %v1703, %v4375
        %v4377 = vand.u32 %v4376, 4294901760
        %4378 = vmatpush.msra.mxu0 %v4377
        %v4379 = vand.u32 %v1699, 4294901760
        %v4380 = vsub.f32 %v1699, %v4379
        %v4381 = vand.u32 %v4380, 4294901760
        %4382 = vmatpush.msra.mxu0 %v4381
        %v4383 = vand.u32 %v1754, 4294901760
        %4384 = vmatmul.f32.gmra.mxu0 %v4383
        %v4385 = vpop.f32.mrf.mxu0
        %v4386 = vadd.f32 %v4353, %v4385
        %v4387 = vand.u32 %v1757, 4294901760
        %4388 = vmatmul.f32.gmra.mxu0 %v4387
        %v4389 = vpop.f32.mrf.mxu0
        %v4390 = vadd.f32 %v4359, %v4389
        %4391 = vdwg.mxu0
        %4392 = vmatpush.msra.mxu0 0.0
        %4393 = vmatpush.msra.mxu0 0.0
        %4394 = vmatpush.msra.mxu0 0.0
        %4395 = vmatpush.msra.mxu0 0.0
        %4396 = vmatpush.msra.mxu0 0.0
        %4397 = vmatpush.msra.mxu0 0.0
        %4398 = vmatpush.msra.mxu0 0.0
        %4399 = vmatpush.msra.mxu0 0.0
        %4400 = vmatpush.msra.mxu0 0.0
        %4401 = vmatpush.msra.mxu0 0.0
        %4402 = vmatpush.msra.mxu0 0.0
        %4403 = vmatpush.msra.mxu0 0.0
        %4404 = vmatpush.msra.mxu0 0.0
        %4405 = vmatpush.msra.mxu0 0.0
        %v4406 = vand.u32 %v1703, 4294901760
        %4407 = vmatpush.msra.mxu0 %v4406
        %v4408 = vand.u32 %v1699, 4294901760
        %4409 = vmatpush.msra.mxu0 %v4408
        %v4410 = vand.u32 %v1754, 4294901760
        %4411 = vmatmul.f32.gmra.mxu0 %v4410
        %v4412 = vpop.f32.mrf.mxu0
        %v4413 = vadd.f32 %v4386, %v4412
        %v4414 = vand.u32 %v1757, 4294901760
        %4415 = vmatmul.f32.gmra.mxu0 %v4414
        %v4416 = vpop.f32.mrf.mxu0
        %v4417 = vadd.f32 %v4390, %v4416
        %4418 = vdwg.mxu0
        %4419 = vmatpush.msra.mxu0 0.0
        %4420 = vmatpush.msra.mxu0 0.0
        %4421 = vmatpush.msra.mxu0 0.0
        %4422 = vmatpush.msra.mxu0 0.0
        %4423 = vmatpush.msra.mxu0 0.0
        %4424 = vmatpush.msra.mxu0 0.0
        %4425 = vmatpush.msra.mxu0 0.0
        %4426 = vmatpush.msra.mxu0 0.0
        %4427 = vmatpush.msra.mxu0 0.0
        %4428 = vmatpush.msra.mxu0 0.0
        %4429 = vmatpush.msra.mxu0 0.0
        %4430 = vmatpush.msra.mxu0 0.0
        %4431 = vmatpush.msra.mxu0 0.0
        %4432 = vmatpush.msra.mxu0 0.0
        %v4433 = vand.u32 %v1711, 4294901760
        %4434 = vmatpush.msra.mxu0 %v4433
        %v4435 = vand.u32 %v1707, 4294901760
        %4436 = vmatpush.msra.mxu0 %v4435
        %v4437 = vand.u32 %v1754, 4294901760
        %v4438 = vsub.f32 %v1754, %v4437
        %v4439 = vand.u32 %v4438, 4294901760
        %v4440 = vsub.f32 %v4438, %v4439
        %v4441 = vand.u32 %v4440, 4294901760
        %4442 = vmatmul.f32.gmra.mxu0 %v4441
        %v4443 = vpop.f32.mrf.mxu0
        %v4444 = vadd.f32 0.0, %v4443
        %v4445 = vand.u32 %v1757, 4294901760
        %v4446 = vsub.f32 %v1757, %v4445
        %v4447 = vand.u32 %v4446, 4294901760
        %v4448 = vsub.f32 %v4446, %v4447
        %v4449 = vand.u32 %v4448, 4294901760
        %4450 = vmatmul.f32.gmra.mxu0 %v4449
        %v4451 = vpop.f32.mrf.mxu0
        %v4452 = vadd.f32 0.0, %v4451
        %4453 = vdwg.mxu0
        %4454 = vmatpush.msra.mxu0 0.0
        %4455 = vmatpush.msra.mxu0 0.0
        %4456 = vmatpush.msra.mxu0 0.0
        %4457 = vmatpush.msra.mxu0 0.0
        %4458 = vmatpush.msra.mxu0 0.0
        %4459 = vmatpush.msra.mxu0 0.0
        %4460 = vmatpush.msra.mxu0 0.0
        %4461 = vmatpush.msra.mxu0 0.0
        %4462 = vmatpush.msra.mxu0 0.0
        %4463 = vmatpush.msra.mxu0 0.0
        %4464 = vmatpush.msra.mxu0 0.0
        %4465 = vmatpush.msra.mxu0 0.0
        %4466 = vmatpush.msra.mxu0 0.0
        %4467 = vmatpush.msra.mxu0 0.0
        %v4468 = vand.u32 %v1711, 4294901760
        %v4469 = vsub.f32 %v1711, %v4468
        %v4470 = vand.u32 %v4469, 4294901760
        %v4471 = vsub.f32 %v4469, %v4470
        %v4472 = vand.u32 %v4471, 4294901760
        %4473 = vmatpush.msra.mxu0 %v4472
        %v4474 = vand.u32 %v1707, 4294901760
        %v4475 = vsub.f32 %v1707, %v4474
        %v4476 = vand.u32 %v4475, 4294901760
        %v4477 = vsub.f32 %v4475, %v4476
        %v4478 = vand.u32 %v4477, 4294901760
        %4479 = vmatpush.msra.mxu0 %v4478
        %v4480 = vand.u32 %v1754, 4294901760
        %4481 = vmatmul.f32.gmra.mxu0 %v4480
        %v4482 = vpop.f32.mrf.mxu0
        %v4483 = vadd.f32 %v4444, %v4482
        %v4484 = vand.u32 %v1757, 4294901760
        %4485 = vmatmul.f32.gmra.mxu0 %v4484
        %v4486 = vpop.f32.mrf.mxu0
        %v4487 = vadd.f32 %v4452, %v4486
        %4488 = vdwg.mxu0
        %4489 = vmatpush.msra.mxu0 0.0
        %4490 = vmatpush.msra.mxu0 0.0
        %4491 = vmatpush.msra.mxu0 0.0
        %4492 = vmatpush.msra.mxu0 0.0
        %4493 = vmatpush.msra.mxu0 0.0
        %4494 = vmatpush.msra.mxu0 0.0
        %4495 = vmatpush.msra.mxu0 0.0
        %4496 = vmatpush.msra.mxu0 0.0
        %4497 = vmatpush.msra.mxu0 0.0
        %4498 = vmatpush.msra.mxu0 0.0
        %4499 = vmatpush.msra.mxu0 0.0
        %4500 = vmatpush.msra.mxu0 0.0
        %4501 = vmatpush.msra.mxu0 0.0
        %4502 = vmatpush.msra.mxu0 0.0
        %v4503 = vand.u32 %v1711, 4294901760
        %v4504 = vsub.f32 %v1711, %v4503
        %4505 = vmatpush.msra.mxu0 %v4504
        %v4506 = vand.u32 %v1707, 4294901760
        %v4507 = vsub.f32 %v1707, %v4506
        %4508 = vmatpush.msra.mxu0 %v4507
        %v4509 = vand.u32 %v1754, 4294901760
        %v4510 = vsub.f32 %v1754, %v4509
        %4511 = vmatmul.f32.gmra.mxu0 %v4510
        %v4512 = vpop.f32.mrf.mxu0
        %v4513 = vadd.f32 %v4483, %v4512
        %v4514 = vand.u32 %v1757, 4294901760
        %v4515 = vsub.f32 %v1757, %v4514
        %4516 = vmatmul.f32.gmra.mxu0 %v4515
        %v4517 = vpop.f32.mrf.mxu0
        %v4518 = vadd.f32 %v4487, %v4517
        %4519 = vdwg.mxu0
        %4520 = vmatpush.msra.mxu0 0.0
        %4521 = vmatpush.msra.mxu0 0.0
        %4522 = vmatpush.msra.mxu0 0.0
        %4523 = vmatpush.msra.mxu0 0.0
        %4524 = vmatpush.msra.mxu0 0.0
        %4525 = vmatpush.msra.mxu0 0.0
        %4526 = vmatpush.msra.mxu0 0.0
        %4527 = vmatpush.msra.mxu0 0.0
        %4528 = vmatpush.msra.mxu0 0.0
        %4529 = vmatpush.msra.mxu0 0.0
        %4530 = vmatpush.msra.mxu0 0.0
        %4531 = vmatpush.msra.mxu0 0.0
        %4532 = vmatpush.msra.mxu0 0.0
        %4533 = vmatpush.msra.mxu0 0.0
        %v4534 = vand.u32 %v1711, 4294901760
        %4535 = vmatpush.msra.mxu0 %v4534
        %v4536 = vand.u32 %v1707, 4294901760
        %4537 = vmatpush.msra.mxu0 %v4536
        %v4538 = vand.u32 %v1754, 4294901760
        %v4539 = vsub.f32 %v1754, %v4538
        %v4540 = vand.u32 %v4539, 4294901760
        %4541 = vmatmul.f32.gmra.mxu0 %v4540
        %v4542 = vpop.f32.mrf.mxu0
        %v4543 = vadd.f32 %v4513, %v4542
        %v4544 = vand.u32 %v1757, 4294901760
        %v4545 = vsub.f32 %v1757, %v4544
        %v4546 = vand.u32 %v4545, 4294901760
        %4547 = vmatmul.f32.gmra.mxu0 %v4546
        %v4548 = vpop.f32.mrf.mxu0
        %v4549 = vadd.f32 %v4518, %v4548
        %4550 = vdwg.mxu0
        %4551 = vmatpush.msra.mxu0 0.0
        %4552 = vmatpush.msra.mxu0 0.0
        %4553 = vmatpush.msra.mxu0 0.0
        %4554 = vmatpush.msra.mxu0 0.0
        %4555 = vmatpush.msra.mxu0 0.0
        %4556 = vmatpush.msra.mxu0 0.0
        %4557 = vmatpush.msra.mxu0 0.0
        %4558 = vmatpush.msra.mxu0 0.0
        %4559 = vmatpush.msra.mxu0 0.0
        %4560 = vmatpush.msra.mxu0 0.0
        %4561 = vmatpush.msra.mxu0 0.0
        %4562 = vmatpush.msra.mxu0 0.0
        %4563 = vmatpush.msra.mxu0 0.0
        %4564 = vmatpush.msra.mxu0 0.0
        %v4565 = vand.u32 %v1711, 4294901760
        %v4566 = vsub.f32 %v1711, %v4565
        %v4567 = vand.u32 %v4566, 4294901760
        %4568 = vmatpush.msra.mxu0 %v4567
        %v4569 = vand.u32 %v1707, 4294901760
        %v4570 = vsub.f32 %v1707, %v4569
        %v4571 = vand.u32 %v4570, 4294901760
        %4572 = vmatpush.msra.mxu0 %v4571
        %v4573 = vand.u32 %v1754, 4294901760
        %4574 = vmatmul.f32.gmra.mxu0 %v4573
        %v4575 = vpop.f32.mrf.mxu0
        %v4576 = vadd.f32 %v4543, %v4575
        %v4577 = vand.u32 %v1757, 4294901760
        %4578 = vmatmul.f32.gmra.mxu0 %v4577
        %v4579 = vpop.f32.mrf.mxu0
        %v4580 = vadd.f32 %v4549, %v4579
        %4581 = vdwg.mxu0
        %4582 = vmatpush.msra.mxu0 0.0
        %4583 = vmatpush.msra.mxu0 0.0
        %4584 = vmatpush.msra.mxu0 0.0
        %4585 = vmatpush.msra.mxu0 0.0
        %4586 = vmatpush.msra.mxu0 0.0
        %4587 = vmatpush.msra.mxu0 0.0
        %4588 = vmatpush.msra.mxu0 0.0
        %4589 = vmatpush.msra.mxu0 0.0
        %4590 = vmatpush.msra.mxu0 0.0
        %4591 = vmatpush.msra.mxu0 0.0
        %4592 = vmatpush.msra.mxu0 0.0
        %4593 = vmatpush.msra.mxu0 0.0
        %4594 = vmatpush.msra.mxu0 0.0
        %4595 = vmatpush.msra.mxu0 0.0
        %v4596 = vand.u32 %v1711, 4294901760
        %4597 = vmatpush.msra.mxu0 %v4596
        %v4598 = vand.u32 %v1707, 4294901760
        %4599 = vmatpush.msra.mxu0 %v4598
        %v4600 = vand.u32 %v1754, 4294901760
        %4601 = vmatmul.f32.gmra.mxu0 %v4600
        %v4602 = vpop.f32.mrf.mxu0
        %v4603 = vadd.f32 %v4576, %v4602
        %v4604 = vand.u32 %v1757, 4294901760
        %4605 = vmatmul.f32.gmra.mxu0 %v4604
        %v4606 = vpop.f32.mrf.mxu0
        %v4607 = vadd.f32 %v4580, %v4606
        %4608 = vdwg.mxu0
        %4609 = vmatpush.msra.mxu0 0.0
        %4610 = vmatpush.msra.mxu0 0.0
        %4611 = vmatpush.msra.mxu0 0.0
        %4612 = vmatpush.msra.mxu0 0.0
        %4613 = vmatpush.msra.mxu0 0.0
        %4614 = vmatpush.msra.mxu0 0.0
        %4615 = vmatpush.msra.mxu0 0.0
        %4616 = vmatpush.msra.mxu0 0.0
        %4617 = vmatpush.msra.mxu0 0.0
        %4618 = vmatpush.msra.mxu0 0.0
        %4619 = vmatpush.msra.mxu0 0.0
        %4620 = vmatpush.msra.mxu0 0.0
        %4621 = vmatpush.msra.mxu0 0.0
        %4622 = vmatpush.msra.mxu0 0.0
        %v4623 = vand.u32 %v1719, 4294901760
        %4624 = vmatpush.msra.mxu0 %v4623
        %v4625 = vand.u32 %v1715, 4294901760
        %4626 = vmatpush.msra.mxu0 %v4625
        %v4627 = vand.u32 %v1754, 4294901760
        %v4628 = vsub.f32 %v1754, %v4627
        %v4629 = vand.u32 %v4628, 4294901760
        %v4630 = vsub.f32 %v4628, %v4629
        %v4631 = vand.u32 %v4630, 4294901760
        %4632 = vmatmul.f32.gmra.mxu0 %v4631
        %v4633 = vpop.f32.mrf.mxu0
        %v4634 = vadd.f32 0.0, %v4633
        %v4635 = vand.u32 %v1757, 4294901760
        %v4636 = vsub.f32 %v1757, %v4635
        %v4637 = vand.u32 %v4636, 4294901760
        %v4638 = vsub.f32 %v4636, %v4637
        %v4639 = vand.u32 %v4638, 4294901760
        %4640 = vmatmul.f32.gmra.mxu0 %v4639
        %v4641 = vpop.f32.mrf.mxu0
        %v4642 = vadd.f32 0.0, %v4641
        %4643 = vdwg.mxu0
        %4644 = vmatpush.msra.mxu0 0.0
        %4645 = vmatpush.msra.mxu0 0.0
        %4646 = vmatpush.msra.mxu0 0.0
        %4647 = vmatpush.msra.mxu0 0.0
        %4648 = vmatpush.msra.mxu0 0.0
        %4649 = vmatpush.msra.mxu0 0.0
        %4650 = vmatpush.msra.mxu0 0.0
        %4651 = vmatpush.msra.mxu0 0.0
        %4652 = vmatpush.msra.mxu0 0.0
        %4653 = vmatpush.msra.mxu0 0.0
        %4654 = vmatpush.msra.mxu0 0.0
        %4655 = vmatpush.msra.mxu0 0.0
        %4656 = vmatpush.msra.mxu0 0.0
        %4657 = vmatpush.msra.mxu0 0.0
        %v4658 = vand.u32 %v1719, 4294901760
        %v4659 = vsub.f32 %v1719, %v4658
        %v4660 = vand.u32 %v4659, 4294901760
        %v4661 = vsub.f32 %v4659, %v4660
        %v4662 = vand.u32 %v4661, 4294901760
        %4663 = vmatpush.msra.mxu0 %v4662
        %v4664 = vand.u32 %v1715, 4294901760
        %v4665 = vsub.f32 %v1715, %v4664
        %v4666 = vand.u32 %v4665, 4294901760
        %v4667 = vsub.f32 %v4665, %v4666
        %v4668 = vand.u32 %v4667, 4294901760
        %4669 = vmatpush.msra.mxu0 %v4668
        %v4670 = vand.u32 %v1754, 4294901760
        %4671 = vmatmul.f32.gmra.mxu0 %v4670
        %v4672 = vpop.f32.mrf.mxu0
        %v4673 = vadd.f32 %v4634, %v4672
        %v4674 = vand.u32 %v1757, 4294901760
        %4675 = vmatmul.f32.gmra.mxu0 %v4674
        %v4676 = vpop.f32.mrf.mxu0
        %v4677 = vadd.f32 %v4642, %v4676
        %4678 = vdwg.mxu0
        %4679 = vmatpush.msra.mxu0 0.0
        %4680 = vmatpush.msra.mxu0 0.0
        %4681 = vmatpush.msra.mxu0 0.0
        %4682 = vmatpush.msra.mxu0 0.0
        %4683 = vmatpush.msra.mxu0 0.0
        %4684 = vmatpush.msra.mxu0 0.0
        %4685 = vmatpush.msra.mxu0 0.0
        %4686 = vmatpush.msra.mxu0 0.0
        %4687 = vmatpush.msra.mxu0 0.0
        %4688 = vmatpush.msra.mxu0 0.0
        %4689 = vmatpush.msra.mxu0 0.0
        %4690 = vmatpush.msra.mxu0 0.0
        %4691 = vmatpush.msra.mxu0 0.0
        %4692 = vmatpush.msra.mxu0 0.0
        %v4693 = vand.u32 %v1719, 4294901760
        %v4694 = vsub.f32 %v1719, %v4693
        %4695 = vmatpush.msra.mxu0 %v4694
        %v4696 = vand.u32 %v1715, 4294901760
        %v4697 = vsub.f32 %v1715, %v4696
        %4698 = vmatpush.msra.mxu0 %v4697
        %v4699 = vand.u32 %v1754, 4294901760
        %v4700 = vsub.f32 %v1754, %v4699
        %4701 = vmatmul.f32.gmra.mxu0 %v4700
        %v4702 = vpop.f32.mrf.mxu0
        %v4703 = vadd.f32 %v4673, %v4702
        %v4704 = vand.u32 %v1757, 4294901760
        %v4705 = vsub.f32 %v1757, %v4704
        %4706 = vmatmul.f32.gmra.mxu0 %v4705
        %v4707 = vpop.f32.mrf.mxu0
        %v4708 = vadd.f32 %v4677, %v4707
        %4709 = vdwg.mxu0
        %4710 = vmatpush.msra.mxu0 0.0
        %4711 = vmatpush.msra.mxu0 0.0
        %4712 = vmatpush.msra.mxu0 0.0
        %4713 = vmatpush.msra.mxu0 0.0
        %4714 = vmatpush.msra.mxu0 0.0
        %4715 = vmatpush.msra.mxu0 0.0
        %4716 = vmatpush.msra.mxu0 0.0
        %4717 = vmatpush.msra.mxu0 0.0
        %4718 = vmatpush.msra.mxu0 0.0
        %4719 = vmatpush.msra.mxu0 0.0
        %4720 = vmatpush.msra.mxu0 0.0
        %4721 = vmatpush.msra.mxu0 0.0
        %4722 = vmatpush.msra.mxu0 0.0
        %4723 = vmatpush.msra.mxu0 0.0
        %v4724 = vand.u32 %v1719, 4294901760
        %4725 = vmatpush.msra.mxu0 %v4724
        %v4726 = vand.u32 %v1715, 4294901760
        %4727 = vmatpush.msra.mxu0 %v4726
        %v4728 = vand.u32 %v1754, 4294901760
        %v4729 = vsub.f32 %v1754, %v4728
        %v4730 = vand.u32 %v4729, 4294901760
        %4731 = vmatmul.f32.gmra.mxu0 %v4730
        %v4732 = vpop.f32.mrf.mxu0
        %v4733 = vadd.f32 %v4703, %v4732
        %v4734 = vand.u32 %v1757, 4294901760
        %v4735 = vsub.f32 %v1757, %v4734
        %v4736 = vand.u32 %v4735, 4294901760
        %4737 = vmatmul.f32.gmra.mxu0 %v4736
        %v4738 = vpop.f32.mrf.mxu0
        %v4739 = vadd.f32 %v4708, %v4738
        %4740 = vdwg.mxu0
        %4741 = vmatpush.msra.mxu0 0.0
        %4742 = vmatpush.msra.mxu0 0.0
        %4743 = vmatpush.msra.mxu0 0.0
        %4744 = vmatpush.msra.mxu0 0.0
        %4745 = vmatpush.msra.mxu0 0.0
        %4746 = vmatpush.msra.mxu0 0.0
        %4747 = vmatpush.msra.mxu0 0.0
        %4748 = vmatpush.msra.mxu0 0.0
        %4749 = vmatpush.msra.mxu0 0.0
        %4750 = vmatpush.msra.mxu0 0.0
        %4751 = vmatpush.msra.mxu0 0.0
        %4752 = vmatpush.msra.mxu0 0.0
        %4753 = vmatpush.msra.mxu0 0.0
        %4754 = vmatpush.msra.mxu0 0.0
        %v4755 = vand.u32 %v1719, 4294901760
        %v4756 = vsub.f32 %v1719, %v4755
        %v4757 = vand.u32 %v4756, 4294901760
        %4758 = vmatpush.msra.mxu0 %v4757
        %v4759 = vand.u32 %v1715, 4294901760
        %v4760 = vsub.f32 %v1715, %v4759
        %v4761 = vand.u32 %v4760, 4294901760
        %4762 = vmatpush.msra.mxu0 %v4761
        %v4763 = vand.u32 %v1754, 4294901760
        %4764 = vmatmul.f32.gmra.mxu0 %v4763
        %v4765 = vpop.f32.mrf.mxu0
        %v4766 = vadd.f32 %v4733, %v4765
        %v4767 = vand.u32 %v1757, 4294901760
        %4768 = vmatmul.f32.gmra.mxu0 %v4767
        %v4769 = vpop.f32.mrf.mxu0
        %v4770 = vadd.f32 %v4739, %v4769
        %4771 = vdwg.mxu0
        %4772 = vmatpush.msra.mxu0 0.0
        %4773 = vmatpush.msra.mxu0 0.0
        %4774 = vmatpush.msra.mxu0 0.0
        %4775 = vmatpush.msra.mxu0 0.0
        %4776 = vmatpush.msra.mxu0 0.0
        %4777 = vmatpush.msra.mxu0 0.0
        %4778 = vmatpush.msra.mxu0 0.0
        %4779 = vmatpush.msra.mxu0 0.0
        %4780 = vmatpush.msra.mxu0 0.0
        %4781 = vmatpush.msra.mxu0 0.0
        %4782 = vmatpush.msra.mxu0 0.0
        %4783 = vmatpush.msra.mxu0 0.0
        %4784 = vmatpush.msra.mxu0 0.0
        %4785 = vmatpush.msra.mxu0 0.0
        %v4786 = vand.u32 %v1719, 4294901760
        %4787 = vmatpush.msra.mxu0 %v4786
        %v4788 = vand.u32 %v1715, 4294901760
        %4789 = vmatpush.msra.mxu0 %v4788
        %v4790 = vand.u32 %v1754, 4294901760
        %4791 = vmatmul.f32.gmra.mxu0 %v4790
        %v4792 = vpop.f32.mrf.mxu0
        %v4793 = vadd.f32 %v4766, %v4792
        %v4794 = vand.u32 %v1757, 4294901760
        %4795 = vmatmul.f32.gmra.mxu0 %v4794
        %v4796 = vpop.f32.mrf.mxu0
        %v4797 = vadd.f32 %v4770, %v4796
        %4798 = vdwg.mxu0
        %4799 = vmatpush.msra.mxu0 0.0
        %4800 = vmatpush.msra.mxu0 0.0
        %4801 = vmatpush.msra.mxu0 0.0
        %4802 = vmatpush.msra.mxu0 0.0
        %4803 = vmatpush.msra.mxu0 0.0
        %4804 = vmatpush.msra.mxu0 0.0
        %4805 = vmatpush.msra.mxu0 0.0
        %4806 = vmatpush.msra.mxu0 0.0
        %4807 = vmatpush.msra.mxu0 0.0
        %4808 = vmatpush.msra.mxu0 0.0
        %4809 = vmatpush.msra.mxu0 0.0
        %4810 = vmatpush.msra.mxu0 0.0
        %4811 = vmatpush.msra.mxu0 0.0
        %4812 = vmatpush.msra.mxu0 0.0
        %v4813 = vand.u32 %v1727, 4294901760
        %4814 = vmatpush.msra.mxu0 %v4813
        %v4815 = vand.u32 %v1723, 4294901760
        %4816 = vmatpush.msra.mxu0 %v4815
        %v4817 = vand.u32 %v1754, 4294901760
        %v4818 = vsub.f32 %v1754, %v4817
        %v4819 = vand.u32 %v4818, 4294901760
        %v4820 = vsub.f32 %v4818, %v4819
        %v4821 = vand.u32 %v4820, 4294901760
        %4822 = vmatmul.f32.gmra.mxu0 %v4821
        %v4823 = vpop.f32.mrf.mxu0
        %v4824 = vadd.f32 0.0, %v4823
        %v4825 = vand.u32 %v1757, 4294901760
        %v4826 = vsub.f32 %v1757, %v4825
        %v4827 = vand.u32 %v4826, 4294901760
        %v4828 = vsub.f32 %v4826, %v4827
        %v4829 = vand.u32 %v4828, 4294901760
        %4830 = vmatmul.f32.gmra.mxu0 %v4829
        %v4831 = vpop.f32.mrf.mxu0
        %v4832 = vadd.f32 0.0, %v4831
        %4833 = vdwg.mxu0
        %4834 = vmatpush.msra.mxu0 0.0
        %4835 = vmatpush.msra.mxu0 0.0
        %4836 = vmatpush.msra.mxu0 0.0
        %4837 = vmatpush.msra.mxu0 0.0
        %4838 = vmatpush.msra.mxu0 0.0
        %4839 = vmatpush.msra.mxu0 0.0
        %4840 = vmatpush.msra.mxu0 0.0
        %4841 = vmatpush.msra.mxu0 0.0
        %4842 = vmatpush.msra.mxu0 0.0
        %4843 = vmatpush.msra.mxu0 0.0
        %4844 = vmatpush.msra.mxu0 0.0
        %4845 = vmatpush.msra.mxu0 0.0
        %4846 = vmatpush.msra.mxu0 0.0
        %4847 = vmatpush.msra.mxu0 0.0
        %v4848 = vand.u32 %v1727, 4294901760
        %v4849 = vsub.f32 %v1727, %v4848
        %v4850 = vand.u32 %v4849, 4294901760
        %v4851 = vsub.f32 %v4849, %v4850
        %v4852 = vand.u32 %v4851, 4294901760
        %4853 = vmatpush.msra.mxu0 %v4852
        %v4854 = vand.u32 %v1723, 4294901760
        %v4855 = vsub.f32 %v1723, %v4854
        %v4856 = vand.u32 %v4855, 4294901760
        %v4857 = vsub.f32 %v4855, %v4856
        %v4858 = vand.u32 %v4857, 4294901760
        %4859 = vmatpush.msra.mxu0 %v4858
        %v4860 = vand.u32 %v1754, 4294901760
        %4861 = vmatmul.f32.gmra.mxu0 %v4860
        %v4862 = vpop.f32.mrf.mxu0
        %v4863 = vadd.f32 %v4824, %v4862
        %v4864 = vand.u32 %v1757, 4294901760
        %4865 = vmatmul.f32.gmra.mxu0 %v4864
        %v4866 = vpop.f32.mrf.mxu0
        %v4867 = vadd.f32 %v4832, %v4866
        %4868 = vdwg.mxu0
        %4869 = vmatpush.msra.mxu0 0.0
        %4870 = vmatpush.msra.mxu0 0.0
        %4871 = vmatpush.msra.mxu0 0.0
        %4872 = vmatpush.msra.mxu0 0.0
        %4873 = vmatpush.msra.mxu0 0.0
        %4874 = vmatpush.msra.mxu0 0.0
        %4875 = vmatpush.msra.mxu0 0.0
        %4876 = vmatpush.msra.mxu0 0.0
        %4877 = vmatpush.msra.mxu0 0.0
        %4878 = vmatpush.msra.mxu0 0.0
        %4879 = vmatpush.msra.mxu0 0.0
        %4880 = vmatpush.msra.mxu0 0.0
        %4881 = vmatpush.msra.mxu0 0.0
        %4882 = vmatpush.msra.mxu0 0.0
        %v4883 = vand.u32 %v1727, 4294901760
        %v4884 = vsub.f32 %v1727, %v4883
        %4885 = vmatpush.msra.mxu0 %v4884
        %v4886 = vand.u32 %v1723, 4294901760
        %v4887 = vsub.f32 %v1723, %v4886
        %4888 = vmatpush.msra.mxu0 %v4887
        %v4889 = vand.u32 %v1754, 4294901760
        %v4890 = vsub.f32 %v1754, %v4889
        %4891 = vmatmul.f32.gmra.mxu0 %v4890
        %v4892 = vpop.f32.mrf.mxu0
        %v4893 = vadd.f32 %v4863, %v4892
        %v4894 = vand.u32 %v1757, 4294901760
        %v4895 = vsub.f32 %v1757, %v4894
        %4896 = vmatmul.f32.gmra.mxu0 %v4895
        %v4897 = vpop.f32.mrf.mxu0
        %v4898 = vadd.f32 %v4867, %v4897
        %4899 = vdwg.mxu0
        %4900 = vmatpush.msra.mxu0 0.0
        %4901 = vmatpush.msra.mxu0 0.0
        %4902 = vmatpush.msra.mxu0 0.0
        %4903 = vmatpush.msra.mxu0 0.0
        %4904 = vmatpush.msra.mxu0 0.0
        %4905 = vmatpush.msra.mxu0 0.0
        %4906 = vmatpush.msra.mxu0 0.0
        %4907 = vmatpush.msra.mxu0 0.0
        %4908 = vmatpush.msra.mxu0 0.0
        %4909 = vmatpush.msra.mxu0 0.0
        %4910 = vmatpush.msra.mxu0 0.0
        %4911 = vmatpush.msra.mxu0 0.0
        %4912 = vmatpush.msra.mxu0 0.0
        %4913 = vmatpush.msra.mxu0 0.0
        %v4914 = vand.u32 %v1727, 4294901760
        %4915 = vmatpush.msra.mxu0 %v4914
        %v4916 = vand.u32 %v1723, 4294901760
        %4917 = vmatpush.msra.mxu0 %v4916
        %v4918 = vand.u32 %v1754, 4294901760
        %v4919 = vsub.f32 %v1754, %v4918
        %v4920 = vand.u32 %v4919, 4294901760
        %4921 = vmatmul.f32.gmra.mxu0 %v4920
        %v4922 = vpop.f32.mrf.mxu0
        %v4923 = vadd.f32 %v4893, %v4922
        %v4924 = vand.u32 %v1757, 4294901760
        %v4925 = vsub.f32 %v1757, %v4924
        %v4926 = vand.u32 %v4925, 4294901760
        %4927 = vmatmul.f32.gmra.mxu0 %v4926
        %v4928 = vpop.f32.mrf.mxu0
        %v4929 = vadd.f32 %v4898, %v4928
        %4930 = vdwg.mxu0
        %4931 = vmatpush.msra.mxu0 0.0
        %4932 = vmatpush.msra.mxu0 0.0
        %4933 = vmatpush.msra.mxu0 0.0
        %4934 = vmatpush.msra.mxu0 0.0
        %4935 = vmatpush.msra.mxu0 0.0
        %4936 = vmatpush.msra.mxu0 0.0
        %4937 = vmatpush.msra.mxu0 0.0
        %4938 = vmatpush.msra.mxu0 0.0
        %4939 = vmatpush.msra.mxu0 0.0
        %4940 = vmatpush.msra.mxu0 0.0
        %4941 = vmatpush.msra.mxu0 0.0
        %4942 = vmatpush.msra.mxu0 0.0
        %4943 = vmatpush.msra.mxu0 0.0
        %4944 = vmatpush.msra.mxu0 0.0
        %v4945 = vand.u32 %v1727, 4294901760
        %v4946 = vsub.f32 %v1727, %v4945
        %v4947 = vand.u32 %v4946, 4294901760
        %4948 = vmatpush.msra.mxu0 %v4947
        %v4949 = vand.u32 %v1723, 4294901760
        %v4950 = vsub.f32 %v1723, %v4949
        %v4951 = vand.u32 %v4950, 4294901760
        %4952 = vmatpush.msra.mxu0 %v4951
        %v4953 = vand.u32 %v1754, 4294901760
        %4954 = vmatmul.f32.gmra.mxu0 %v4953
        %v4955 = vpop.f32.mrf.mxu0
        %v4956 = vadd.f32 %v4923, %v4955
        %v4957 = vand.u32 %v1757, 4294901760
        %4958 = vmatmul.f32.gmra.mxu0 %v4957
        %v4959 = vpop.f32.mrf.mxu0
        %v4960 = vadd.f32 %v4929, %v4959
        %4961 = vdwg.mxu0
        %4962 = vmatpush.msra.mxu0 0.0
        %4963 = vmatpush.msra.mxu0 0.0
        %4964 = vmatpush.msra.mxu0 0.0
        %4965 = vmatpush.msra.mxu0 0.0
        %4966 = vmatpush.msra.mxu0 0.0
        %4967 = vmatpush.msra.mxu0 0.0
        %4968 = vmatpush.msra.mxu0 0.0
        %4969 = vmatpush.msra.mxu0 0.0
        %4970 = vmatpush.msra.mxu0 0.0
        %4971 = vmatpush.msra.mxu0 0.0
        %4972 = vmatpush.msra.mxu0 0.0
        %4973 = vmatpush.msra.mxu0 0.0
        %4974 = vmatpush.msra.mxu0 0.0
        %4975 = vmatpush.msra.mxu0 0.0
        %v4976 = vand.u32 %v1727, 4294901760
        %4977 = vmatpush.msra.mxu0 %v4976
        %v4978 = vand.u32 %v1723, 4294901760
        %4979 = vmatpush.msra.mxu0 %v4978
        %v4980 = vand.u32 %v1754, 4294901760
        %4981 = vmatmul.f32.gmra.mxu0 %v4980
        %v4982 = vpop.f32.mrf.mxu0
        %v4983 = vadd.f32 %v4956, %v4982
        %v4984 = vand.u32 %v1757, 4294901760
        %4985 = vmatmul.f32.gmra.mxu0 %v4984
        %v4986 = vpop.f32.mrf.mxu0
        %v4987 = vadd.f32 %v4960, %v4986
        %4988 = vdwg.mxu0
        %4989 = vmatpush.msra.mxu0 0.0
        %4990 = vmatpush.msra.mxu0 0.0
        %4991 = vmatpush.msra.mxu0 0.0
        %4992 = vmatpush.msra.mxu0 0.0
        %4993 = vmatpush.msra.mxu0 0.0
        %4994 = vmatpush.msra.mxu0 0.0
        %4995 = vmatpush.msra.mxu0 0.0
        %4996 = vmatpush.msra.mxu0 0.0
        %4997 = vmatpush.msra.mxu0 0.0
        %4998 = vmatpush.msra.mxu0 0.0
        %4999 = vmatpush.msra.mxu0 0.0
        %5000 = vmatpush.msra.mxu0 0.0
        %5001 = vmatpush.msra.mxu0 0.0
        %5002 = vmatpush.msra.mxu0 0.0
        %v5003 = vand.u32 %v1735, 4294901760
        %5004 = vmatpush.msra.mxu0 %v5003
        %v5005 = vand.u32 %v1731, 4294901760
        %5006 = vmatpush.msra.mxu0 %v5005
        %v5007 = vand.u32 %v1754, 4294901760
        %v5008 = vsub.f32 %v1754, %v5007
        %v5009 = vand.u32 %v5008, 4294901760
        %v5010 = vsub.f32 %v5008, %v5009
        %v5011 = vand.u32 %v5010, 4294901760
        %5012 = vmatmul.f32.gmra.mxu0 %v5011
        %v5013 = vpop.f32.mrf.mxu0
        %v5014 = vadd.f32 0.0, %v5013
        %v5015 = vand.u32 %v1757, 4294901760
        %v5016 = vsub.f32 %v1757, %v5015
        %v5017 = vand.u32 %v5016, 4294901760
        %v5018 = vsub.f32 %v5016, %v5017
        %v5019 = vand.u32 %v5018, 4294901760
        %5020 = vmatmul.f32.gmra.mxu0 %v5019
        %v5021 = vpop.f32.mrf.mxu0
        %v5022 = vadd.f32 0.0, %v5021
        %5023 = vdwg.mxu0
        %5024 = vmatpush.msra.mxu0 0.0
        %5025 = vmatpush.msra.mxu0 0.0
        %5026 = vmatpush.msra.mxu0 0.0
        %5027 = vmatpush.msra.mxu0 0.0
        %5028 = vmatpush.msra.mxu0 0.0
        %5029 = vmatpush.msra.mxu0 0.0
        %5030 = vmatpush.msra.mxu0 0.0
        %5031 = vmatpush.msra.mxu0 0.0
        %5032 = vmatpush.msra.mxu0 0.0
        %5033 = vmatpush.msra.mxu0 0.0
        %5034 = vmatpush.msra.mxu0 0.0
        %5035 = vmatpush.msra.mxu0 0.0
        %5036 = vmatpush.msra.mxu0 0.0
        %5037 = vmatpush.msra.mxu0 0.0
        %v5038 = vand.u32 %v1735, 4294901760
        %v5039 = vsub.f32 %v1735, %v5038
        %v5040 = vand.u32 %v5039, 4294901760
        %v5041 = vsub.f32 %v5039, %v5040
        %v5042 = vand.u32 %v5041, 4294901760
        %5043 = vmatpush.msra.mxu0 %v5042
        %v5044 = vand.u32 %v1731, 4294901760
        %v5045 = vsub.f32 %v1731, %v5044
        %v5046 = vand.u32 %v5045, 4294901760
        %v5047 = vsub.f32 %v5045, %v5046
        %v5048 = vand.u32 %v5047, 4294901760
        %5049 = vmatpush.msra.mxu0 %v5048
        %v5050 = vand.u32 %v1754, 4294901760
        %5051 = vmatmul.f32.gmra.mxu0 %v5050
        %v5052 = vpop.f32.mrf.mxu0
        %v5053 = vadd.f32 %v5014, %v5052
        %v5054 = vand.u32 %v1757, 4294901760
        %5055 = vmatmul.f32.gmra.mxu0 %v5054
        %v5056 = vpop.f32.mrf.mxu0
        %v5057 = vadd.f32 %v5022, %v5056
        %5058 = vdwg.mxu0
        %5059 = vmatpush.msra.mxu0 0.0
        %5060 = vmatpush.msra.mxu0 0.0
        %5061 = vmatpush.msra.mxu0 0.0
        %5062 = vmatpush.msra.mxu0 0.0
        %5063 = vmatpush.msra.mxu0 0.0
        %5064 = vmatpush.msra.mxu0 0.0
        %5065 = vmatpush.msra.mxu0 0.0
        %5066 = vmatpush.msra.mxu0 0.0
        %5067 = vmatpush.msra.mxu0 0.0
        %5068 = vmatpush.msra.mxu0 0.0
        %5069 = vmatpush.msra.mxu0 0.0
        %5070 = vmatpush.msra.mxu0 0.0
        %5071 = vmatpush.msra.mxu0 0.0
        %5072 = vmatpush.msra.mxu0 0.0
        %v5073 = vand.u32 %v1735, 4294901760
        %v5074 = vsub.f32 %v1735, %v5073
        %5075 = vmatpush.msra.mxu0 %v5074
        %v5076 = vand.u32 %v1731, 4294901760
        %v5077 = vsub.f32 %v1731, %v5076
        %5078 = vmatpush.msra.mxu0 %v5077
        %v5079 = vand.u32 %v1754, 4294901760
        %v5080 = vsub.f32 %v1754, %v5079
        %5081 = vmatmul.f32.gmra.mxu0 %v5080
        %v5082 = vpop.f32.mrf.mxu0
        %v5083 = vadd.f32 %v5053, %v5082
        %v5084 = vand.u32 %v1757, 4294901760
        %v5085 = vsub.f32 %v1757, %v5084
        %5086 = vmatmul.f32.gmra.mxu0 %v5085
        %v5087 = vpop.f32.mrf.mxu0
        %v5088 = vadd.f32 %v5057, %v5087
        %5089 = vdwg.mxu0
        %5090 = vmatpush.msra.mxu0 0.0
        %5091 = vmatpush.msra.mxu0 0.0
        %5092 = vmatpush.msra.mxu0 0.0
        %5093 = vmatpush.msra.mxu0 0.0
        %5094 = vmatpush.msra.mxu0 0.0
        %5095 = vmatpush.msra.mxu0 0.0
        %5096 = vmatpush.msra.mxu0 0.0
        %5097 = vmatpush.msra.mxu0 0.0
        %5098 = vmatpush.msra.mxu0 0.0
        %5099 = vmatpush.msra.mxu0 0.0
        %5100 = vmatpush.msra.mxu0 0.0
        %5101 = vmatpush.msra.mxu0 0.0
        %5102 = vmatpush.msra.mxu0 0.0
        %5103 = vmatpush.msra.mxu0 0.0
        %v5104 = vand.u32 %v1735, 4294901760
        %5105 = vmatpush.msra.mxu0 %v5104
        %v5106 = vand.u32 %v1731, 4294901760
        %5107 = vmatpush.msra.mxu0 %v5106
        %v5108 = vand.u32 %v1754, 4294901760
        %v5109 = vsub.f32 %v1754, %v5108
        %v5110 = vand.u32 %v5109, 4294901760
        %5111 = vmatmul.f32.gmra.mxu0 %v5110
        %v5112 = vpop.f32.mrf.mxu0
        %v5113 = vadd.f32 %v5083, %v5112
        %v5114 = vand.u32 %v1757, 4294901760
        %v5115 = vsub.f32 %v1757, %v5114
        %v5116 = vand.u32 %v5115, 4294901760
        %5117 = vmatmul.f32.gmra.mxu0 %v5116
        %v5118 = vpop.f32.mrf.mxu0
        %v5119 = vadd.f32 %v5088, %v5118
        %5120 = vdwg.mxu0
        %5121 = vmatpush.msra.mxu0 0.0
        %5122 = vmatpush.msra.mxu0 0.0
        %5123 = vmatpush.msra.mxu0 0.0
        %5124 = vmatpush.msra.mxu0 0.0
        %5125 = vmatpush.msra.mxu0 0.0
        %5126 = vmatpush.msra.mxu0 0.0
        %5127 = vmatpush.msra.mxu0 0.0
        %5128 = vmatpush.msra.mxu0 0.0
        %5129 = vmatpush.msra.mxu0 0.0
        %5130 = vmatpush.msra.mxu0 0.0
        %5131 = vmatpush.msra.mxu0 0.0
        %5132 = vmatpush.msra.mxu0 0.0
        %5133 = vmatpush.msra.mxu0 0.0
        %5134 = vmatpush.msra.mxu0 0.0
        %v5135 = vand.u32 %v1735, 4294901760
        %v5136 = vsub.f32 %v1735, %v5135
        %v5137 = vand.u32 %v5136, 4294901760
        %5138 = vmatpush.msra.mxu0 %v5137
        %v5139 = vand.u32 %v1731, 4294901760
        %v5140 = vsub.f32 %v1731, %v5139
        %v5141 = vand.u32 %v5140, 4294901760
        %5142 = vmatpush.msra.mxu0 %v5141
        %v5143 = vand.u32 %v1754, 4294901760
        %5144 = vmatmul.f32.gmra.mxu0 %v5143
        %v5145 = vpop.f32.mrf.mxu0
        %v5146 = vadd.f32 %v5113, %v5145
        %v5147 = vand.u32 %v1757, 4294901760
        %5148 = vmatmul.f32.gmra.mxu0 %v5147
        %v5149 = vpop.f32.mrf.mxu0
        %v5150 = vadd.f32 %v5119, %v5149
        %5151 = vdwg.mxu0
        %5152 = vmatpush.msra.mxu0 0.0
        %5153 = vmatpush.msra.mxu0 0.0
        %5154 = vmatpush.msra.mxu0 0.0
        %5155 = vmatpush.msra.mxu0 0.0
        %5156 = vmatpush.msra.mxu0 0.0
        %5157 = vmatpush.msra.mxu0 0.0
        %5158 = vmatpush.msra.mxu0 0.0
        %5159 = vmatpush.msra.mxu0 0.0
        %5160 = vmatpush.msra.mxu0 0.0
        %5161 = vmatpush.msra.mxu0 0.0
        %5162 = vmatpush.msra.mxu0 0.0
        %5163 = vmatpush.msra.mxu0 0.0
        %5164 = vmatpush.msra.mxu0 0.0
        %5165 = vmatpush.msra.mxu0 0.0
        %v5166 = vand.u32 %v1735, 4294901760
        %5167 = vmatpush.msra.mxu0 %v5166
        %v5168 = vand.u32 %v1731, 4294901760
        %5169 = vmatpush.msra.mxu0 %v5168
        %v5170 = vand.u32 %v1754, 4294901760
        %5171 = vmatmul.f32.gmra.mxu0 %v5170
        %v5172 = vpop.f32.mrf.mxu0
        %v5173 = vadd.f32 %v5146, %v5172
        %v5174 = vand.u32 %v1757, 4294901760
        %5175 = vmatmul.f32.gmra.mxu0 %v5174
        %v5176 = vpop.f32.mrf.mxu0
        %v5177 = vadd.f32 %v5150, %v5176
        %5178 = vdwg.mxu0
        %5179 = vmatpush.msra.mxu0 0.0
        %5180 = vmatpush.msra.mxu0 0.0
        %5181 = vmatpush.msra.mxu0 0.0
        %5182 = vmatpush.msra.mxu0 0.0
        %5183 = vmatpush.msra.mxu0 0.0
        %5184 = vmatpush.msra.mxu0 0.0
        %5185 = vmatpush.msra.mxu0 0.0
        %5186 = vmatpush.msra.mxu0 0.0
        %5187 = vmatpush.msra.mxu0 0.0
        %5188 = vmatpush.msra.mxu0 0.0
        %5189 = vmatpush.msra.mxu0 0.0
        %5190 = vmatpush.msra.mxu0 0.0
        %5191 = vmatpush.msra.mxu0 0.0
        %5192 = vmatpush.msra.mxu0 0.0
        %v5193 = vand.u32 %v1743, 4294901760
        %5194 = vmatpush.msra.mxu0 %v5193
        %v5195 = vand.u32 %v1739, 4294901760
        %5196 = vmatpush.msra.mxu0 %v5195
        %v5197 = vand.u32 %v1754, 4294901760
        %v5198 = vsub.f32 %v1754, %v5197
        %v5199 = vand.u32 %v5198, 4294901760
        %v5200 = vsub.f32 %v5198, %v5199
        %v5201 = vand.u32 %v5200, 4294901760
        %5202 = vmatmul.f32.gmra.mxu0 %v5201
        %v5203 = vpop.f32.mrf.mxu0
        %v5204 = vadd.f32 0.0, %v5203
        %v5205 = vand.u32 %v1757, 4294901760
        %v5206 = vsub.f32 %v1757, %v5205
        %v5207 = vand.u32 %v5206, 4294901760
        %v5208 = vsub.f32 %v5206, %v5207
        %v5209 = vand.u32 %v5208, 4294901760
        %5210 = vmatmul.f32.gmra.mxu0 %v5209
        %v5211 = vpop.f32.mrf.mxu0
        %v5212 = vadd.f32 0.0, %v5211
        %5213 = vdwg.mxu0
        %5214 = vmatpush.msra.mxu0 0.0
        %5215 = vmatpush.msra.mxu0 0.0
        %5216 = vmatpush.msra.mxu0 0.0
        %5217 = vmatpush.msra.mxu0 0.0
        %5218 = vmatpush.msra.mxu0 0.0
        %5219 = vmatpush.msra.mxu0 0.0
        %5220 = vmatpush.msra.mxu0 0.0
        %5221 = vmatpush.msra.mxu0 0.0
        %5222 = vmatpush.msra.mxu0 0.0
        %5223 = vmatpush.msra.mxu0 0.0
        %5224 = vmatpush.msra.mxu0 0.0
        %5225 = vmatpush.msra.mxu0 0.0
        %5226 = vmatpush.msra.mxu0 0.0
        %5227 = vmatpush.msra.mxu0 0.0
        %v5228 = vand.u32 %v1743, 4294901760
        %v5229 = vsub.f32 %v1743, %v5228
        %v5230 = vand.u32 %v5229, 4294901760
        %v5231 = vsub.f32 %v5229, %v5230
        %v5232 = vand.u32 %v5231, 4294901760
        %5233 = vmatpush.msra.mxu0 %v5232
        %v5234 = vand.u32 %v1739, 4294901760
        %v5235 = vsub.f32 %v1739, %v5234
        %v5236 = vand.u32 %v5235, 4294901760
        %v5237 = vsub.f32 %v5235, %v5236
        %v5238 = vand.u32 %v5237, 4294901760
        %5239 = vmatpush.msra.mxu0 %v5238
        %v5240 = vand.u32 %v1754, 4294901760
        %5241 = vmatmul.f32.gmra.mxu0 %v5240
        %v5242 = vpop.f32.mrf.mxu0
        %v5243 = vadd.f32 %v5204, %v5242
        %v5244 = vand.u32 %v1757, 4294901760
        %5245 = vmatmul.f32.gmra.mxu0 %v5244
        %v5246 = vpop.f32.mrf.mxu0
        %v5247 = vadd.f32 %v5212, %v5246
        %5248 = vdwg.mxu0
        %5249 = vmatpush.msra.mxu0 0.0
        %5250 = vmatpush.msra.mxu0 0.0
        %5251 = vmatpush.msra.mxu0 0.0
        %5252 = vmatpush.msra.mxu0 0.0
        %5253 = vmatpush.msra.mxu0 0.0
        %5254 = vmatpush.msra.mxu0 0.0
        %5255 = vmatpush.msra.mxu0 0.0
        %5256 = vmatpush.msra.mxu0 0.0
        %5257 = vmatpush.msra.mxu0 0.0
        %5258 = vmatpush.msra.mxu0 0.0
        %5259 = vmatpush.msra.mxu0 0.0
        %5260 = vmatpush.msra.mxu0 0.0
        %5261 = vmatpush.msra.mxu0 0.0
        %5262 = vmatpush.msra.mxu0 0.0
        %v5263 = vand.u32 %v1743, 4294901760
        %v5264 = vsub.f32 %v1743, %v5263
        %5265 = vmatpush.msra.mxu0 %v5264
        %v5266 = vand.u32 %v1739, 4294901760
        %v5267 = vsub.f32 %v1739, %v5266
        %5268 = vmatpush.msra.mxu0 %v5267
        %v5269 = vand.u32 %v1754, 4294901760
        %v5270 = vsub.f32 %v1754, %v5269
        %5271 = vmatmul.f32.gmra.mxu0 %v5270
        %v5272 = vpop.f32.mrf.mxu0
        %v5273 = vadd.f32 %v5243, %v5272
        %v5274 = vand.u32 %v1757, 4294901760
        %v5275 = vsub.f32 %v1757, %v5274
        %5276 = vmatmul.f32.gmra.mxu0 %v5275
        %v5277 = vpop.f32.mrf.mxu0
        %v5278 = vadd.f32 %v5247, %v5277
        %5279 = vdwg.mxu0
        %5280 = vmatpush.msra.mxu0 0.0
        %5281 = vmatpush.msra.mxu0 0.0
        %5282 = vmatpush.msra.mxu0 0.0
        %5283 = vmatpush.msra.mxu0 0.0
        %5284 = vmatpush.msra.mxu0 0.0
        %5285 = vmatpush.msra.mxu0 0.0
        %5286 = vmatpush.msra.mxu0 0.0
        %5287 = vmatpush.msra.mxu0 0.0
        %5288 = vmatpush.msra.mxu0 0.0
        %5289 = vmatpush.msra.mxu0 0.0
        %5290 = vmatpush.msra.mxu0 0.0
        %5291 = vmatpush.msra.mxu0 0.0
        %5292 = vmatpush.msra.mxu0 0.0
        %5293 = vmatpush.msra.mxu0 0.0
        %v5294 = vand.u32 %v1743, 4294901760
        %5295 = vmatpush.msra.mxu0 %v5294
        %v5296 = vand.u32 %v1739, 4294901760
        %5297 = vmatpush.msra.mxu0 %v5296
        %v5298 = vand.u32 %v1754, 4294901760
        %v5299 = vsub.f32 %v1754, %v5298
        %v5300 = vand.u32 %v5299, 4294901760
        %5301 = vmatmul.f32.gmra.mxu0 %v5300
        %v5302 = vpop.f32.mrf.mxu0
        %v5303 = vadd.f32 %v5273, %v5302
        %v5304 = vand.u32 %v1757, 4294901760
        %v5305 = vsub.f32 %v1757, %v5304
        %v5306 = vand.u32 %v5305, 4294901760
        %5307 = vmatmul.f32.gmra.mxu0 %v5306
        %v5308 = vpop.f32.mrf.mxu0
        %v5309 = vadd.f32 %v5278, %v5308
        %5310 = vdwg.mxu0
        %5311 = vmatpush.msra.mxu0 0.0
        %5312 = vmatpush.msra.mxu0 0.0
        %5313 = vmatpush.msra.mxu0 0.0
        %5314 = vmatpush.msra.mxu0 0.0
        %5315 = vmatpush.msra.mxu0 0.0
        %5316 = vmatpush.msra.mxu0 0.0
        %5317 = vmatpush.msra.mxu0 0.0
        %5318 = vmatpush.msra.mxu0 0.0
        %5319 = vmatpush.msra.mxu0 0.0
        %5320 = vmatpush.msra.mxu0 0.0
        %5321 = vmatpush.msra.mxu0 0.0
        %5322 = vmatpush.msra.mxu0 0.0
        %5323 = vmatpush.msra.mxu0 0.0
        %5324 = vmatpush.msra.mxu0 0.0
        %v5325 = vand.u32 %v1743, 4294901760
        %v5326 = vsub.f32 %v1743, %v5325
        %v5327 = vand.u32 %v5326, 4294901760
        %5328 = vmatpush.msra.mxu0 %v5327
        %v5329 = vand.u32 %v1739, 4294901760
        %v5330 = vsub.f32 %v1739, %v5329
        %v5331 = vand.u32 %v5330, 4294901760
        %5332 = vmatpush.msra.mxu0 %v5331
        %v5333 = vand.u32 %v1754, 4294901760
        %5334 = vmatmul.f32.gmra.mxu0 %v5333
        %v5335 = vpop.f32.mrf.mxu0
        %v5336 = vadd.f32 %v5303, %v5335
        %v5337 = vand.u32 %v1757, 4294901760
        %5338 = vmatmul.f32.gmra.mxu0 %v5337
        %v5339 = vpop.f32.mrf.mxu0
        %v5340 = vadd.f32 %v5309, %v5339
        %5341 = vdwg.mxu0
        %5342 = vmatpush.msra.mxu0 0.0
        %5343 = vmatpush.msra.mxu0 0.0
        %5344 = vmatpush.msra.mxu0 0.0
        %5345 = vmatpush.msra.mxu0 0.0
        %5346 = vmatpush.msra.mxu0 0.0
        %5347 = vmatpush.msra.mxu0 0.0
        %5348 = vmatpush.msra.mxu0 0.0
        %5349 = vmatpush.msra.mxu0 0.0
        %5350 = vmatpush.msra.mxu0 0.0
        %5351 = vmatpush.msra.mxu0 0.0
        %5352 = vmatpush.msra.mxu0 0.0
        %5353 = vmatpush.msra.mxu0 0.0
        %5354 = vmatpush.msra.mxu0 0.0
        %5355 = vmatpush.msra.mxu0 0.0
        %v5356 = vand.u32 %v1743, 4294901760
        %5357 = vmatpush.msra.mxu0 %v5356
        %v5358 = vand.u32 %v1739, 4294901760
        %5359 = vmatpush.msra.mxu0 %v5358
        %v5360 = vand.u32 %v1754, 4294901760
        %5361 = vmatmul.f32.gmra.mxu0 %v5360
        %v5362 = vpop.f32.mrf.mxu0
        %v5363 = vadd.f32 %v5336, %v5362
        %v5364 = vand.u32 %v1757, 4294901760
        %5365 = vmatmul.f32.gmra.mxu0 %v5364
        %v5366 = vpop.f32.mrf.mxu0
        %v5367 = vadd.f32 %v5340, %v5366
        %5368 = vdwg.mxu0
        %5369 = vmatpush.msra.mxu0 0.0
        %5370 = vmatpush.msra.mxu0 0.0
        %5371 = vmatpush.msra.mxu0 0.0
        %5372 = vmatpush.msra.mxu0 0.0
        %5373 = vmatpush.msra.mxu0 0.0
        %5374 = vmatpush.msra.mxu0 0.0
        %5375 = vmatpush.msra.mxu0 0.0
        %5376 = vmatpush.msra.mxu0 0.0
        %5377 = vmatpush.msra.mxu0 0.0
        %5378 = vmatpush.msra.mxu0 0.0
        %5379 = vmatpush.msra.mxu0 0.0
        %5380 = vmatpush.msra.mxu0 0.0
        %5381 = vmatpush.msra.mxu0 0.0
        %5382 = vmatpush.msra.mxu0 0.0
        %v5383 = vand.u32 %v1751, 4294901760
        %5384 = vmatpush.msra.mxu0 %v5383
        %v5385 = vand.u32 %v1747, 4294901760
        %5386 = vmatpush.msra.mxu0 %v5385
        %v5387 = vand.u32 %v1754, 4294901760
        %v5388 = vsub.f32 %v1754, %v5387
        %v5389 = vand.u32 %v5388, 4294901760
        %v5390 = vsub.f32 %v5388, %v5389
        %v5391 = vand.u32 %v5390, 4294901760
        %5392 = vmatmul.f32.gmra.mxu0 %v5391
        %v5393 = vpop.f32.mrf.mxu0
        %v5394 = vadd.f32 0.0, %v5393
        %v5395 = vand.u32 %v1757, 4294901760
        %v5396 = vsub.f32 %v1757, %v5395
        %v5397 = vand.u32 %v5396, 4294901760
        %v5398 = vsub.f32 %v5396, %v5397
        %v5399 = vand.u32 %v5398, 4294901760
        %5400 = vmatmul.f32.gmra.mxu0 %v5399
        %v5401 = vpop.f32.mrf.mxu0
        %v5402 = vadd.f32 0.0, %v5401
        %5403 = vdwg.mxu0
        %5404 = vmatpush.msra.mxu0 0.0
        %5405 = vmatpush.msra.mxu0 0.0
        %5406 = vmatpush.msra.mxu0 0.0
        %5407 = vmatpush.msra.mxu0 0.0
        %5408 = vmatpush.msra.mxu0 0.0
        %5409 = vmatpush.msra.mxu0 0.0
        %5410 = vmatpush.msra.mxu0 0.0
        %5411 = vmatpush.msra.mxu0 0.0
        %5412 = vmatpush.msra.mxu0 0.0
        %5413 = vmatpush.msra.mxu0 0.0
        %5414 = vmatpush.msra.mxu0 0.0
        %5415 = vmatpush.msra.mxu0 0.0
        %5416 = vmatpush.msra.mxu0 0.0
        %5417 = vmatpush.msra.mxu0 0.0
        %v5418 = vand.u32 %v1751, 4294901760
        %v5419 = vsub.f32 %v1751, %v5418
        %v5420 = vand.u32 %v5419, 4294901760
        %v5421 = vsub.f32 %v5419, %v5420
        %v5422 = vand.u32 %v5421, 4294901760
        %5423 = vmatpush.msra.mxu0 %v5422
        %v5424 = vand.u32 %v1747, 4294901760
        %v5425 = vsub.f32 %v1747, %v5424
        %v5426 = vand.u32 %v5425, 4294901760
        %v5427 = vsub.f32 %v5425, %v5426
        %v5428 = vand.u32 %v5427, 4294901760
        %5429 = vmatpush.msra.mxu0 %v5428
        %v5430 = vand.u32 %v1754, 4294901760
        %5431 = vmatmul.f32.gmra.mxu0 %v5430
        %v5432 = vpop.f32.mrf.mxu0
        %v5433 = vadd.f32 %v5394, %v5432
        %v5434 = vand.u32 %v1757, 4294901760
        %5435 = vmatmul.f32.gmra.mxu0 %v5434
        %v5436 = vpop.f32.mrf.mxu0
        %v5437 = vadd.f32 %v5402, %v5436
        %5438 = vdwg.mxu0
        %5439 = vmatpush.msra.mxu0 0.0
        %5440 = vmatpush.msra.mxu0 0.0
        %5441 = vmatpush.msra.mxu0 0.0
        %5442 = vmatpush.msra.mxu0 0.0
        %5443 = vmatpush.msra.mxu0 0.0
        %5444 = vmatpush.msra.mxu0 0.0
        %5445 = vmatpush.msra.mxu0 0.0
        %5446 = vmatpush.msra.mxu0 0.0
        %5447 = vmatpush.msra.mxu0 0.0
        %5448 = vmatpush.msra.mxu0 0.0
        %5449 = vmatpush.msra.mxu0 0.0
        %5450 = vmatpush.msra.mxu0 0.0
        %5451 = vmatpush.msra.mxu0 0.0
        %5452 = vmatpush.msra.mxu0 0.0
        %v5453 = vand.u32 %v1751, 4294901760
        %v5454 = vsub.f32 %v1751, %v5453
        %5455 = vmatpush.msra.mxu0 %v5454
        %v5456 = vand.u32 %v1747, 4294901760
        %v5457 = vsub.f32 %v1747, %v5456
        %5458 = vmatpush.msra.mxu0 %v5457
        %v5459 = vand.u32 %v1754, 4294901760
        %v5460 = vsub.f32 %v1754, %v5459
        %5461 = vmatmul.f32.gmra.mxu0 %v5460
        %v5462 = vpop.f32.mrf.mxu0
        %v5463 = vadd.f32 %v5433, %v5462
        %v5464 = vand.u32 %v1757, 4294901760
        %v5465 = vsub.f32 %v1757, %v5464
        %5466 = vmatmul.f32.gmra.mxu0 %v5465
        %v5467 = vpop.f32.mrf.mxu0
        %v5468 = vadd.f32 %v5437, %v5467
        %5469 = vdwg.mxu0
        %5470 = vmatpush.msra.mxu0 0.0
        %5471 = vmatpush.msra.mxu0 0.0
        %5472 = vmatpush.msra.mxu0 0.0
        %5473 = vmatpush.msra.mxu0 0.0
        %5474 = vmatpush.msra.mxu0 0.0
        %5475 = vmatpush.msra.mxu0 0.0
        %5476 = vmatpush.msra.mxu0 0.0
        %5477 = vmatpush.msra.mxu0 0.0
        %5478 = vmatpush.msra.mxu0 0.0
        %5479 = vmatpush.msra.mxu0 0.0
        %5480 = vmatpush.msra.mxu0 0.0
        %5481 = vmatpush.msra.mxu0 0.0
        %5482 = vmatpush.msra.mxu0 0.0
        %5483 = vmatpush.msra.mxu0 0.0
        %v5484 = vand.u32 %v1751, 4294901760
        %5485 = vmatpush.msra.mxu0 %v5484
        %v5486 = vand.u32 %v1747, 4294901760
        %5487 = vmatpush.msra.mxu0 %v5486
        %v5488 = vand.u32 %v1754, 4294901760
        %v5489 = vsub.f32 %v1754, %v5488
        %v5490 = vand.u32 %v5489, 4294901760
        %5491 = vmatmul.f32.gmra.mxu0 %v5490
        %v5492 = vpop.f32.mrf.mxu0
        %v5493 = vadd.f32 %v5463, %v5492
        %v5494 = vand.u32 %v1757, 4294901760
        %v5495 = vsub.f32 %v1757, %v5494
        %v5496 = vand.u32 %v5495, 4294901760
        %5497 = vmatmul.f32.gmra.mxu0 %v5496
        %v5498 = vpop.f32.mrf.mxu0
        %v5499 = vadd.f32 %v5468, %v5498
        %5500 = vdwg.mxu0
        %5501 = vmatpush.msra.mxu0 0.0
        %5502 = vmatpush.msra.mxu0 0.0
        %5503 = vmatpush.msra.mxu0 0.0
        %5504 = vmatpush.msra.mxu0 0.0
        %5505 = vmatpush.msra.mxu0 0.0
        %5506 = vmatpush.msra.mxu0 0.0
        %5507 = vmatpush.msra.mxu0 0.0
        %5508 = vmatpush.msra.mxu0 0.0
        %5509 = vmatpush.msra.mxu0 0.0
        %5510 = vmatpush.msra.mxu0 0.0
        %5511 = vmatpush.msra.mxu0 0.0
        %5512 = vmatpush.msra.mxu0 0.0
        %5513 = vmatpush.msra.mxu0 0.0
        %5514 = vmatpush.msra.mxu0 0.0
        %v5515 = vand.u32 %v1751, 4294901760
        %v5516 = vsub.f32 %v1751, %v5515
        %v5517 = vand.u32 %v5516, 4294901760
        %5518 = vmatpush.msra.mxu0 %v5517
        %v5519 = vand.u32 %v1747, 4294901760
        %v5520 = vsub.f32 %v1747, %v5519
        %v5521 = vand.u32 %v5520, 4294901760
        %5522 = vmatpush.msra.mxu0 %v5521
        %v5523 = vand.u32 %v1754, 4294901760
        %5524 = vmatmul.f32.gmra.mxu0 %v5523
        %v5525 = vpop.f32.mrf.mxu0
        %v5526 = vadd.f32 %v5493, %v5525
        %v5527 = vand.u32 %v1757, 4294901760
        %5528 = vmatmul.f32.gmra.mxu0 %v5527
        %v5529 = vpop.f32.mrf.mxu0
        %v5530 = vadd.f32 %v5499, %v5529
        %5531 = vdwg.mxu0
        %5532 = vmatpush.msra.mxu0 0.0
        %5533 = vmatpush.msra.mxu0 0.0
        %5534 = vmatpush.msra.mxu0 0.0
        %5535 = vmatpush.msra.mxu0 0.0
        %5536 = vmatpush.msra.mxu0 0.0
        %5537 = vmatpush.msra.mxu0 0.0
        %5538 = vmatpush.msra.mxu0 0.0
        %5539 = vmatpush.msra.mxu0 0.0
        %5540 = vmatpush.msra.mxu0 0.0
        %5541 = vmatpush.msra.mxu0 0.0
        %5542 = vmatpush.msra.mxu0 0.0
        %5543 = vmatpush.msra.mxu0 0.0
        %5544 = vmatpush.msra.mxu0 0.0
        %5545 = vmatpush.msra.mxu0 0.0
        %v5546 = vand.u32 %v1751, 4294901760
        %5547 = vmatpush.msra.mxu0 %v5546
        %v5548 = vand.u32 %v1747, 4294901760
        %5549 = vmatpush.msra.mxu0 %v5548
        %v5550 = vand.u32 %v1754, 4294901760
        %5551 = vmatmul.f32.gmra.mxu0 %v5550
        %v5552 = vpop.f32.mrf.mxu0
        %v5553 = vadd.f32 %v5526, %v5552
        %v5554 = vand.u32 %v1757, 4294901760
        %5555 = vmatmul.f32.gmra.mxu0 %v5554
        %v5556 = vpop.f32.mrf.mxu0
        %v5557 = vadd.f32 %v5530, %v5556
        %5558 = vdwg.mxu0
        %v5559 = vmul.f32 %v1943, %v1943
        %v5560 = vmul.f32 %v1947, %v1947
        %v5561 = vmul.f32 %v2133, %v2133
        %v5562 = vmul.f32 %v2137, %v2137
        %v5563 = vmul.f32 %v2323, %v2323
        %v5564 = vmul.f32 %v2327, %v2327
        %v5565 = vmul.f32 %v2513, %v2513
        %v5566 = vmul.f32 %v2517, %v2517
        %v5567 = vmul.f32 %v2703, %v2703
        %v5568 = vmul.f32 %v2707, %v2707
        %v5569 = vmul.f32 %v2893, %v2893
        %v5570 = vmul.f32 %v2897, %v2897
        %v5571 = vmul.f32 %v3083, %v3083
        %v5572 = vmul.f32 %v3087, %v3087
        %v5573 = vmul.f32 %v3273, %v3273
        %v5574 = vmul.f32 %v3277, %v3277
        %v5575 = vmul.f32 %v1943, %v2703
        %v5576 = vmul.f32 %v1947, %v2707
        %v5577 = vmul.f32 %v2133, %v2893
        %v5578 = vmul.f32 %v2137, %v2897
        %v5579 = vmul.f32 %v2323, %v3083
        %v5580 = vmul.f32 %v2327, %v3087
        %v5581 = vmul.f32 %v2513, %v3273
        %v5582 = vmul.f32 %v2517, %v3277
        %v5583 = vsub.f32 %v3463, %v5559
        %v5584 = vsub.f32 %v3467, %v5560
        %v5585 = vsub.f32 %v3653, %v5561
        %v5586 = vsub.f32 %v3657, %v5562
        %v5587 = vsub.f32 %v3843, %v5563
        %v5588 = vsub.f32 %v3847, %v5564
        %v5589 = vsub.f32 %v4033, %v5565
        %v5590 = vsub.f32 %v4037, %v5566
        %v5591 = vsub.f32 %v4223, %v5567
        %v5592 = vsub.f32 %v4227, %v5568
        %v5593 = vsub.f32 %v4413, %v5569
        %v5594 = vsub.f32 %v4417, %v5570
        %v5595 = vsub.f32 %v4603, %v5571
        %v5596 = vsub.f32 %v4607, %v5572
        %v5597 = vsub.f32 %v4793, %v5573
        %v5598 = vsub.f32 %v4797, %v5574
        %v5599 = vsub.f32 %v4983, %v5575
        %v5600 = vsub.f32 %v4987, %v5576
        %v5601 = vsub.f32 %v5173, %v5577
        %v5602 = vsub.f32 %v5177, %v5578
        %v5603 = vsub.f32 %v5363, %v5579
        %v5604 = vsub.f32 %v5367, %v5580
        %v5605 = vsub.f32 %v5553, %v5581
        %v5606 = vsub.f32 %v5557, %v5582
        %v5607 = vmul.f32 %v5575, 2.0
        %v5608 = vmul.f32 %v5576, 2.0
        %v5609 = vmul.f32 %v5577, 2.0
        %v5610 = vmul.f32 %v5578, 2.0
        %v5611 = vmul.f32 %v5579, 2.0
        %v5612 = vmul.f32 %v5580, 2.0
        %v5613 = vmul.f32 %v5581, 2.0
        %v5614 = vmul.f32 %v5582, 2.0
        %v5615 = vadd.f32 %v5607, 0.0001
        %v5616 = vadd.f32 %v5608, 0.0001
        %v5617 = vadd.f32 %v5609, 0.0001
        %v5618 = vadd.f32 %v5610, 0.0001
        %v5619 = vadd.f32 %v5611, 0.0001
        %v5620 = vadd.f32 %v5612, 0.0001
        %v5621 = vadd.f32 %v5613, 0.0001
        %v5622 = vadd.f32 %v5614, 0.0001
        %v5623 = vmul.f32 %v5599, 2.0
        %v5624 = vmul.f32 %v5600, 2.0
        %v5625 = vmul.f32 %v5601, 2.0
        %v5626 = vmul.f32 %v5602, 2.0
        %v5627 = vmul.f32 %v5603, 2.0
        %v5628 = vmul.f32 %v5604, 2.0
        %v5629 = vmul.f32 %v5605, 2.0
        %v5630 = vmul.f32 %v5606, 2.0
        %v5631 = vadd.f32 %v5623, 0.0009
        %v5632 = vadd.f32 %v5624, 0.0009
        %v5633 = vadd.f32 %v5625, 0.0009
        %v5634 = vadd.f32 %v5626, 0.0009
        %v5635 = vadd.f32 %v5627, 0.0009
        %v5636 = vadd.f32 %v5628, 0.0009
        %v5637 = vadd.f32 %v5629, 0.0009
        %v5638 = vadd.f32 %v5630, 0.0009
        %v5639 = vmul.f32 %v5615, %v5631
        %v5640 = vmul.f32 %v5616, %v5632
        %v5641 = vmul.f32 %v5617, %v5633
        %v5642 = vmul.f32 %v5618, %v5634
        %v5643 = vmul.f32 %v5619, %v5635
        %v5644 = vmul.f32 %v5620, %v5636
        %v5645 = vmul.f32 %v5621, %v5637
        %v5646 = vmul.f32 %v5622, %v5638
        %v5647 = vadd.f32 %v5559, %v5567
        %v5648 = vadd.f32 %v5560, %v5568
        %v5649 = vadd.f32 %v5561, %v5569
        %v5650 = vadd.f32 %v5562, %v5570
        %v5651 = vadd.f32 %v5563, %v5571
        %v5652 = vadd.f32 %v5564, %v5572
        %v5653 = vadd.f32 %v5565, %v5573
        %v5654 = vadd.f32 %v5566, %v5574
        %v5655 = vadd.f32 %v5647, 0.0001
        %v5656 = vadd.f32 %v5648, 0.0001
        %v5657 = vadd.f32 %v5649, 0.0001
        %v5658 = vadd.f32 %v5650, 0.0001
        %v5659 = vadd.f32 %v5651, 0.0001
        %v5660 = vadd.f32 %v5652, 0.0001
        %v5661 = vadd.f32 %v5653, 0.0001
        %v5662 = vadd.f32 %v5654, 0.0001
        %v5663 = vadd.f32 %v5583, %v5591
        %v5664 = vadd.f32 %v5584, %v5592
        %v5665 = vadd.f32 %v5585, %v5593
        %v5666 = vadd.f32 %v5586, %v5594
        %v5667 = vadd.f32 %v5587, %v5595
        %v5668 = vadd.f32 %v5588, %v5596
        %v5669 = vadd.f32 %v5589, %v5597
        %v5670 = vadd.f32 %v5590, %v5598
        %v5671 = vadd.f32 %v5663, 0.0009
        %v5672 = vadd.f32 %v5664, 0.0009
        %v5673 = vadd.f32 %v5665, 0.0009
        %v5674 = vadd.f32 %v5666, 0.0009
        %v5675 = vadd.f32 %v5667, 0.0009
        %v5676 = vadd.f32 %v5668, 0.0009
        %v5677 = vadd.f32 %v5669, 0.0009
        %v5678 = vadd.f32 %v5670, 0.0009
        %v5679 = vmul.f32 %v5655, %v5671
        %v5680 = vmul.f32 %v5656, %v5672
        %v5681 = vmul.f32 %v5657, %v5673
        %v5682 = vmul.f32 %v5658, %v5674
        %v5683 = vmul.f32 %v5659, %v5675
        %v5684 = vmul.f32 %v5660, %v5676
        %v5685 = vmul.f32 %v5661, %v5677
        %v5686 = vmul.f32 %v5662, %v5678
        %v5687 = vrcp.pop %v5679
        %v5688 = vmul.f32 %v5679, %v5687
        %v5689 = vsub.f32 1.0, %v5688
        %v5690 = vmul.f32 %v5687, %v5689
        %v5691 = vadd.f32 %v5687, %v5690
        %vm5692 = vweird.f32 %v5679
        %vm5693 = vweird.f32 %v5687
        %vm5694 = vmor %vm5692, %vm5693
        %v5695 = vsel %vm5694, %v5687, %v5691
        %v5696 = vand.u32 2147483647, %v5679
        %vm5697 = vcmp.eq.f32.partialorder %v5696, 8.507059e+37
        %v5698 = vand.u32 %v5679, 2147483648
        %v5699 = vor.u32 1.1754944e-38, %v5698
        %v5700 = vsel %vm5697, %v5699, %v5695
        %v5701 = vmul.f32 %v5639, %v5700
        %v5702 = vrcp.pop %v5680
        %v5703 = vmul.f32 %v5680, %v5702
        %v5704 = vsub.f32 1.0, %v5703
        %v5705 = vmul.f32 %v5702, %v5704
        %v5706 = vadd.f32 %v5702, %v5705
        %vm5707 = vweird.f32 %v5680
        %vm5708 = vweird.f32 %v5702
        %vm5709 = vmor %vm5707, %vm5708
        %v5710 = vsel %vm5709, %v5702, %v5706
        %v5711 = vand.u32 2147483647, %v5680
        %vm5712 = vcmp.eq.f32.partialorder %v5711, 8.507059e+37
        %v5713 = vand.u32 %v5680, 2147483648
        %v5714 = vor.u32 1.1754944e-38, %v5713
        %v5715 = vsel %vm5712, %v5714, %v5710
        %v5716 = vmul.f32 %v5640, %v5715
        %v5717 = vrcp.pop %v5681
        %v5718 = vmul.f32 %v5681, %v5717
        %v5719 = vsub.f32 1.0, %v5718
        %v5720 = vmul.f32 %v5717, %v5719
        %v5721 = vadd.f32 %v5717, %v5720
        %vm5722 = vweird.f32 %v5681
        %vm5723 = vweird.f32 %v5717
        %vm5724 = vmor %vm5722, %vm5723
        %v5725 = vsel %vm5724, %v5717, %v5721
        %v5726 = vand.u32 2147483647, %v5681
        %vm5727 = vcmp.eq.f32.partialorder %v5726, 8.507059e+37
        %v5728 = vand.u32 %v5681, 2147483648
        %v5729 = vor.u32 1.1754944e-38, %v5728
        %v5730 = vsel %vm5727, %v5729, %v5725
        %v5731 = vmul.f32 %v5641, %v5730
        %v5732 = vrcp.pop %v5682
        %v5733 = vmul.f32 %v5682, %v5732
        %v5734 = vsub.f32 1.0, %v5733
        %v5735 = vmul.f32 %v5732, %v5734
        %v5736 = vadd.f32 %v5732, %v5735
        %vm5737 = vweird.f32 %v5682
        %vm5738 = vweird.f32 %v5732
        %vm5739 = vmor %vm5737, %vm5738
        %v5740 = vsel %vm5739, %v5732, %v5736
        %v5741 = vand.u32 2147483647, %v5682
        %vm5742 = vcmp.eq.f32.partialorder %v5741, 8.507059e+37
        %v5743 = vand.u32 %v5682, 2147483648
        %v5744 = vor.u32 1.1754944e-38, %v5743
        %v5745 = vsel %vm5742, %v5744, %v5740
        %v5746 = vmul.f32 %v5642, %v5745
        %v5747 = vrcp.pop %v5683
        %v5748 = vmul.f32 %v5683, %v5747
        %v5749 = vsub.f32 1.0, %v5748
        %v5750 = vmul.f32 %v5747, %v5749
        %v5751 = vadd.f32 %v5747, %v5750
        %vm5752 = vweird.f32 %v5683
        %vm5753 = vweird.f32 %v5747
        %vm5754 = vmor %vm5752, %vm5753
        %v5755 = vsel %vm5754, %v5747, %v5751
        %v5756 = vand.u32 2147483647, %v5683
        %vm5757 = vcmp.eq.f32.partialorder %v5756, 8.507059e+37
        %v5758 = vand.u32 %v5683, 2147483648
        %v5759 = vor.u32 1.1754944e-38, %v5758
        %v5760 = vsel %vm5757, %v5759, %v5755
        %v5761 = vmul.f32 %v5643, %v5760
        %v5762 = vrcp.pop %v5684
        %v5763 = vmul.f32 %v5684, %v5762
        %v5764 = vsub.f32 1.0, %v5763
        %v5765 = vmul.f32 %v5762, %v5764
        %v5766 = vadd.f32 %v5762, %v5765
        %vm5767 = vweird.f32 %v5684
        %vm5768 = vweird.f32 %v5762
        %vm5769 = vmor %vm5767, %vm5768
        %v5770 = vsel %vm5769, %v5762, %v5766
        %v5771 = vand.u32 2147483647, %v5684
        %vm5772 = vcmp.eq.f32.partialorder %v5771, 8.507059e+37
        %v5773 = vand.u32 %v5684, 2147483648
        %v5774 = vor.u32 1.1754944e-38, %v5773
        %v5775 = vsel %vm5772, %v5774, %v5770
        %v5776 = vmul.f32 %v5644, %v5775
        %v5777 = vrcp.pop %v5685
        %v5778 = vmul.f32 %v5685, %v5777
        %v5779 = vsub.f32 1.0, %v5778
        %v5780 = vmul.f32 %v5777, %v5779
        %v5781 = vadd.f32 %v5777, %v5780
        %vm5782 = vweird.f32 %v5685
        %vm5783 = vweird.f32 %v5777
        %vm5784 = vmor %vm5782, %vm5783
        %v5785 = vsel %vm5784, %v5777, %v5781
        %v5786 = vand.u32 2147483647, %v5685
        %vm5787 = vcmp.eq.f32.partialorder %v5786, 8.507059e+37
        %v5788 = vand.u32 %v5685, 2147483648
        %v5789 = vor.u32 1.1754944e-38, %v5788
        %v5790 = vsel %vm5787, %v5789, %v5785
        %v5791 = vmul.f32 %v5645, %v5790
        %v5792 = vrcp.pop %v5686
        %v5793 = vmul.f32 %v5686, %v5792
        %v5794 = vsub.f32 1.0, %v5793
        %v5795 = vmul.f32 %v5792, %v5794
        %v5796 = vadd.f32 %v5792, %v5795
        %vm5797 = vweird.f32 %v5686
        %vm5798 = vweird.f32 %v5792
        %vm5799 = vmor %vm5797, %vm5798
        %v5800 = vsel %vm5799, %v5792, %v5796
        %v5801 = vand.u32 2147483647, %v5686
        %vm5802 = vcmp.eq.f32.partialorder %v5801, 8.507059e+37
        %v5803 = vand.u32 %v5686, 2147483648
        %v5804 = vor.u32 1.1754944e-38, %v5803
        %v5805 = vsel %vm5802, %v5804, %v5800
        %v5806 = vmul.f32 %v5646, %v5805
        %s5807 = smul.u32 %s18, 4
        %v5808 = vstv %s5807
        %v5809 = vadd.s32 %v5808, 1
        %v5810 = vadd.s32 %v5808, 2
        %v5811 = vadd.s32 %v5808, 3
        %vm5812 = vcmp.lt.s32.totalorder %v5808, 8
        %vm5813 = vcmp.lt.s32.totalorder %v5809, 8
        %vm5814 = vcmp.lt.s32.totalorder %v5810, 8
        %vm5815 = vcmp.lt.s32.totalorder %v5811, 8
        %v5816 = vsel %vm5812, %v5701, 0.0
        %v5817 = vsel %vm5812, %v5716, 0.0
        %v5818 = vsel %vm5813, %v5731, 0.0
        %v5819 = vsel %vm5813, %v5746, 0.0
        %v5820 = vsel %vm5814, %v5761, 0.0
        %v5821 = vsel %vm5814, %v5776, 0.0
        %v5822 = vsel %vm5815, %v5791, 0.0
        %v5823 = vsel %vm5815, %v5806, 0.0
        %v5824 = vsel %vm264, %v5816, 0.0
        %v5825 = vsel %vm264, %v5817, 0.0
        %v5826 = vadd.f32 %v5824, %v5825
        %v5827 = vsel %vm264, %v5818, 0.0
        %v5828 = vadd.f32 %v5826, %v5827
        %v5829 = vsel %vm264, %v5819, 0.0
        %v5830 = vadd.f32 %v5828, %v5829
        %v5831 = vsel %vm264, %v5820, 0.0
        %v5832 = vadd.f32 %v5830, %v5831
        %v5833 = vsel %vm264, %v5821, 0.0
        %v5834 = vadd.f32 %v5832, %v5833
        %v5835 = vsel %vm264, %v5822, 0.0
        %v5836 = vadd.f32 %v5834, %v5835
        %v5837 = vsel %vm264, %v5823, 0.0
        %v5838 = vadd.f32 %v5836, %v5837
        %5839 = vadd.xlane.f32.xlu0 %v5838
        %v5840 = vpop.xlane.xlu0 %5839
        %v5841 = vrot.slane %v5840, 4
        %v5842 = vadd.f32 %v5840, %v5841
        %v5843 = vrot.slane %v5842, 2
        %v5844 = vadd.f32 %v5842, %v5843
        %v5845 = vrot.slane %v5844, 1
        %v5846 = vadd.f32 %v5844, %v5845
        %s5847 = vtos %v5846
        %v5848 = vstv %s5847
        %v5849 = vadd.f32 %v5848, 0.0
        %5850 = vst [vmem:[%s207] sm:$0xff] %v5849
        %s5851 = sand.u32 %s120, 1
        %s5852 = scalar_lea.sflag [#allocation3], %s5851
        %s5853 = sand.u32 %s120, 1
        %s5854 = smul.addr %s5853, 8
        %s5855 = scalar_lea.vmem [#allocation2], %s5854
        // Predicated region
        $region37: #{tpu_custom_call.1} parent=35 // pred_check
          %p5856 = pneg %p130
        $region38: #{tpu_custom_call.1} parent=35 // pred_check_branch
          %5858 = sbr.rel (%p5856) target = $region40
        $region39: #{tpu_custom_call.1} parent=35 // pred_region
          %5860 = vsyncadd %s5852, 0
          %s5861 = smul.addr %s18, 8
          %s5862 = scalar_lea.hbm %s4, %s5861
          %s5864 = sshll.u32 %s5855, 4
          %s5865 = int_to_ptr.vmem [resolvable:$true] %s5864
          %s5866 = sshll.u32 %s5862, 4
          %s5867 = int_to_ptr.hbm [resolvable:$true] %s5866
          %5869 = dma.vmem_to_hbm [thread:$0]  %s5865, 128, %s5867, %s5852
        $region40: #{tpu_custom_call.1} parent=35 // pred_fallthru
          _
      $region36: #{tpu_custom_call.1} parent=5 // pred_fallthru
        _
      %p5870 = scmp.le.s32.totalorder 2, %s13
      // Predicated region
      $region41: #{tpu_custom_call.1} parent=5 // pred_check
        %p5871 = pneg %p5870
      $region42: #{tpu_custom_call.1} parent=5 // pred_check_branch
        %5873 = sbr.rel (%p5871) target = $region44
      $region43: #{tpu_custom_call.1} parent=5 // pred_region
        %s5874 = ssub.s32 %s13, 2
        // Predicated region
        $region45: #{tpu_custom_call.1} parent=43 // pred_check
          %p5875 = pneg %p136
        $region46: #{tpu_custom_call.1} parent=43 // pred_check_branch
          %5877 = sbr.rel (%p5875) target = $region48
        $region47: #{tpu_custom_call.1} parent=43 // pred_region
          %s5878 = sand.u32 %s121, 1
          %s5879 = scalar_lea.sflag [#allocation3], %s5878
          %s5880 = sand.u32 %s121, 1
          %s5881 = smul.addr %s5880, 8
          %s5882 = scalar_lea.vmem [#allocation2], %s5881
          %5884 = dma.done %s5879, 128
        $region48: #{tpu_custom_call.1} parent=43 // pred_fallthru
          _
      $region44: #{tpu_custom_call.1} parent=5 // pred_fallthru
        _
    $region6: #{tpu_custom_call.1} parent=1 // loop_footer
      %s17 = sadd.s32 1, %s13
    $region7: #{tpu_custom_call.1} parent=1 // loop_footer_branch
      %12 = sbr.rel target = $region3
    $region8: #{tpu_custom_call.1} parent=1 // loop_exit
      _
    %5885 = vsyncpa [#allocation3], 1
    %s5886 = scalar_lea.sflag [#allocation3], 1
    %5887 = vsyncpa %s5886, 1

</llo_original>
